<compile_context>
chip_gen: v5e
topology: v5e:2x2
jax: 0.10.0
libtpu: 0.0.40
codegen_flags: <defaults>
</compile_context>

<pallas_src>
import math

import jax
import jax.numpy as jnp
from jax import lax
from jax.experimental import pallas as pl
from jax.experimental.pallas import tpu as pltpu


_MXU_DTYPE = jnp.bfloat16        # MXU operand dtype (accumulation stays f32).
_VMEM_LIMIT = 48 * 1024 * 1024   # explicit scoped-VMEM cap; fits v5e/v6e/v7x.


# ----------------------------------------------------------------------------
# Fused BN -> ReLU -> conv3x3 kernel (optionally + residual add, + batch-stat
# epilogue).  One grid step = one batch item, whole image resident in VMEM.
# ----------------------------------------------------------------------------
def _make_bn_relu_conv_kernel(H, W, Cin, Cout, add_residual, emit_stats):
    def kernel(*refs):
        idx = 0
        x_ref = refs[idx]; idx += 1          # (1, H, W, Cin)
        scale_ref = refs[idx]; idx += 1      # (1, Cin)  f32
        shift_ref = refs[idx]; idx += 1      # (1, Cin)  f32
        w_ref = refs[idx]; idx += 1          # (9*Cin, Cout)  bf16
        res_ref = None
        if add_residual:
            res_ref = refs[idx]; idx += 1    # (1, H, W, Cout)
        y_ref = refs[idx]; idx += 1          # (1, H, W, Cout)
        stats_ref = None
        if emit_stats:
            stats_ref = refs[idx]; idx += 1  # (1, 1, 2*Cout)  f32
        pad_ref = refs[idx]                  # VMEM scratch (H+2, W+2, Cin) f32

        # ---- BN (folded scale/shift) + ReLU prologue (f32 on the VPU) ------
        a = jnp.maximum(
            x_ref[0].astype(jnp.float32) * scale_ref[...] + shift_ref[...],
            0.0)                                            # (H, W, Cin)

        # ---- zero ONLY the 1-pixel border of the pad scratch ----------------
        # Interior is fully overwritten below.  Done unconditionally each step:
        # gating on program_id==0 would leave a stale border on the second
        # TensorCore under megacore ("parallel") batch sharding.
        zrow = jnp.zeros((1, W + 2, Cin), jnp.float32)
        zcol = jnp.zeros((H + 2, 1, Cin), jnp.float32)
        pad_ref[0:1, :, :] = zrow
        pad_ref[H + 1:H + 2, :, :] = zrow
        pad_ref[:, 0:1, :] = zcol
        pad_ref[:, W + 1:W + 2, :] = zcol
        pad_ref[1:H + 1, 1:W + 1, :] = a

        # ---- im2col: 3 column-shifted reads shared across all 3 row taps ----
        # Only 3 (vs 9) sublane-offset reads; the dy taps are aligned
        # leading-axis slices of those values.
        # TODO(synk): pltpu.roll(a, +-1, axis=1) + an edge mask would remove
        # the remaining 2 unaligned column reads and the unaligned interior
        # store entirely (XLU slot, effectively free).
        s_dx = [pad_ref[:, dx:dx + W, :] for dx in range(3)]   # each (H+2, W, Cin)
        taps = [s_dx[dx][dy:dy + H] for dy in range(3) for dx in range(3)]
        t = jnp.concatenate(taps, axis=-1)                     # (H, W, 9*Cin)

        # ---- single MXU matmul: K = 9*Cin, bf16 operands, f32 accumulate ----
        lhs = t.reshape(H * W, 9 * Cin).astype(w_ref.dtype)
        acc = jnp.dot(lhs, w_ref[...], preferred_element_type=jnp.float32)

        # ---- fused per-channel sum / sum-of-squares epilogue (f32 acc) ------
        if emit_stats:
            ssum = jnp.sum(acc, axis=0, keepdims=True)              # (1, Cout)
            ssq = jnp.sum(acc * acc, axis=0, keepdims=True)         # (1, Cout)
            stats_ref[0] = jnp.concatenate([ssum, ssq], axis=-1)    # (1, 2*Cout)

        # ---- fused residual add + store --------------------------------------
        y = acc.reshape(H, W, Cout)
        if add_residual:
            y = y + res_ref[0].astype(jnp.float32)
        y_ref[0] = y.astype(y_ref.dtype)

    return kernel


def bn_relu_conv3x3(x, scale, shift, w_flat, residual=None, emit_stats=False,
                    out_dtype=jnp.float32):
    """Fused (x*scale+shift -> relu -> 3x3 'same' conv [-> +residual]).

    x:      (N, H, W, Cin) NHWC activations (any float dtype).
    scale/shift: (Cin,) folded BatchNorm affine (f32).
    w_flat: (9*Cin, Cout) tap-major weights; row (3*dy+dx)*Cin+ci holds
            torch_weight[:, ci, dy, dx].  bf16 recommended (MXU operands).
    If emit_stats, also returns lane-packed per-item (sum, sum_sq) of the f32
    conv output, shape (N, 1, 2*Cout).
    """
    N, H, W, Cin = x.shape
    assert w_flat.ndim == 2 and w_flat.shape[0] == 9 * Cin
    Cout = w_flat.shape[1]

    scale2d = scale.reshape(1, Cin).astype(jnp.float32)
    shift2d = shift.reshape(1, Cin).astype(jnp.float32)

    kernel = _make_bn_relu_conv_kernel(
        H, W, Cin, Cout,
        add_residual=residual is not None,
        emit_stats=emit_stats)

    in_specs = [
        pl.BlockSpec((1, H, W, Cin), lambda n: (n, 0, 0, 0)),
        pl.BlockSpec((1, Cin), lambda n: (0, 0)),
        pl.BlockSpec((1, Cin), lambda n: (0, 0)),
        pl.BlockSpec((9 * Cin, Cout), lambda n: (0, 0)),
    ]
    inputs = [x, scale2d, shift2d, w_flat]
    if residual is not None:
        in_specs.append(pl.BlockSpec((1, H, W, Cout), lambda n: (n, 0, 0, 0)))
        inputs.append(residual)

    y_shape = jax.ShapeDtypeStruct((N, H, W, Cout), out_dtype)
    y_spec = pl.BlockSpec((1, H, W, Cout), lambda n: (n, 0, 0, 0))
    if emit_stats:
        out_shape = (y_shape, jax.ShapeDtypeStruct((N, 1, 2 * Cout), jnp.float32))
        out_specs = (y_spec, pl.BlockSpec((1, 1, 2 * Cout), lambda n: (n, 0, 0)))
    else:
        out_shape = y_shape
        out_specs = y_spec

    # TODO(synk): at production sizes (e.g. 256x256x64) split the whole-image
    # block into row tiles with a 1-row halo, mark (batch, row-tile) both
    # "parallel", and present a lane-dense (H, W*C) output slab; whole-image
    # blocks are the right (largest-that-fits) tile at these demo sizes.
    return pl.pallas_call(
        kernel,
        out_shape=out_shape,
        grid_spec=pltpu.PrefetchScalarGridSpec(
            num_scalar_prefetch=0,
            grid=(N,),
            in_specs=in_specs,
            out_specs=out_specs,
            scratch_shapes=[pltpu.VMEM((H + 2, W + 2, Cin), jnp.float32)],
        ),
        compiler_params=pltpu.CompilerParams(
            dimension_semantics=("parallel",),   # batch split across TCs (v7x)
            vmem_limit_bytes=_VMEM_LIMIT),
    )(*inputs)


# ----------------------------------------------------------------------------
# Small lane-packed reduction kernel: per-item (sum, sum_sq) over (H, W) for
# the bn1 batch statistics (single fused pass over the input).
# ----------------------------------------------------------------------------
def _make_stats_kernel(H, W, C):
    def kernel(x_ref, o_ref):
        xf = x_ref[0].astype(jnp.float32).reshape(H * W, C)
        s = jnp.sum(xf, axis=0, keepdims=True)            # (1, C)
        sq = jnp.sum(xf * xf, axis=0, keepdims=True)      # (1, C)
        o_ref[0] = jnp.concatenate([s, sq], axis=-1)       # (1, 2*C)
    return kernel


def per_channel_sums(x):
    """Per-batch-item lane-packed (sum, sum_sq) over (H, W): (N, 1, 2*C)."""
    N, H, W, C = x.shape
    return pl.pallas_call(
        _make_stats_kernel(H, W, C),
        out_shape=jax.ShapeDtypeStruct((N, 1, 2 * C), jnp.float32),
        grid_spec=pltpu.PrefetchScalarGridSpec(
            num_scalar_prefetch=0,
            grid=(N,),
            in_specs=[pl.BlockSpec((1, H, W, C), lambda n: (n, 0, 0, 0))],
            out_specs=pl.BlockSpec((1, 1, 2 * C), lambda n: (n, 0, 0)),
        ),
        compiler_params=pltpu.CompilerParams(
            dimension_semantics=("parallel",),
            vmem_limit_bytes=_VMEM_LIMIT),
    )(x)


# ----------------------------------------------------------------------------
# Block forward (train-mode BatchNorm batch statistics, as a freshly
# constructed PyTorch module in .train() mode).
# ----------------------------------------------------------------------------
def nhlbi_resunet_basic_block_forward(params, x_nchw, eps=1e-5):
    x = jnp.transpose(x_nchw, (0, 2, 3, 1)).astype(jnp.float32)   # NCHW->NHWC
    N, H, W, inplanes = x.shape
    planes = params["w1"].shape[2]
    count = N * H * W

    def bn_fold(sums, channels, gamma, beta):
        mean = sums[0, :channels] / count
        ex2 = sums[0, channels:] / count
        var = jnp.maximum(ex2 - jnp.square(mean), 0.0)   # biased, torch train
        scale = gamma / jnp.sqrt(var + eps)
        return scale, beta - mean * scale

    # bn1 statistics: one fused Pallas pass over x (no separate mean/var passes).
    sums1 = jnp.sum(per_channel_sums(x), axis=0)                   # (1, 2*Cin)
    scale1, shift1 = bn_fold(sums1, inplanes, params["gamma1"], params["beta1"])

    # Conv weights as tap-major (9*Cin, Cout), cast once to bf16 MXU operands.
    w1 = params["w1"].reshape(9 * inplanes, planes).astype(_MXU_DTYPE)
    w2 = params["w2"].reshape(9 * planes, planes).astype(_MXU_DTYPE)

    # Stage 1: bn1 -> relu -> conv1 (+ fused sum/sum_sq epilogue for bn2).
    # The intermediate y1 is stored bf16 to halve stage-2 input DMA.
    y1, stats2 = bn_relu_conv3x3(x, scale1, shift1, w1, emit_stats=True,
                                 out_dtype=jnp.bfloat16)

    sums2 = jnp.sum(stats2, axis=0)                                # (1, 2*Cout)
    scale2, shift2 = bn_fold(sums2, planes, params["gamma2"], params["beta2"])

    # Stage 2: bn2 -> relu -> conv2, with the residual add fused in.
    residual = x if inplanes == planes else None
    out = bn_relu_conv3x3(y1, scale2, shift2, w2, residual=residual,
                          out_dtype=jnp.float32)

    # TODO(synk): nn.Dropout2d (use_dropout=True) and stride != 1 convolutions
    # are not implemented (module defaults: use_dropout=False, stride=1).
    return jnp.transpose(out, (0, 3, 1, 2))                        # NHWC->NCHW


# ----------------------------------------------------------------------------
# Synthetic parameter init (mirrors torch: BN gamma=1/beta=0, Kaiming fan_out).
# ----------------------------------------------------------------------------
def init_basic_block_params(key, inplanes, planes):
    k1, k2 = jax.random.split(key)
    std = math.sqrt(2.0 / (9 * planes))   # kaiming_normal_, mode='fan_out'
    return dict(
        gamma1=jnp.ones((inplanes,), jnp.float32),
        beta1=jnp.zeros((inplanes,), jnp.float32),
        w1=std * jax.random.normal(k1, (9, inplanes, planes), jnp.float32),
        gamma2=jnp.ones((planes,), jnp.float32),
        beta2=jnp.zeros((planes,), jnp.float32),
        w2=std * jax.random.normal(k2, (9, planes, planes), jnp.float32),
    )


# ----------------------------------------------------------------------------
# Pure-JAX reference (XLA conv, full f32 precision) for correctness checking.
# ----------------------------------------------------------------------------
def _reference_forward(params, x_nchw, eps=1e-5):
    x = x_nchw.astype(jnp.float32)

    def bn_relu(z, gamma, beta):
        mean = jnp.mean(z, axis=(0, 2, 3), keepdims=True)
        var = jnp.mean(jnp.square(z - mean), axis=(0, 2, 3), keepdims=True)
        zh = (z - mean) / jnp.sqrt(var + eps)
        return jax.nn.relu(zh * gamma.reshape(1, -1, 1, 1)
                           + beta.reshape(1, -1, 1, 1))

    def conv(z, w9):   # (9, Cin, Cout) -> torch OIHW (Cout, Cin, 3, 3)
        cin, cout = w9.shape[1], w9.shape[2]
        w = jnp.transpose(w9.reshape(3, 3, cin, cout), (3, 2, 0, 1))
        return lax.conv_general_dilated(
            z, w, (1, 1), ((1, 1), (1, 1)),
            dimension_numbers=("NCHW", "OIHW", "NCHW"),
            precision=lax.Precision.HIGHEST)

    out = conv(bn_relu(x, params["gamma1"], params["beta1"]), params["w1"])
    out = conv(bn_relu(out, params["gamma2"], params["beta2"]), params["w2"])
    if x.shape[1] == out.shape[1]:
        out = out + x
    return out


# ----------------------------------------------------------------------------
if __name__ == "__main__":
    key = jax.random.PRNGKey(0)
    kp1, kp2, kd1, kd2 = jax.random.split(key, 4)
    fwd = jax.jit(nhlbi_resunet_basic_block_forward)

    # bf16 MXU operands + bf16 stage-1 intermediate -> ~1e-2-scale rounding
    # relative to the f32 reference; tolerances sized accordingly.
    MAX_TOL, MEAN_TOL = 6e-2, 1e-2

    # Config A: inplanes == planes -> fused residual-add path exercised.
    N, H, W = 2, 16, 16
    inplanes, planes = 8, 8
    params_a = init_basic_block_params(kp1, inplanes, planes)
    x_a = jax.random.normal(kd1, (N, inplanes, H, W), jnp.float32)
    out_a = jax.block_until_ready(fwd(params_a, x_a))
    assert out_a.shape == (N, planes, H, W) and out_a.dtype == jnp.float32
    ref_a = _reference_forward(params_a, x_a)
    diff_a = jnp.abs(out_a - ref_a)
    assert float(jnp.max(diff_a)) < MAX_TOL, f"config A max err {float(jnp.max(diff_a))}"
    assert float(jnp.mean(diff_a)) < MEAN_TOL, f"config A mean err {float(jnp.mean(diff_a))}"

    # Config B: inplanes != planes -> no residual add.
    inplanes, planes = 4, 16
    params_b = init_basic_block_params(kp2, inplanes, planes)
    x_b = jax.random.normal(kd2, (N, inplanes, H, W), jnp.float32)
    out_b = jax.block_until_ready(fwd(params_b, x_b))
    assert out_b.shape == (N, planes, H, W) and out_b.dtype == jnp.float32
    ref_b = _reference_forward(params_b, x_b)
    diff_b = jnp.abs(out_b - ref_b)
    assert float(jnp.max(diff_b)) < MAX_TOL, f"config B max err {float(jnp.max(diff_b))}"
    assert float(jnp.mean(diff_b)) < MEAN_TOL, f"config B mean err {float(jnp.mean(diff_b))}"

    print("KERNEL_OK")
</pallas_src>

<mosaic_0001>
module attributes {stable_mosaic.version = 11 : i64} {
  func.func @kernel(%arg0: i32, %arg1: memref<1x16x16x8xf32, #tpu.memory_space<vmem>>, %arg2: memref<1x1x16xf32, #tpu.memory_space<vmem>>) attributes {dimension_semantics = [#tpu.dimension_semantics<parallel>], iteration_bounds = array<i64: 2>, scalar_prefetch = 0 : i64, scratch_operands = 0 : i64, tpu.core_type = #tpu.core_type<tc>, window_params = [{transform_indices = @transform_0, window_bounds = array<i64: 1, 16, 16, 8>}, {transform_indices = @transform_1, window_bounds = array<i64: 1, 1, 16>}]} {
    %c0 = arith.constant 0 : index
    %c0_0 = arith.constant 0 : index
    %c0_1 = arith.constant 0 : index
    %c0_2 = arith.constant 0 : index
    %0 = vector.load %arg1[%c0, %c0_0, %c0_1, %c0_2] : memref<1x16x16x8xf32, #tpu.memory_space<vmem>>, vector<1x16x16x8xf32>
    %1 = vector.shape_cast %0 : vector<1x16x16x8xf32> to vector<16x16x8xf32>
    %2 = vector.shape_cast %1 : vector<16x16x8xf32> to vector<256x8xf32>
    %cst = arith.constant dense<0.000000e+00> : vector<8xf32>
    %3 = vector.multi_reduction <add>, %2, %cst [0] : vector<256x8xf32> to vector<8xf32>
    %4 = vector.shape_cast %3 : vector<8xf32> to vector<1x8xf32>
    %5 = arith.mulf %2, %2 : vector<256x8xf32>
    %cst_3 = arith.constant dense<0.000000e+00> : vector<8xf32>
    %6 = vector.multi_reduction <add>, %5, %cst_3 [0] : vector<256x8xf32> to vector<8xf32>
    %7 = vector.shape_cast %6 : vector<8xf32> to vector<1x8xf32>
    %8 = tpu.concatenate %4, %7 in 1 : vector<1x8xf32>, vector<1x8xf32> -> vector<1x16xf32>
    %c0_4 = arith.constant 0 : index
    %c0_5 = arith.constant 0 : index
    %c0_6 = arith.constant 0 : index
    %9 = vector.load %arg2[%c0_4, %c0_5, %c0_6] : memref<1x1x16xf32, #tpu.memory_space<vmem>>, vector<1x1x16xf32>
    %10 = vector.shape_cast %9 : vector<1x1x16xf32> to vector<1x16xf32>
    %11 = vector.shape_cast %8 : vector<1x16xf32> to vector<1x1x16xf32>
    tpu.vector_store %arg2[%c0_4, %c0_5, %c0_6], %11 {strides = array<i32>} : memref<1x1x16xf32, #tpu.memory_space<vmem>>, vector<1x1x16xf32>,
    return
  }
  func.func @transform_0(%arg0: i32) -> (i32, i32, i32, i32) {
    %c0_i32 = arith.constant 0 : i32
    %c0_i32_0 = arith.constant 0 : i32
    %c0_i32_1 = arith.constant 0 : i32
    %c0_i32_2 = arith.constant 0 : i32
    return %arg0, %c0_i32, %c0_i32_0, %c0_i32_1 : i32, i32, i32, i32
  }
  func.func @transform_1(%arg0: i32) -> (i32, i32, i32) {
    %c0_i32 = arith.constant 0 : i32
    %c0_i32_0 = arith.constant 0 : i32
    %c0_i32_1 = arith.constant 0 : i32
    return %arg0, %c0_i32, %c0_i32_0 : i32, i32, i32
  }
}

module attributes {stable_mosaic.version = 11 : i64} {
  func.func @kernel(%arg0: i32, %arg1: memref<1x16x16x8xf32, #tpu.memory_space<vmem>>, %arg2: memref<1x8xf32, #tpu.memory_space<vmem>>, %arg3: memref<1x8xf32, #tpu.memory_space<vmem>>, %arg4: memref<72x8xbf16, #tpu.memory_space<vmem>>, %arg5: memref<1x16x16x8xbf16, #tpu.memory_space<vmem>>, %arg6: memref<1x1x16xf32, #tpu.memory_space<vmem>>, %arg7: memref<18x18x8xf32, #tpu.memory_space<vmem>>) attributes {dimension_semantics = [#tpu.dimension_semantics<parallel>], iteration_bounds = array<i64: 2>, scalar_prefetch = 0 : i64, scratch_operands = 1 : i64, tpu.core_type = #tpu.core_type<tc>, window_params = [{transform_indices = @transform_0, window_bounds = array<i64: 1, 16, 16, 8>}, {pipeline_mode = #tpu.pipeline_mode<synchronous>, transform_indices = @transform_1, window_bounds = array<i64: 1, 8>}, {pipeline_mode = #tpu.pipeline_mode<synchronous>, transform_indices = @transform_2, window_bounds = array<i64: 1, 8>}, {pipeline_mode = #tpu.pipeline_mode<synchronous>, transform_indices = @transform_3, window_bounds = array<i64: 72, 8>}, {transform_indices = @transform_4, window_bounds = array<i64: 1, 16, 16, 8>}, {transform_indices = @transform_5, window_bounds = array<i64: 1, 1, 16>}]} {
    %c0 = arith.constant 0 : index
    %c0_0 = arith.constant 0 : index
    %c0_1 = arith.constant 0 : index
    %c0_2 = arith.constant 0 : index
    %0 = vector.load %arg1[%c0, %c0_0, %c0_1, %c0_2] : memref<1x16x16x8xf32, #tpu.memory_space<vmem>>, vector<1x16x16x8xf32>
    %1 = vector.shape_cast %0 : vector<1x16x16x8xf32> to vector<16x16x8xf32>
    %c0_3 = arith.constant 0 : index
    %c0_4 = arith.constant 0 : index
    %2 = vector.load %arg2[%c0_3, %c0_4] : memref<1x8xf32, #tpu.memory_space<vmem>>, vector<1x8xf32>
    %3 = vector.shape_cast %2 : vector<1x8xf32> to vector<1x1x8xf32>
    %4 = vector.broadcast %3 : vector<1x1x8xf32> to vector<16x16x8xf32>
    %5 = arith.mulf %1, %4 : vector<16x16x8xf32>
    %c0_5 = arith.constant 0 : index
    %c0_6 = arith.constant 0 : index
    %6 = vector.load %arg3[%c0_5, %c0_6] : memref<1x8xf32, #tpu.memory_space<vmem>>, vector<1x8xf32>
    %7 = vector.shape_cast %6 : vector<1x8xf32> to vector<1x1x8xf32>
    %8 = vector.broadcast %7 : vector<1x1x8xf32> to vector<16x16x8xf32>
    %9 = arith.addf %5, %8 : vector<16x16x8xf32>
    %cst = arith.constant 0.000000e+00 : f32
    %10 = vector.broadcast %cst : f32 to vector<16x16x8xf32>
    %11 = arith.maximumf %9, %10 : vector<16x16x8xf32>
    %cst_7 = arith.constant 0.000000e+00 : f32
    %12 = vector.broadcast %cst_7 : f32 to vector<1x18x8xf32>
    %cst_8 = arith.constant 0.000000e+00 : f32
    %13 = vector.broadcast %cst_8 : f32 to vector<18x1x8xf32>
    %c0_9 = arith.constant 0 : index
    %c0_10 = arith.constant 0 : index
    %c0_11 = arith.constant 0 : index
    %14 = vector.load %arg7[%c0_9, %c0_10, %c0_11] : memref<18x18x8xf32, #tpu.memory_space<vmem>>, vector<1x18x8xf32>
    tpu.vector_store %arg7[%c0_9, %c0_10, %c0_11], %12 {strides = array<i32>} : memref<18x18x8xf32, #tpu.memory_space<vmem>>, vector<1x18x8xf32>,
    %c17 = arith.constant 17 : index
    %c0_12 = arith.constant 0 : index
    %c0_13 = arith.constant 0 : index
    %15 = vector.load %arg7[%c17, %c0_12, %c0_13] : memref<18x18x8xf32, #tpu.memory_space<vmem>>, vector<1x18x8xf32>
    tpu.vector_store %arg7[%c17, %c0_12, %c0_13], %12 {strides = array<i32>} : memref<18x18x8xf32, #tpu.memory_space<vmem>>, vector<1x18x8xf32>,
    %c0_14 = arith.constant 0 : index
    %c0_15 = arith.constant 0 : index
    %c0_16 = arith.constant 0 : index
    %16 = vector.load %arg7[%c0_14, %c0_15, %c0_16] : memref<18x18x8xf32, #tpu.memory_space<vmem>>, vector<18x1x8xf32>
    tpu.vector_store %arg7[%c0_14, %c0_15, %c0_16], %13 {strides = array<i32>} : memref<18x18x8xf32, #tpu.memory_space<vmem>>, vector<18x1x8xf32>,
    %c0_17 = arith.constant 0 : index
    %c17_18 = arith.constant 17 : index
    %c0_19 = arith.constant 0 : index
    %17 = vector.load %arg7[%c0_17, %c17_18, %c0_19] : memref<18x18x8xf32, #tpu.memory_space<vmem>>, vector<18x1x8xf32>
    tpu.vector_store %arg7[%c0_17, %c17_18, %c0_19], %13 {strides = array<i32>} : memref<18x18x8xf32, #tpu.memory_space<vmem>>, vector<18x1x8xf32>,
    %c1 = arith.constant 1 : index
    %c1_20 = arith.constant 1 : index
    %c0_21 = arith.constant 0 : index
    %18 = vector.load %arg7[%c1, %c1_20, %c0_21] : memref<18x18x8xf32, #tpu.memory_space<vmem>>, vector<16x16x8xf32>
    tpu.vector_store %arg7[%c1, %c1_20, %c0_21], %11 {strides = array<i32>} : memref<18x18x8xf32, #tpu.memory_space<vmem>>, vector<16x16x8xf32>,
    %c0_22 = arith.constant 0 : index
    %c0_23 = arith.constant 0 : index
    %c0_24 = arith.constant 0 : index
    %19 = vector.load %arg7[%c0_22, %c0_23, %c0_24] : memref<18x18x8xf32, #tpu.memory_space<vmem>>, vector<18x16x8xf32>
    %c0_25 = arith.constant 0 : index
    %c1_26 = arith.constant 1 : index
    %c0_27 = arith.constant 0 : index
    %20 = vector.load %arg7[%c0_25, %c1_26, %c0_27] : memref<18x18x8xf32, #tpu.memory_space<vmem>>, vector<18x16x8xf32>
    %c0_28 = arith.constant 0 : index
    %c2 = arith.constant 2 : index
    %c0_29 = arith.constant 0 : index
    %21 = vector.load %arg7[%c0_28, %c2, %c0_29] : memref<18x18x8xf32, #tpu.memory_space<vmem>>, vector<18x16x8xf32>
    %22 = vector.extract_strided_slice %19 {offsets = [0, 0, 0], sizes = [16, 16, 8], strides = [1, 1, 1]} : vector<18x16x8xf32> to vector<16x16x8xf32>
    %23 = vector.extract_strided_slice %20 {offsets = [0, 0, 0], sizes = [16, 16, 8], strides = [1, 1, 1]} : vector<18x16x8xf32> to vector<16x16x8xf32>
    %24 = vector.extract_strided_slice %21 {offsets = [0, 0, 0], sizes = [16, 16, 8], strides = [1, 1, 1]} : vector<18x16x8xf32> to vector<16x16x8xf32>
    %25 = vector.extract_strided_slice %19 {offsets = [1, 0, 0], sizes = [16, 16, 8], strides = [1, 1, 1]} : vector<18x16x8xf32> to vector<16x16x8xf32>
    %26 = vector.extract_strided_slice %20 {offsets = [1, 0, 0], sizes = [16, 16, 8], strides = [1, 1, 1]} : vector<18x16x8xf32> to vector<16x16x8xf32>
    %27 = vector.extract_strided_slice %21 {offsets = [1, 0, 0], sizes = [16, 16, 8], strides = [1, 1, 1]} : vector<18x16x8xf32> to vector<16x16x8xf32>
    %28 = vector.extract_strided_slice %19 {offsets = [2, 0, 0], sizes = [16, 16, 8], strides = [1, 1, 1]} : vector<18x16x8xf32> to vector<16x16x8xf32>
    %29 = vector.extract_strided_slice %20 {offsets = [2, 0, 0], sizes = [16, 16, 8], strides = [1, 1, 1]} : vector<18x16x8xf32> to vector<16x16x8xf32>
    %30 = vector.extract_strided_slice %21 {offsets = [2, 0, 0], sizes = [16, 16, 8], strides = [1, 1, 1]} : vector<18x16x8xf32> to vector<16x16x8xf32>
    %31 = tpu.concatenate %22, %23, %24, %25, %26, %27, %28, %29, %30 in 2 : vector<16x16x8xf32>, vector<16x16x8xf32>, vector<16x16x8xf32>, vector<16x16x8xf32>, vector<16x16x8xf32>, vector<16x16x8xf32>, vector<16x16x8xf32>, vector<16x16x8xf32>, vector<16x16x8xf32> -> vector<16x16x72xf32>
    %32 = vector.shape_cast %31 : vector<16x16x72xf32> to vector<256x72xf32>
    %33 = arith.truncf %32 : vector<256x72xf32> to vector<256x72xbf16>
    %c0_30 = arith.constant 0 : index
    %c0_31 = arith.constant 0 : index
    %34 = vector.load %arg4[%c0_30, %c0_31] : memref<72x8xbf16, #tpu.memory_space<vmem>>, vector<72x8xbf16>
    %cst_32 = arith.constant dense<0.000000e+00> : vector<256x8xf32>
    %35 = tpu.matmul %33, %34, %cst_32 {dimension_numbers = #tpu.dot_dimension_numbers<[1], [0], [0], [1], [0, 0, 1, 1], [], []>} : vector<256x72xbf16>, vector<72x8xbf16>, vector<256x8xf32> -> vector<256x8xf32>
    %cst_33 = arith.constant dense<0.000000e+00> : vector<8xf32>
    %36 = vector.multi_reduction <add>, %35, %cst_33 [0] : vector<256x8xf32> to vector<8xf32>
    %37 = vector.shape_cast %36 : vector<8xf32> to vector<1x8xf32>
    %38 = arith.mulf %35, %35 : vector<256x8xf32>
    %cst_34 = arith.constant dense<0.000000e+00> : vector<8xf32>
    %39 = vector.multi_reduction <add>, %38, %cst_34 [0] : vector<256x8xf32> to vector<8xf32>
    %40 = vector.shape_cast %39 : vector<8xf32> to vector<1x8xf32>
    %41 = tpu.concatenate %37, %40 in 1 : vector<1x8xf32>, vector<1x8xf32> -> vector<1x16xf32>
    %c0_35 = arith.constant 0 : index
    %c0_36 = arith.constant 0 : index
    %c0_37 = arith.constant 0 : index
    %42 = vector.load %arg6[%c0_35, %c0_36, %c0_37] : memref<1x1x16xf32, #tpu.memory_space<vmem>>, vector<1x1x16xf32>
    %43 = vector.shape_cast %42 : vector<1x1x16xf32> to vector<1x16xf32>
    %44 = vector.shape_cast %41 : vector<1x16xf32> to vector<1x1x16xf32>
    tpu.vector_store %arg6[%c0_35, %c0_36, %c0_37], %44 {strides = array<i32>} : memref<1x1x16xf32, #tpu.memory_space<vmem>>, vector<1x1x16xf32>,
    %45 = vector.shape_cast %35 : vector<256x8xf32> to vector<16x16x8xf32>
    %46 = arith.truncf %45 : vector<16x16x8xf32> to vector<16x16x8xbf16>
    %c0_38 = arith.constant 0 : index
    %c0_39 = arith.constant 0 : index
    %c0_40 = arith.constant 0 : index
    %c0_41 = arith.constant 0 : index
    %47 = vector.load %arg5[%c0_38, %c0_39, %c0_40, %c0_41] : memref<1x16x16x8xbf16, #tpu.memory_space<vmem>>, vector<1x16x16x8xbf16>
    %48 = vector.shape_cast %47 : vector<1x16x16x8xbf16> to vector<16x16x8xbf16>
    %49 = vector.shape_cast %46 : vector<16x16x8xbf16> to vector<1x16x16x8xbf16>
    tpu.vector_store %arg5[%c0_38, %c0_39, %c0_40, %c0_41], %49 {strides = array<i32>} : memref<1x16x16x8xbf16, #tpu.memory_space<vmem>>, vector<1x16x16x8xbf16>,
    return
  }
  func.func @transform_0(%arg0: i32) -> (i32, i32, i32, i32) {
    %c0_i32 = arith.constant 0 : i32
    %c0_i32_0 = arith.constant 0 : i32
    %c0_i32_1 = arith.constant 0 : i32
    %c0_i32_2 = arith.constant 0 : i32
    return %arg0, %c0_i32, %c0_i32_0, %c0_i32_1 : i32, i32, i32, i32
  }
  func.func @transform_1(%arg0: i32) -> (i32, i32) {
    %c0_i32 = arith.constant 0 : i32
    %c0_i32_0 = arith.constant 0 : i32
    %c0_i32_1 = arith.constant 0 : i32
    return %c0_i32, %c0_i32_0 : i32, i32
  }
  func.func @transform_2(%arg0: i32) -> (i32, i32) {
    %c0_i32 = arith.constant 0 : i32
    %c0_i32_0 = arith.constant 0 : i32
    %c0_i32_1 = arith.constant 0 : i32
    return %c0_i32, %c0_i32_0 : i32, i32
  }
  func.func @transform_3(%arg0: i32) -> (i32, i32) {
    %c0_i32 = arith.constant 0 : i32
    %c0_i32_0 = arith.constant 0 : i32
    %c0_i32_1 = arith.constant 0 : i32
    return %c0_i32, %c0_i32_0 : i32, i32
  }
  func.func @transform_4(%arg0: i32) -> (i32, i32, i32, i32) {
    %c0_i32 = arith.constant 0 : i32
    %c0_i32_0 = arith.constant 0 : i32
    %c0_i32_1 = arith.constant 0 : i32
    %c0_i32_2 = arith.constant 0 : i32
    return %arg0, %c0_i32, %c0_i32_0, %c0_i32_1 : i32, i32, i32, i32
  }
  func.func @transform_5(%arg0: i32) -> (i32, i32, i32) {
    %c0_i32 = arith.constant 0 : i32
    %c0_i32_0 = arith.constant 0 : i32
    %c0_i32_1 = arith.constant 0 : i32
    return %arg0, %c0_i32, %c0_i32_0 : i32, i32, i32
  }
}

module attributes {stable_mosaic.version = 11 : i64} {
  func.func @kernel(%arg0: i32, %arg1: memref<1x16x16x8xbf16, #tpu.memory_space<vmem>>, %arg2: memref<1x8xf32, #tpu.memory_space<vmem>>, %arg3: memref<1x8xf32, #tpu.memory_space<vmem>>, %arg4: memref<72x8xbf16, #tpu.memory_space<vmem>>, %arg5: memref<1x16x16x8xf32, #tpu.memory_space<vmem>>, %arg6: memref<1x16x16x8xf32, #tpu.memory_space<vmem>>, %arg7: memref<18x18x8xf32, #tpu.memory_space<vmem>>) attributes {dimension_semantics = [#tpu.dimension_semantics<parallel>], iteration_bounds = array<i64: 2>, scalar_prefetch = 0 : i64, scratch_operands = 1 : i64, tpu.core_type = #tpu.core_type<tc>, window_params = [{transform_indices = @transform_0, window_bounds = array<i64: 1, 16, 16, 8>}, {pipeline_mode = #tpu.pipeline_mode<synchronous>, transform_indices = @transform_1, window_bounds = array<i64: 1, 8>}, {pipeline_mode = #tpu.pipeline_mode<synchronous>, transform_indices = @transform_2, window_bounds = array<i64: 1, 8>}, {pipeline_mode = #tpu.pipeline_mode<synchronous>, transform_indices = @transform_3, window_bounds = array<i64: 72, 8>}, {transform_indices = @transform_4, window_bounds = array<i64: 1, 16, 16, 8>}, {transform_indices = @transform_5, window_bounds = array<i64: 1, 16, 16, 8>}]} {
    %c0 = arith.constant 0 : index
    %c0_0 = arith.constant 0 : index
    %c0_1 = arith.constant 0 : index
    %c0_2 = arith.constant 0 : index
    %0 = vector.load %arg1[%c0, %c0_0, %c0_1, %c0_2] : memref<1x16x16x8xbf16, #tpu.memory_space<vmem>>, vector<1x16x16x8xbf16>
    %1 = vector.shape_cast %0 : vector<1x16x16x8xbf16> to vector<16x16x8xbf16>
    %2 = arith.extf %1 : vector<16x16x8xbf16> to vector<16x16x8xf32>
    %c0_3 = arith.constant 0 : index
    %c0_4 = arith.constant 0 : index
    %3 = vector.load %arg2[%c0_3, %c0_4] : memref<1x8xf32, #tpu.memory_space<vmem>>, vector<1x8xf32>
    %4 = vector.shape_cast %3 : vector<1x8xf32> to vector<1x1x8xf32>
    %5 = vector.broadcast %4 : vector<1x1x8xf32> to vector<16x16x8xf32>
    %6 = arith.mulf %2, %5 : vector<16x16x8xf32>
    %c0_5 = arith.constant 0 : index
    %c0_6 = arith.constant 0 : index
    %7 = vector.load %arg3[%c0_5, %c0_6] : memref<1x8xf32, #tpu.memory_space<vmem>>, vector<1x8xf32>
    %8 = vector.shape_cast %7 : vector<1x8xf32> to vector<1x1x8xf32>
    %9 = vector.broadcast %8 : vector<1x1x8xf32> to vector<16x16x8xf32>
    %10 = arith.addf %6, %9 : vector<16x16x8xf32>
    %cst = arith.constant 0.000000e+00 : f32
    %11 = vector.broadcast %cst : f32 to vector<16x16x8xf32>
    %12 = arith.maximumf %10, %11 : vector<16x16x8xf32>
    %cst_7 = arith.constant 0.000000e+00 : f32
    %13 = vector.broadcast %cst_7 : f32 to vector<1x18x8xf32>
    %cst_8 = arith.constant 0.000000e+00 : f32
    %14 = vector.broadcast %cst_8 : f32 to vector<18x1x8xf32>
    %c0_9 = arith.constant 0 : index
    %c0_10 = arith.constant 0 : index
    %c0_11 = arith.constant 0 : index
    %15 = vector.load %arg7[%c0_9, %c0_10, %c0_11] : memref<18x18x8xf32, #tpu.memory_space<vmem>>, vector<1x18x8xf32>
    tpu.vector_store %arg7[%c0_9, %c0_10, %c0_11], %13 {strides = array<i32>} : memref<18x18x8xf32, #tpu.memory_space<vmem>>, vector<1x18x8xf32>,
    %c17 = arith.constant 17 : index
    %c0_12 = arith.constant 0 : index
    %c0_13 = arith.constant 0 : index
    %16 = vector.load %arg7[%c17, %c0_12, %c0_13] : memref<18x18x8xf32, #tpu.memory_space<vmem>>, vector<1x18x8xf32>
    tpu.vector_store %arg7[%c17, %c0_12, %c0_13], %13 {strides = array<i32>} : memref<18x18x8xf32, #tpu.memory_space<vmem>>, vector<1x18x8xf32>,
    %c0_14 = arith.constant 0 : index
    %c0_15 = arith.constant 0 : index
    %c0_16 = arith.constant 0 : index
    %17 = vector.load %arg7[%c0_14, %c0_15, %c0_16] : memref<18x18x8xf32, #tpu.memory_space<vmem>>, vector<18x1x8xf32>
    tpu.vector_store %arg7[%c0_14, %c0_15, %c0_16], %14 {strides = array<i32>} : memref<18x18x8xf32, #tpu.memory_space<vmem>>, vector<18x1x8xf32>,
    %c0_17 = arith.constant 0 : index
    %c17_18 = arith.constant 17 : index
    %c0_19 = arith.constant 0 : index
    %18 = vector.load %arg7[%c0_17, %c17_18, %c0_19] : memref<18x18x8xf32, #tpu.memory_space<vmem>>, vector<18x1x8xf32>
    tpu.vector_store %arg7[%c0_17, %c17_18, %c0_19], %14 {strides = array<i32>} : memref<18x18x8xf32, #tpu.memory_space<vmem>>, vector<18x1x8xf32>,
    %c1 = arith.constant 1 : index
    %c1_20 = arith.constant 1 : index
    %c0_21 = arith.constant 0 : index
    %19 = vector.load %arg7[%c1, %c1_20, %c0_21] : memref<18x18x8xf32, #tpu.memory_space<vmem>>, vector<16x16x8xf32>
    tpu.vector_store %arg7[%c1, %c1_20, %c0_21], %12 {strides = array<i32>} : memref<18x18x8xf32, #tpu.memory_space<vmem>>, vector<16x16x8xf32>,
    %c0_22 = arith.constant 0 : index
    %c0_23 = arith.constant 0 : index
    %c0_24 = arith.constant 0 : index
    %20 = vector.load %arg7[%c0_22, %c0_23, %c0_24] : memref<18x18x8xf32, #tpu.memory_space<vmem>>, vector<18x16x8xf32>
    %c0_25 = arith.constant 0 : index
    %c1_26 = arith.constant 1 : index
    %c0_27 = arith.constant 0 : index
    %21 = vector.load %arg7[%c0_25, %c1_26, %c0_27] : memref<18x18x8xf32, #tpu.memory_space<vmem>>, vector<18x16x8xf32>
    %c0_28 = arith.constant 0 : index
    %c2 = arith.constant 2 : index
    %c0_29 = arith.constant 0 : index
    %22 = vector.load %arg7[%c0_28, %c2, %c0_29] : memref<18x18x8xf32, #tpu.memory_space<vmem>>, vector<18x16x8xf32>
    %23 = vector.extract_strided_slice %20 {offsets = [0, 0, 0], sizes = [16, 16, 8], strides = [1, 1, 1]} : vector<18x16x8xf32> to vector<16x16x8xf32>
    %24 = vector.extract_strided_slice %21 {offsets = [0, 0, 0], sizes = [16, 16, 8], strides = [1, 1, 1]} : vector<18x16x8xf32> to vector<16x16x8xf32>
    %25 = vector.extract_strided_slice %22 {offsets = [0, 0, 0], sizes = [16, 16, 8], strides = [1, 1, 1]} : vector<18x16x8xf32> to vector<16x16x8xf32>
    %26 = vector.extract_strided_slice %20 {offsets = [1, 0, 0], sizes = [16, 16, 8], strides = [1, 1, 1]} : vector<18x16x8xf32> to vector<16x16x8xf32>
    %27 = vector.extract_strided_slice %21 {offsets = [1, 0, 0], sizes = [16, 16, 8], strides = [1, 1, 1]} : vector<18x16x8xf32> to vector<16x16x8xf32>
    %28 = vector.extract_strided_slice %22 {offsets = [1, 0, 0], sizes = [16, 16, 8], strides = [1, 1, 1]} : vector<18x16x8xf32> to vector<16x16x8xf32>
    %29 = vector.extract_strided_slice %20 {offsets = [2, 0, 0], sizes = [16, 16, 8], strides = [1, 1, 1]} : vector<18x16x8xf32> to vector<16x16x8xf32>
    %30 = vector.extract_strided_slice %21 {offsets = [2, 0, 0], sizes = [16, 16, 8], strides = [1, 1, 1]} : vector<18x16x8xf32> to vector<16x16x8xf32>
    %31 = vector.extract_strided_slice %22 {offsets = [2, 0, 0], sizes = [16, 16, 8], strides = [1, 1, 1]} : vector<18x16x8xf32> to vector<16x16x8xf32>
    %32 = tpu.concatenate %23, %24, %25, %26, %27, %28, %29, %30, %31 in 2 : vector<16x16x8xf32>, vector<16x16x8xf32>, vector<16x16x8xf32>, vector<16x16x8xf32>, vector<16x16x8xf32>, vector<16x16x8xf32>, vector<16x16x8xf32>, vector<16x16x8xf32>, vector<16x16x8xf32> -> vector<16x16x72xf32>
    %33 = vector.shape_cast %32 : vector<16x16x72xf32> to vector<256x72xf32>
    %34 = arith.truncf %33 : vector<256x72xf32> to vector<256x72xbf16>
    %c0_30 = arith.constant 0 : index
    %c0_31 = arith.constant 0 : index
    %35 = vector.load %arg4[%c0_30, %c0_31] : memref<72x8xbf16, #tpu.memory_space<vmem>>, vector<72x8xbf16>
    %cst_32 = arith.constant dense<0.000000e+00> : vector<256x8xf32>
    %36 = tpu.matmul %34, %35, %cst_32 {dimension_numbers = #tpu.dot_dimension_numbers<[1], [0], [0], [1], [0, 0, 1, 1], [], []>} : vector<256x72xbf16>, vector<72x8xbf16>, vector<256x8xf32> -> vector<256x8xf32>
    %37 = vector.shape_cast %36 : vector<256x8xf32> to vector<16x16x8xf32>
    %c0_33 = arith.constant 0 : index
    %c0_34 = arith.constant 0 : index
    %c0_35 = arith.constant 0 : index
    %c0_36 = arith.constant 0 : index
    %38 = vector.load %arg5[%c0_33, %c0_34, %c0_35, %c0_36] : memref<1x16x16x8xf32, #tpu.memory_space<vmem>>, vector<1x16x16x8xf32>
    %39 = vector.shape_cast %38 : vector<1x16x16x8xf32> to vector<16x16x8xf32>
    %40 = arith.addf %37, %39 : vector<16x16x8xf32>
    %c0_37 = arith.constant 0 : index
    %c0_38 = arith.constant 0 : index
    %c0_39 = arith.constant 0 : index
    %c0_40 = arith.constant 0 : index
    %41 = vector.load %arg6[%c0_37, %c0_38, %c0_39, %c0_40] : memref<1x16x16x8xf32, #tpu.memory_space<vmem>>, vector<1x16x16x8xf32>
    %42 = vector.shape_cast %41 : vector<1x16x16x8xf32> to vector<16x16x8xf32>
    %43 = vector.shape_cast %40 : vector<16x16x8xf32> to vector<1x16x16x8xf32>
    tpu.vector_store %arg6[%c0_37, %c0_38, %c0_39, %c0_40], %43 {strides = array<i32>} : memref<1x16x16x8xf32, #tpu.memory_space<vmem>>, vector<1x16x16x8xf32>,
    return
  }
  func.func @transform_0(%arg0: i32) -> (i32, i32, i32, i32) {
    %c0_i32 = arith.constant 0 : i32
    %c0_i32_0 = arith.constant 0 : i32
    %c0_i32_1 = arith.constant 0 : i32
    %c0_i32_2 = arith.constant 0 : i32
    return %arg0, %c0_i32, %c0_i32_0, %c0_i32_1 : i32, i32, i32, i32
  }
  func.func @transform_1(%arg0: i32) -> (i32, i32) {
    %c0_i32 = arith.constant 0 : i32
    %c0_i32_0 = arith.constant 0 : i32
    %c0_i32_1 = arith.constant 0 : i32
    return %c0_i32, %c0_i32_0 : i32, i32
  }
  func.func @transform_2(%arg0: i32) -> (i32, i32) {
    %c0_i32 = arith.constant 0 : i32
    %c0_i32_0 = arith.constant 0 : i32
    %c0_i32_1 = arith.constant 0 : i32
    return %c0_i32, %c0_i32_0 : i32, i32
  }
  func.func @transform_3(%arg0: i32) -> (i32, i32) {
    %c0_i32 = arith.constant 0 : i32
    %c0_i32_0 = arith.constant 0 : i32
    %c0_i32_1 = arith.constant 0 : i32
    return %c0_i32, %c0_i32_0 : i32, i32
  }
  func.func @transform_4(%arg0: i32) -> (i32, i32, i32, i32) {
    %c0_i32 = arith.constant 0 : i32
    %c0_i32_0 = arith.constant 0 : i32
    %c0_i32_1 = arith.constant 0 : i32
    %c0_i32_2 = arith.constant 0 : i32
    return %arg0, %c0_i32, %c0_i32_0, %c0_i32_1 : i32, i32, i32, i32
  }
  func.func @transform_5(%arg0: i32) -> (i32, i32, i32, i32) {
    %c0_i32 = arith.constant 0 : i32
    %c0_i32_0 = arith.constant 0 : i32
    %c0_i32_1 = arith.constant 0 : i32
    %c0_i32_2 = arith.constant 0 : i32
    return %arg0, %c0_i32, %c0_i32_0, %c0_i32_1 : i32, i32, i32, i32
  }
}

</mosaic_0001>

<llo_original>
// kernel: nhlbi_resunet_basic_block_forward.3
$region0: #{nhlbi_resunet_basic_block_forward.3}
  #allocation0 [shape = 'u32[]', space=smem, size = 0x4, offset = 0x4, fixed_abs, tag = 'smem constant byte address 0x4 - core index']
  #allocation1 [shape = 'u32[72,128]{1,0:T(1,128)}', space=vmem, size = 0x9000, scoped, tag = 'internal scratch']
  %s0 = inlined_call_operand.vmem [shape: f32[2,16,16,8], index: 0, kind: input, shape index: {}]
  %s1 = inlined_call_operand.vmem [shape: f32[2,1,16], index: 1, kind: output, shape index: {}]
  %s2 = sld [smem:[#allocation0]]
  $region37: #{nhlbi_resunet_basic_block_forward.3} parent=0
    _
  %s4 = ssub.s32 1, %s2
  %s5 = scalar_select 0, %s4, %s2
  loop: start=0, step=1, limit=4
  $region2: #{nhlbi_resunet_basic_block_forward.3} parent=0 // loop_pre_header
    _
  $region3: #{nhlbi_resunet_basic_block_forward.3} parent=0 // loop_header
    %s7 = sphi 0, %s11
    %p8 = scmp.ge.s32.totalorder %s7, 4
    %s17 = sphi 0, %s19
    %s20 = sphi 0, %s17
    %s21 = sphi 0, %s20
    %s37 = sphi 0, %s21
    %s43 = sphi 0, %s45
    %s46 = sphi 0, %s43
    %s47 = sphi 0, %s46
    %s63 = sphi 0, %s47
  $region4: #{nhlbi_resunet_basic_block_forward.3} parent=0 // loop_header_branch
    %10 = sbr.rel (%p8) target = $region8
  $region5: #{nhlbi_resunet_basic_block_forward.3} parent=0 // loop_body
    %s12 = ssub.s32 %s7, 1
    %s13 = ssub.s32 %s7, 2
    %s14 = sadd.s32 %s7, 1
    %s15 = ssub.s32 %s7, %s14
    %p16 = scmp.eq.s32.totalorder %s15, 0
    %s18 = sadd.s32 %s17, 1
    %s19 = scalar_select %p16, %s17, %s18
    %p22 = pneg %p16
    %p23 = scmp.eq.s32.totalorder %s7, 1
    %p24 = por %p22, %p23
    %p25 = scmp.ne.s32.totalorder %s17, %s20
    %p26 = scmp.eq.s32.totalorder %s7, 0
    %p27 = por %p25, %p26
    %p28 = scmp.ne.s32.totalorder %s17, %s20
    %p29 = scmp.eq.s32.totalorder %s12, 1
    %p30 = por %p28, %p29
    %p31 = scmp.ne.s32.totalorder %s20, %s21
    %p32 = scmp.eq.s32.totalorder %s12, 0
    %p33 = por %p31, %p32
    %p34 = scmp.ne.s32.totalorder %s20, %s21
    %p35 = scmp.eq.s32.totalorder %s13, 1
    %p36 = por %p34, %p35
    %p38 = scmp.ne.s32.totalorder %s21, %s37
    %p39 = scmp.eq.s32.totalorder %s13, 0
    %p40 = por %p38, %p39
    %s41 = ssub.s32 %s7, %s14
    %p42 = scmp.eq.s32.totalorder %s41, 0
    %s44 = sadd.s32 %s43, 1
    %s45 = scalar_select %p42, %s43, %s44
    %p48 = pneg %p42
    %p49 = scmp.eq.s32.totalorder %s7, 1
    %p50 = por %p48, %p49
    %p51 = scmp.ne.s32.totalorder %s43, %s46
    %p52 = scmp.eq.s32.totalorder %s7, 0
    %p53 = por %p51, %p52
    %p54 = scmp.ne.s32.totalorder %s43, %s46
    %p55 = scmp.eq.s32.totalorder %s12, 1
    %p56 = por %p54, %p55
    %p57 = scmp.ne.s32.totalorder %s46, %s47
    %p58 = scmp.eq.s32.totalorder %s12, 0
    %p59 = por %p57, %p58
    %p60 = scmp.ne.s32.totalorder %s46, %s47
    %p61 = scmp.eq.s32.totalorder %s13, 1
    %p62 = por %p60, %p61
    %p64 = scmp.ne.s32.totalorder %s47, %s63
    %p65 = scmp.eq.s32.totalorder %s13, 0
    %p66 = por %p64, %p65
    %p67 = scmp.le.s32.totalorder 1, %s7
    %p68 = scmp.lt.s32.totalorder %s7, 3
    %p69 = pnand %p67, %p68
    %p70 = pneg %p69
    // Predicated region
    $region9: #{nhlbi_resunet_basic_block_forward.3} parent=5 // pred_check
      _
    $region10: #{nhlbi_resunet_basic_block_forward.3} parent=5 // pred_check_branch
      %72 = sbr.rel (%p69) target = $region12
    $region11: #{nhlbi_resunet_basic_block_forward.3} parent=5 // pred_region
      %s73 = ssub.s32 %s7, 1
    $region12: #{nhlbi_resunet_basic_block_forward.3} parent=5 // pred_fallthru
      _
    %p74 = scmp.lt.s32.totalorder %s7, 2
    // Predicated region
    $region13: #{nhlbi_resunet_basic_block_forward.3} parent=5 // pred_check
      %p75 = pneg %p74
    $region14: #{nhlbi_resunet_basic_block_forward.3} parent=5 // pred_check_branch
      %77 = sbr.rel (%p75) target = $region16
    $region15: #{nhlbi_resunet_basic_block_forward.3} parent=5 // pred_region
      // Predicated region
      $region17: #{nhlbi_resunet_basic_block_forward.3} parent=15 // pred_check
        %p78 = pneg %p27
      $region18: #{nhlbi_resunet_basic_block_forward.3} parent=15 // pred_check_branch
        %80 = sbr.rel (%p78) target = $region20
      $region19: #{nhlbi_resunet_basic_block_forward.3} parent=15 // pred_region
        %p81 = scmp.lt.s32.totalorder %s7, 1
        %s82 = scalar_select %p81, %s7, 1
        %s83 = smul.addr %s82, 32
        %s84 = smul.addr %s83, 8
        %s85 = scalar_lea.vmem %s0, %s84
      $region20: #{nhlbi_resunet_basic_block_forward.3} parent=15 // pred_fallthru
        _
    $region16: #{nhlbi_resunet_basic_block_forward.3} parent=5 // pred_fallthru
      _
    %p86 = scmp.le.s32.totalorder 1, %s7
    %p87 = scmp.lt.s32.totalorder %s7, 3
    %p88 = pnand %p86, %p87
    %p89 = pneg %p88
    // Predicated region
    $region21: #{nhlbi_resunet_basic_block_forward.3} parent=5 // pred_check
      _
    $region22: #{nhlbi_resunet_basic_block_forward.3} parent=5 // pred_check_branch
      %91 = sbr.rel (%p88) target = $region24
    $region23: #{nhlbi_resunet_basic_block_forward.3} parent=5 // pred_region
      %s92 = ssub.s32 %s7, 1
      %p93 = scmp.lt.s32.totalorder %s12, 1
      %s94 = scalar_select %p93, %s12, 1
      %s95 = smul.addr %s94, 32
      %s96 = smul.addr %s95, 8
      %s97 = scalar_lea.vmem %s0, %s96
      %p98 = pneg %p33
      %p99 = pneg %p30
      %p100 = pneg %p59
      %p101 = pneg %p56
      %p102 = scmp.lt.s32.totalorder %s12, 1
      %s103 = scalar_select %p102, %s12, 1
      %s104 = scalar_lea.vmem %s1, %s103
      %p105 = scmp.lt.s32.totalorder %s12, 1
      %s106 = scalar_select %p105, %s12, 1
      %s107 = smul.addr %s106, 32
      %s108 = smul.addr %s107, 8
      %s109 = scalar_lea.vmem %s0, %s108
      %p110 = scmp.lt.s32.totalorder %s12, 1
      %s111 = scalar_select %p110, %s12, 1
      %s112 = scalar_lea.vmem %s1, %s111
      %v113 = vld [vmem:[%s109] sm:$0xff]
      %v114 = vld [vmem:[%s109 + $0x8] sm:$0xff]
      %v115 = vld [vmem:[%s109 + $0x10] sm:$0xff]
      %v116 = vld [vmem:[%s109 + $0x18] sm:$0xff]
      %v117 = vld [vmem:[%s109 + $0x20] sm:$0xff]
      %v118 = vld [vmem:[%s109 + $0x28] sm:$0xff]
      %v119 = vld [vmem:[%s109 + $0x30] sm:$0xff]
      %v120 = vld [vmem:[%s109 + $0x38] sm:$0xff]
      %v121 = vld [vmem:[%s109 + $0x40] sm:$0xff]
      %v122 = vld [vmem:[%s109 + $0x48] sm:$0xff]
      %v123 = vld [vmem:[%s109 + $0x50] sm:$0xff]
      %v124 = vld [vmem:[%s109 + $0x58] sm:$0xff]
      %v125 = vld [vmem:[%s109 + $0x60] sm:$0xff]
      %v126 = vld [vmem:[%s109 + $0x68] sm:$0xff]
      %v127 = vld [vmem:[%s109 + $0x70] sm:$0xff]
      %v128 = vld [vmem:[%s109 + $0x78] sm:$0xff]
      %v129 = vld [vmem:[%s109 + $0x80] sm:$0xff]
      %v130 = vld [vmem:[%s109 + $0x88] sm:$0xff]
      %v131 = vld [vmem:[%s109 + $0x90] sm:$0xff]
      %v132 = vld [vmem:[%s109 + $0x98] sm:$0xff]
      %v133 = vld [vmem:[%s109 + $0xa0] sm:$0xff]
      %v134 = vld [vmem:[%s109 + $0xa8] sm:$0xff]
      %v135 = vld [vmem:[%s109 + $0xb0] sm:$0xff]
      %v136 = vld [vmem:[%s109 + $0xb8] sm:$0xff]
      %v137 = vld [vmem:[%s109 + $0xc0] sm:$0xff]
      %v138 = vld [vmem:[%s109 + $0xc8] sm:$0xff]
      %v139 = vld [vmem:[%s109 + $0xd0] sm:$0xff]
      %v140 = vld [vmem:[%s109 + $0xd8] sm:$0xff]
      %v141 = vld [vmem:[%s109 + $0xe0] sm:$0xff]
      %v142 = vld [vmem:[%s109 + $0xe8] sm:$0xff]
      %v143 = vld [vmem:[%s109 + $0xf0] sm:$0xff]
      %v144 = vld [vmem:[%s109 + $0xf8] sm:$0xff]
      %vm145 = vcmask 64512
      %v146 = vsel %vm145, %v113, 0.0
      %v147 = vsel %vm145, %v114, 0.0
      %v148 = vadd.f32 %v146, %v147
      %v149 = vsel %vm145, %v115, 0.0
      %v150 = vadd.f32 %v148, %v149
      %v151 = vsel %vm145, %v116, 0.0
      %v152 = vadd.f32 %v150, %v151
      %v153 = vsel %vm145, %v117, 0.0
      %v154 = vadd.f32 %v152, %v153
      %v155 = vsel %vm145, %v118, 0.0
      %v156 = vadd.f32 %v154, %v155
      %v157 = vsel %vm145, %v119, 0.0
      %v158 = vadd.f32 %v156, %v157
      %v159 = vsel %vm145, %v120, 0.0
      %v160 = vadd.f32 %v158, %v159
      %v161 = vsel %vm145, %v121, 0.0
      %v162 = vadd.f32 %v160, %v161
      %v163 = vsel %vm145, %v122, 0.0
      %v164 = vadd.f32 %v162, %v163
      %v165 = vsel %vm145, %v123, 0.0
      %v166 = vadd.f32 %v164, %v165
      %v167 = vsel %vm145, %v124, 0.0
      %v168 = vadd.f32 %v166, %v167
      %v169 = vsel %vm145, %v125, 0.0
      %v170 = vadd.f32 %v168, %v169
      %v171 = vsel %vm145, %v126, 0.0
      %v172 = vadd.f32 %v170, %v171
      %v173 = vsel %vm145, %v127, 0.0
      %v174 = vadd.f32 %v172, %v173
      %v175 = vsel %vm145, %v128, 0.0
      %v176 = vadd.f32 %v174, %v175
      %v177 = vsel %vm145, %v129, 0.0
      %v178 = vadd.f32 %v176, %v177
      %v179 = vsel %vm145, %v130, 0.0
      %v180 = vadd.f32 %v178, %v179
      %v181 = vsel %vm145, %v131, 0.0
      %v182 = vadd.f32 %v180, %v181
      %v183 = vsel %vm145, %v132, 0.0
      %v184 = vadd.f32 %v182, %v183
      %v185 = vsel %vm145, %v133, 0.0
      %v186 = vadd.f32 %v184, %v185
      %v187 = vsel %vm145, %v134, 0.0
      %v188 = vadd.f32 %v186, %v187
      %v189 = vsel %vm145, %v135, 0.0
      %v190 = vadd.f32 %v188, %v189
      %v191 = vsel %vm145, %v136, 0.0
      %v192 = vadd.f32 %v190, %v191
      %v193 = vsel %vm145, %v137, 0.0
      %v194 = vadd.f32 %v192, %v193
      %v195 = vsel %vm145, %v138, 0.0
      %v196 = vadd.f32 %v194, %v195
      %v197 = vsel %vm145, %v139, 0.0
      %v198 = vadd.f32 %v196, %v197
      %v199 = vsel %vm145, %v140, 0.0
      %v200 = vadd.f32 %v198, %v199
      %v201 = vsel %vm145, %v141, 0.0
      %v202 = vadd.f32 %v200, %v201
      %v203 = vsel %vm145, %v142, 0.0
      %v204 = vadd.f32 %v202, %v203
      %v205 = vsel %vm145, %v143, 0.0
      %v206 = vadd.f32 %v204, %v205
      %v207 = vsel %vm145, %v144, 0.0
      %v208 = vadd.f32 %v206, %v207
      %v209 = vrot.slane %v208, 4
      %v210 = vadd.f32 %v208, %v209
      %v211 = vrot.slane %v210, 2
      %v212 = vadd.f32 %v210, %v211
      %v213 = vrot.slane %v212, 1
      %v214 = vadd.f32 %v212, %v213
      %v215 = vmul.f32 %v113, %v113
      %v216 = vmul.f32 %v114, %v114
      %v217 = vmul.f32 %v115, %v115
      %v218 = vmul.f32 %v116, %v116
      %v219 = vmul.f32 %v117, %v117
      %v220 = vmul.f32 %v118, %v118
      %v221 = vmul.f32 %v119, %v119
      %v222 = vmul.f32 %v120, %v120
      %v223 = vmul.f32 %v121, %v121
      %v224 = vmul.f32 %v122, %v122
      %v225 = vmul.f32 %v123, %v123
      %v226 = vmul.f32 %v124, %v124
      %v227 = vmul.f32 %v125, %v125
      %v228 = vmul.f32 %v126, %v126
      %v229 = vmul.f32 %v127, %v127
      %v230 = vmul.f32 %v128, %v128
      %v231 = vmul.f32 %v129, %v129
      %v232 = vmul.f32 %v130, %v130
      %v233 = vmul.f32 %v131, %v131
      %v234 = vmul.f32 %v132, %v132
      %v235 = vmul.f32 %v133, %v133
      %v236 = vmul.f32 %v134, %v134
      %v237 = vmul.f32 %v135, %v135
      %v238 = vmul.f32 %v136, %v136
      %v239 = vmul.f32 %v137, %v137
      %v240 = vmul.f32 %v138, %v138
      %v241 = vmul.f32 %v139, %v139
      %v242 = vmul.f32 %v140, %v140
      %v243 = vmul.f32 %v141, %v141
      %v244 = vmul.f32 %v142, %v142
      %v245 = vmul.f32 %v143, %v143
      %v246 = vmul.f32 %v144, %v144
      %v247 = vsel %vm145, %v215, 0.0
      %v248 = vsel %vm145, %v216, 0.0
      %v249 = vadd.f32 %v247, %v248
      %v250 = vsel %vm145, %v217, 0.0
      %v251 = vadd.f32 %v249, %v250
      %v252 = vsel %vm145, %v218, 0.0
      %v253 = vadd.f32 %v251, %v252
      %v254 = vsel %vm145, %v219, 0.0
      %v255 = vadd.f32 %v253, %v254
      %v256 = vsel %vm145, %v220, 0.0
      %v257 = vadd.f32 %v255, %v256
      %v258 = vsel %vm145, %v221, 0.0
      %v259 = vadd.f32 %v257, %v258
      %v260 = vsel %vm145, %v222, 0.0
      %v261 = vadd.f32 %v259, %v260
      %v262 = vsel %vm145, %v223, 0.0
      %v263 = vadd.f32 %v261, %v262
      %v264 = vsel %vm145, %v224, 0.0
      %v265 = vadd.f32 %v263, %v264
      %v266 = vsel %vm145, %v225, 0.0
      %v267 = vadd.f32 %v265, %v266
      %v268 = vsel %vm145, %v226, 0.0
      %v269 = vadd.f32 %v267, %v268
      %v270 = vsel %vm145, %v227, 0.0
      %v271 = vadd.f32 %v269, %v270
      %v272 = vsel %vm145, %v228, 0.0
      %v273 = vadd.f32 %v271, %v272
      %v274 = vsel %vm145, %v229, 0.0
      %v275 = vadd.f32 %v273, %v274
      %v276 = vsel %vm145, %v230, 0.0
      %v277 = vadd.f32 %v275, %v276
      %v278 = vsel %vm145, %v231, 0.0
      %v279 = vadd.f32 %v277, %v278
      %v280 = vsel %vm145, %v232, 0.0
      %v281 = vadd.f32 %v279, %v280
      %v282 = vsel %vm145, %v233, 0.0
      %v283 = vadd.f32 %v281, %v282
      %v284 = vsel %vm145, %v234, 0.0
      %v285 = vadd.f32 %v283, %v284
      %v286 = vsel %vm145, %v235, 0.0
      %v287 = vadd.f32 %v285, %v286
      %v288 = vsel %vm145, %v236, 0.0
      %v289 = vadd.f32 %v287, %v288
      %v290 = vsel %vm145, %v237, 0.0
      %v291 = vadd.f32 %v289, %v290
      %v292 = vsel %vm145, %v238, 0.0
      %v293 = vadd.f32 %v291, %v292
      %v294 = vsel %vm145, %v239, 0.0
      %v295 = vadd.f32 %v293, %v294
      %v296 = vsel %vm145, %v240, 0.0
      %v297 = vadd.f32 %v295, %v296
      %v298 = vsel %vm145, %v241, 0.0
      %v299 = vadd.f32 %v297, %v298
      %v300 = vsel %vm145, %v242, 0.0
      %v301 = vadd.f32 %v299, %v300
      %v302 = vsel %vm145, %v243, 0.0
      %v303 = vadd.f32 %v301, %v302
      %v304 = vsel %vm145, %v244, 0.0
      %v305 = vadd.f32 %v303, %v304
      %v306 = vsel %vm145, %v245, 0.0
      %v307 = vadd.f32 %v305, %v306
      %v308 = vsel %vm145, %v246, 0.0
      %v309 = vadd.f32 %v307, %v308
      %v310 = vrot.slane %v309, 4
      %v311 = vadd.f32 %v309, %v310
      %v312 = vrot.slane %v311, 2
      %v313 = vadd.f32 %v311, %v312
      %v314 = vrot.slane %v313, 1
      %v315 = vadd.f32 %v313, %v314
      %317 = vrot.lane.b32.xlu0 %v315, 8
      %v318 = vpop.permute.xlu0 %317
      %v320 = vsel %vm145, %v214, %v318
      %vm321 = vcmask 122880
      %322 = vst.msk [vmem:[%s112] sm:$0x1] %vm321, %v320
      %p323 = scmp.lt.s32.totalorder %s12, 1
      %s324 = scalar_select %p323, %s12, 1
      %s325 = scalar_lea.vmem %s1, %s324
      // Predicated region
      $region25: #{nhlbi_resunet_basic_block_forward.3} parent=23 // pred_check
        %p326 = pneg %p56
      $region26: #{nhlbi_resunet_basic_block_forward.3} parent=23 // pred_check_branch
        %328 = sbr.rel (%p326) target = $region28
      $region27: #{nhlbi_resunet_basic_block_forward.3} parent=23 // pred_region
        _
      $region28: #{nhlbi_resunet_basic_block_forward.3} parent=23 // pred_fallthru
        _
    $region24: #{nhlbi_resunet_basic_block_forward.3} parent=5 // pred_fallthru
      _
    %p329 = scmp.le.s32.totalorder 2, %s7
    // Predicated region
    $region29: #{nhlbi_resunet_basic_block_forward.3} parent=5 // pred_check
      %p330 = pneg %p329
    $region30: #{nhlbi_resunet_basic_block_forward.3} parent=5 // pred_check_branch
      %332 = sbr.rel (%p330) target = $region32
    $region31: #{nhlbi_resunet_basic_block_forward.3} parent=5 // pred_region
      %s333 = ssub.s32 %s7, 2
      // Predicated region
      $region33: #{nhlbi_resunet_basic_block_forward.3} parent=31 // pred_check
        %p334 = pneg %p62
      $region34: #{nhlbi_resunet_basic_block_forward.3} parent=31 // pred_check_branch
        %336 = sbr.rel (%p334) target = $region36
      $region35: #{nhlbi_resunet_basic_block_forward.3} parent=31 // pred_region
        %p337 = scmp.lt.s32.totalorder %s13, 1
        %s338 = scalar_select %p337, %s13, 1
        %s339 = scalar_lea.vmem %s1, %s338
      $region36: #{nhlbi_resunet_basic_block_forward.3} parent=31 // pred_fallthru
        _
    $region32: #{nhlbi_resunet_basic_block_forward.3} parent=5 // pred_fallthru
      _
  $region6: #{nhlbi_resunet_basic_block_forward.3} parent=0 // loop_footer
    %s11 = sadd.s32 1, %s7
  $region7: #{nhlbi_resunet_basic_block_forward.3} parent=0 // loop_footer_branch
    %6 = sbr.rel target = $region3
  $region8: #{nhlbi_resunet_basic_block_forward.3} parent=0 // loop_exit
    _

// kernel: nhlbi_resunet_basic_block_forward.4
$region0: #{nhlbi_resunet_basic_block_forward.4}
  #allocation0 [shape = 'u32[]', space=smem, size = 0x4, offset = 0x4, fixed_abs, tag = 'smem constant byte address 0x4 - core index']
  #allocation1 [shape = 'u32[72,128]{1,0:T(1,128)}', space=vmem, size = 0x9000, scoped, tag = 'internal scratch']
  #allocation2 [shape = 'f32[18,18,8]{2,1,0:T(8,128)}', space=vmem, size = 0x36000, scoped, tag = 'scratch operand']
  %s0 = inlined_call_operand.vmem [shape: f32[2,16,16,8], index: 0, kind: input, shape index: {}]
  %s1 = inlined_call_operand.vmem [shape: f32[1,8], index: 1, kind: input, shape index: {}]
  %s2 = inlined_call_operand.vmem [shape: f32[1,8], index: 2, kind: input, shape index: {}]
  %s3 = inlined_call_operand.vmem [shape: bf16[72,8], index: 3, kind: input, shape index: {}]
  %s4 = inlined_call_operand.vmem [shape: bf16[2,16,16,8], index: 4, kind: output, shape index: {0}]
  %s5 = inlined_call_operand.vmem [shape: f32[2,1,16], index: 5, kind: output, shape index: {1}]
  %6 = xla_tuple %s4, %s5
  %s7 = sld [smem:[#allocation0]]
  $region57: #{nhlbi_resunet_basic_block_forward.4} parent=0
    _
  %s9 = ssub.s32 1, %s7
  %s10 = scalar_select 0, %s9, %s7
  loop: start=0, step=1, limit=4
  $region2: #{nhlbi_resunet_basic_block_forward.4} parent=0 // loop_pre_header
    _
  $region3: #{nhlbi_resunet_basic_block_forward.4} parent=0 // loop_header
    %s12 = sphi 0, %s16
    %p13 = scmp.ge.s32.totalorder %s12, 4
    %s22 = sphi 0, %s24
    %s25 = sphi 0, %s22
    %s26 = sphi 0, %s25
    %s42 = sphi 0, %s26
    %s46 = sphi 0, %s46
    %s48 = sphi 0, %s46
    %s49 = sphi 0, %s48
    %s63 = sphi 0, %s49
    %s67 = sphi 0, %s67
    %s69 = sphi 0, %s67
    %s70 = sphi 0, %s69
    %s84 = sphi 0, %s70
    %s88 = sphi 0, %s88
    %s90 = sphi 0, %s88
    %s91 = sphi 0, %s90
    %s105 = sphi 0, %s91
    %s111 = sphi 0, %s113
    %s114 = sphi 0, %s111
    %s115 = sphi 0, %s114
    %s131 = sphi 0, %s115
    %s137 = sphi 0, %s139
    %s140 = sphi 0, %s137
    %s141 = sphi 0, %s140
    %s157 = sphi 0, %s141
  $region4: #{nhlbi_resunet_basic_block_forward.4} parent=0 // loop_header_branch
    %15 = sbr.rel (%p13) target = $region8
  $region5: #{nhlbi_resunet_basic_block_forward.4} parent=0 // loop_body
    %s17 = ssub.s32 %s12, 1
    %s18 = ssub.s32 %s12, 2
    %s19 = sadd.s32 %s12, 1
    %s20 = ssub.s32 %s12, %s19
    %p21 = scmp.eq.s32.totalorder %s20, 0
    %s23 = sadd.s32 %s22, 1
    %s24 = scalar_select %p21, %s22, %s23
    %p27 = pneg %p21
    %p28 = scmp.eq.s32.totalorder %s12, 1
    %p29 = por %p27, %p28
    %p30 = scmp.ne.s32.totalorder %s22, %s25
    %p31 = scmp.eq.s32.totalorder %s12, 0
    %p32 = por %p30, %p31
    %p33 = scmp.ne.s32.totalorder %s22, %s25
    %p34 = scmp.eq.s32.totalorder %s17, 1
    %p35 = por %p33, %p34
    %p36 = scmp.ne.s32.totalorder %s25, %s26
    %p37 = scmp.eq.s32.totalorder %s17, 0
    %p38 = por %p36, %p37
    %p39 = scmp.ne.s32.totalorder %s25, %s26
    %p40 = scmp.eq.s32.totalorder %s18, 1
    %p41 = por %p39, %p40
    %p43 = scmp.ne.s32.totalorder %s26, %s42
    %p44 = scmp.eq.s32.totalorder %s18, 0
    %p45 = por %p43, %p44
    %s47 = sadd.s32 %s46, 1
    %p50 = scmp.eq.s32.totalorder %s12, 1
    %p51 = scmp.ne.s32.totalorder %s46, %s48
    %p52 = scmp.eq.s32.totalorder %s12, 0
    %p53 = por %p51, %p52
    %p54 = scmp.ne.s32.totalorder %s46, %s48
    %p55 = scmp.eq.s32.totalorder %s17, 1
    %p56 = por %p54, %p55
    %p57 = scmp.ne.s32.totalorder %s48, %s49
    %p58 = scmp.eq.s32.totalorder %s17, 0
    %p59 = por %p57, %p58
    %p60 = scmp.ne.s32.totalorder %s48, %s49
    %p61 = scmp.eq.s32.totalorder %s18, 1
    %p62 = por %p60, %p61
    %p64 = scmp.ne.s32.totalorder %s49, %s63
    %p65 = scmp.eq.s32.totalorder %s18, 0
    %p66 = por %p64, %p65
    %s68 = sadd.s32 %s67, 1
    %p71 = scmp.eq.s32.totalorder %s12, 1
    %p72 = scmp.ne.s32.totalorder %s67, %s69
    %p73 = scmp.eq.s32.totalorder %s12, 0
    %p74 = por %p72, %p73
    %p75 = scmp.ne.s32.totalorder %s67, %s69
    %p76 = scmp.eq.s32.totalorder %s17, 1
    %p77 = por %p75, %p76
    %p78 = scmp.ne.s32.totalorder %s69, %s70
    %p79 = scmp.eq.s32.totalorder %s17, 0
    %p80 = por %p78, %p79
    %p81 = scmp.ne.s32.totalorder %s69, %s70
    %p82 = scmp.eq.s32.totalorder %s18, 1
    %p83 = por %p81, %p82
    %p85 = scmp.ne.s32.totalorder %s70, %s84
    %p86 = scmp.eq.s32.totalorder %s18, 0
    %p87 = por %p85, %p86
    %s89 = sadd.s32 %s88, 1
    %p92 = scmp.eq.s32.totalorder %s12, 1
    %p93 = scmp.ne.s32.totalorder %s88, %s90
    %p94 = scmp.eq.s32.totalorder %s12, 0
    %p95 = por %p93, %p94
    %p96 = scmp.ne.s32.totalorder %s88, %s90
    %p97 = scmp.eq.s32.totalorder %s17, 1
    %p98 = por %p96, %p97
    %p99 = scmp.ne.s32.totalorder %s90, %s91
    %p100 = scmp.eq.s32.totalorder %s17, 0
    %p101 = por %p99, %p100
    %p102 = scmp.ne.s32.totalorder %s90, %s91
    %p103 = scmp.eq.s32.totalorder %s18, 1
    %p104 = por %p102, %p103
    %p106 = scmp.ne.s32.totalorder %s91, %s105
    %p107 = scmp.eq.s32.totalorder %s18, 0
    %p108 = por %p106, %p107
    %s109 = ssub.s32 %s12, %s19
    %p110 = scmp.eq.s32.totalorder %s109, 0
    %s112 = sadd.s32 %s111, 1
    %s113 = scalar_select %p110, %s111, %s112
    %p116 = pneg %p110
    %p117 = scmp.eq.s32.totalorder %s12, 1
    %p118 = por %p116, %p117
    %p119 = scmp.ne.s32.totalorder %s111, %s114
    %p120 = scmp.eq.s32.totalorder %s12, 0
    %p121 = por %p119, %p120
    %p122 = scmp.ne.s32.totalorder %s111, %s114
    %p123 = scmp.eq.s32.totalorder %s17, 1
    %p124 = por %p122, %p123
    %p125 = scmp.ne.s32.totalorder %s114, %s115
    %p126 = scmp.eq.s32.totalorder %s17, 0
    %p127 = por %p125, %p126
    %p128 = scmp.ne.s32.totalorder %s114, %s115
    %p129 = scmp.eq.s32.totalorder %s18, 1
    %p130 = por %p128, %p129
    %p132 = scmp.ne.s32.totalorder %s115, %s131
    %p133 = scmp.eq.s32.totalorder %s18, 0
    %p134 = por %p132, %p133
    %s135 = ssub.s32 %s12, %s19
    %p136 = scmp.eq.s32.totalorder %s135, 0
    %s138 = sadd.s32 %s137, 1
    %s139 = scalar_select %p136, %s137, %s138
    %p142 = pneg %p136
    %p143 = scmp.eq.s32.totalorder %s12, 1
    %p144 = por %p142, %p143
    %p145 = scmp.ne.s32.totalorder %s137, %s140
    %p146 = scmp.eq.s32.totalorder %s12, 0
    %p147 = por %p145, %p146
    %p148 = scmp.ne.s32.totalorder %s137, %s140
    %p149 = scmp.eq.s32.totalorder %s17, 1
    %p150 = por %p148, %p149
    %p151 = scmp.ne.s32.totalorder %s140, %s141
    %p152 = scmp.eq.s32.totalorder %s17, 0
    %p153 = por %p151, %p152
    %p154 = scmp.ne.s32.totalorder %s140, %s141
    %p155 = scmp.eq.s32.totalorder %s18, 1
    %p156 = por %p154, %p155
    %p158 = scmp.ne.s32.totalorder %s141, %s157
    %p159 = scmp.eq.s32.totalorder %s18, 0
    %p160 = por %p158, %p159
    %p161 = scmp.le.s32.totalorder 1, %s12
    %p162 = scmp.lt.s32.totalorder %s12, 3
    %p163 = pnand %p161, %p162
    %p164 = pneg %p163
    // Predicated region
    $region9: #{nhlbi_resunet_basic_block_forward.4} parent=5 // pred_check
      _
    $region10: #{nhlbi_resunet_basic_block_forward.4} parent=5 // pred_check_branch
      %166 = sbr.rel (%p163) target = $region12
    $region11: #{nhlbi_resunet_basic_block_forward.4} parent=5 // pred_region
      %s167 = ssub.s32 %s12, 1
      // Predicated region
      $region13: #{nhlbi_resunet_basic_block_forward.4} parent=11 // pred_check
        %p168 = pneg %p59
      $region14: #{nhlbi_resunet_basic_block_forward.4} parent=11 // pred_check_branch
        %170 = sbr.rel (%p168) target = $region16
      $region15: #{nhlbi_resunet_basic_block_forward.4} parent=11 // pred_region
        _
      $region16: #{nhlbi_resunet_basic_block_forward.4} parent=11 // pred_fallthru
        _
      // Predicated region
      $region17: #{nhlbi_resunet_basic_block_forward.4} parent=11 // pred_check
        %p171 = pneg %p80
      $region18: #{nhlbi_resunet_basic_block_forward.4} parent=11 // pred_check_branch
        %173 = sbr.rel (%p171) target = $region20
      $region19: #{nhlbi_resunet_basic_block_forward.4} parent=11 // pred_region
        _
      $region20: #{nhlbi_resunet_basic_block_forward.4} parent=11 // pred_fallthru
        _
      // Predicated region
      $region21: #{nhlbi_resunet_basic_block_forward.4} parent=11 // pred_check
        %p174 = pneg %p101
      $region22: #{nhlbi_resunet_basic_block_forward.4} parent=11 // pred_check_branch
        %176 = sbr.rel (%p174) target = $region24
      $region23: #{nhlbi_resunet_basic_block_forward.4} parent=11 // pred_region
        _
      $region24: #{nhlbi_resunet_basic_block_forward.4} parent=11 // pred_fallthru
        _
    $region12: #{nhlbi_resunet_basic_block_forward.4} parent=5 // pred_fallthru
      _
    %p177 = scmp.lt.s32.totalorder %s12, 2
    // Predicated region
    $region25: #{nhlbi_resunet_basic_block_forward.4} parent=5 // pred_check
      %p178 = pneg %p177
    $region26: #{nhlbi_resunet_basic_block_forward.4} parent=5 // pred_check_branch
      %180 = sbr.rel (%p178) target = $region28
    $region27: #{nhlbi_resunet_basic_block_forward.4} parent=5 // pred_region
      // Predicated region
      $region29: #{nhlbi_resunet_basic_block_forward.4} parent=27 // pred_check
        %p181 = pneg %p32
      $region30: #{nhlbi_resunet_basic_block_forward.4} parent=27 // pred_check_branch
        %183 = sbr.rel (%p181) target = $region32
      $region31: #{nhlbi_resunet_basic_block_forward.4} parent=27 // pred_region
        %p184 = scmp.lt.s32.totalorder %s12, 1
        %s185 = scalar_select %p184, %s12, 1
        %s186 = smul.addr %s185, 32
        %s187 = smul.addr %s186, 8
        %s188 = scalar_lea.vmem %s0, %s187
      $region32: #{nhlbi_resunet_basic_block_forward.4} parent=27 // pred_fallthru
        _
    $region28: #{nhlbi_resunet_basic_block_forward.4} parent=5 // pred_fallthru
      _
    %p189 = scmp.le.s32.totalorder 1, %s12
    %p190 = scmp.lt.s32.totalorder %s12, 3
    %p191 = pnand %p189, %p190
    %p192 = pneg %p191
    // Predicated region
    $region33: #{nhlbi_resunet_basic_block_forward.4} parent=5 // pred_check
      _
    $region34: #{nhlbi_resunet_basic_block_forward.4} parent=5 // pred_check_branch
      %194 = sbr.rel (%p191) target = $region36
    $region35: #{nhlbi_resunet_basic_block_forward.4} parent=5 // pred_region
      %s195 = ssub.s32 %s12, 1
      %p196 = scmp.lt.s32.totalorder %s17, 1
      %s197 = scalar_select %p196, %s17, 1
      %s198 = smul.addr %s197, 32
      %s199 = smul.addr %s198, 8
      %s200 = scalar_lea.vmem %s0, %s199
      %p201 = pneg %p38
      %p202 = pneg %p35
      %p203 = pneg %p59
      %p204 = pneg %p56
      %p205 = pneg %p80
      %p206 = pneg %p77
      %p207 = pneg %p101
      %p208 = pneg %p98
      %p209 = pneg %p127
      %p210 = pneg %p124
      %p211 = scmp.lt.s32.totalorder %s17, 1
      %s212 = scalar_select %p211, %s17, 1
      %s213 = smul.addr %s212, 32
      %s214 = smul.addr %s213, 4
      %s215 = scalar_lea.vmem %s4, %s214
      %p216 = pneg %p153
      %p217 = pneg %p150
      %p218 = scmp.lt.s32.totalorder %s17, 1
      %s219 = scalar_select %p218, %s17, 1
      %s220 = scalar_lea.vmem %s5, %s219
      %p221 = scmp.lt.s32.totalorder %s17, 1
      %s222 = scalar_select %p221, %s17, 1
      %s223 = smul.addr %s222, 32
      %s224 = smul.addr %s223, 8
      %s225 = scalar_lea.vmem %s0, %s224
      %p226 = scmp.lt.s32.totalorder %s17, 1
      %s227 = scalar_select %p226, %s17, 1
      %s228 = smul.addr %s227, 32
      %s229 = smul.addr %s228, 4
      %s230 = scalar_lea.vmem %s4, %s229
      %p231 = scmp.lt.s32.totalorder %s17, 1
      %s232 = scalar_select %p231, %s17, 1
      %s233 = scalar_lea.vmem %s5, %s232
      %v235 = vld [vmem:[%s225] sm:$0xff]
      %v236 = vld [vmem:[%s225 + $0x8] sm:$0xff]
      %v237 = vld [vmem:[%s225 + $0x10] sm:$0xff]
      %v238 = vld [vmem:[%s225 + $0x18] sm:$0xff]
      %v239 = vld [vmem:[%s225 + $0x20] sm:$0xff]
      %v240 = vld [vmem:[%s225 + $0x28] sm:$0xff]
      %v241 = vld [vmem:[%s225 + $0x30] sm:$0xff]
      %v242 = vld [vmem:[%s225 + $0x38] sm:$0xff]
      %v243 = vld [vmem:[%s225 + $0x40] sm:$0xff]
      %v244 = vld [vmem:[%s225 + $0x48] sm:$0xff]
      %v245 = vld [vmem:[%s225 + $0x50] sm:$0xff]
      %v246 = vld [vmem:[%s225 + $0x58] sm:$0xff]
      %v247 = vld [vmem:[%s225 + $0x60] sm:$0xff]
      %v248 = vld [vmem:[%s225 + $0x68] sm:$0xff]
      %v249 = vld [vmem:[%s225 + $0x70] sm:$0xff]
      %v250 = vld [vmem:[%s225 + $0x78] sm:$0xff]
      %v251 = vld [vmem:[%s225 + $0x80] sm:$0xff]
      %v252 = vld [vmem:[%s225 + $0x88] sm:$0xff]
      %v253 = vld [vmem:[%s225 + $0x90] sm:$0xff]
      %v254 = vld [vmem:[%s225 + $0x98] sm:$0xff]
      %v255 = vld [vmem:[%s225 + $0xa0] sm:$0xff]
      %v256 = vld [vmem:[%s225 + $0xa8] sm:$0xff]
      %v257 = vld [vmem:[%s225 + $0xb0] sm:$0xff]
      %v258 = vld [vmem:[%s225 + $0xb8] sm:$0xff]
      %v259 = vld [vmem:[%s225 + $0xc0] sm:$0xff]
      %v260 = vld [vmem:[%s225 + $0xc8] sm:$0xff]
      %v261 = vld [vmem:[%s225 + $0xd0] sm:$0xff]
      %v262 = vld [vmem:[%s225 + $0xd8] sm:$0xff]
      %v263 = vld [vmem:[%s225 + $0xe0] sm:$0xff]
      %v264 = vld [vmem:[%s225 + $0xe8] sm:$0xff]
      %v265 = vld [vmem:[%s225 + $0xf0] sm:$0xff]
      %v266 = vld [vmem:[%s225 + $0xf8] sm:$0xff]
      %v267 = vld [vmem:[%s1] sm:$0x1]
      %v269 = vperm.slane %v267, 0
      %v271 = vmul.f32 %v235, %v269
      %v272 = vmul.f32 %v236, %v269
      %v273 = vmul.f32 %v237, %v269
      %v274 = vmul.f32 %v238, %v269
      %v275 = vmul.f32 %v239, %v269
      %v276 = vmul.f32 %v240, %v269
      %v277 = vmul.f32 %v241, %v269
      %v278 = vmul.f32 %v242, %v269
      %v279 = vmul.f32 %v243, %v269
      %v280 = vmul.f32 %v244, %v269
      %v281 = vmul.f32 %v245, %v269
      %v282 = vmul.f32 %v246, %v269
      %v283 = vmul.f32 %v247, %v269
      %v284 = vmul.f32 %v248, %v269
      %v285 = vmul.f32 %v249, %v269
      %v286 = vmul.f32 %v250, %v269
      %v287 = vmul.f32 %v251, %v269
      %v288 = vmul.f32 %v252, %v269
      %v289 = vmul.f32 %v253, %v269
      %v290 = vmul.f32 %v254, %v269
      %v291 = vmul.f32 %v255, %v269
      %v292 = vmul.f32 %v256, %v269
      %v293 = vmul.f32 %v257, %v269
      %v294 = vmul.f32 %v258, %v269
      %v295 = vmul.f32 %v259, %v269
      %v296 = vmul.f32 %v260, %v269
      %v297 = vmul.f32 %v261, %v269
      %v298 = vmul.f32 %v262, %v269
      %v299 = vmul.f32 %v263, %v269
      %v300 = vmul.f32 %v264, %v269
      %v301 = vmul.f32 %v265, %v269
      %v302 = vmul.f32 %v266, %v269
      %v303 = vld [vmem:[%s2] sm:$0x1]
      %v305 = vperm.slane %v303, 0
      %v307 = vadd.f32 %v271, %v305
      %v308 = vadd.f32 %v272, %v305
      %v309 = vadd.f32 %v273, %v305
      %v310 = vadd.f32 %v274, %v305
      %v311 = vadd.f32 %v275, %v305
      %v312 = vadd.f32 %v276, %v305
      %v313 = vadd.f32 %v277, %v305
      %v314 = vadd.f32 %v278, %v305
      %v315 = vadd.f32 %v279, %v305
      %v316 = vadd.f32 %v280, %v305
      %v317 = vadd.f32 %v281, %v305
      %v318 = vadd.f32 %v282, %v305
      %v319 = vadd.f32 %v283, %v305
      %v320 = vadd.f32 %v284, %v305
      %v321 = vadd.f32 %v285, %v305
      %v322 = vadd.f32 %v286, %v305
      %v323 = vadd.f32 %v287, %v305
      %v324 = vadd.f32 %v288, %v305
      %v325 = vadd.f32 %v289, %v305
      %v326 = vadd.f32 %v290, %v305
      %v327 = vadd.f32 %v291, %v305
      %v328 = vadd.f32 %v292, %v305
      %v329 = vadd.f32 %v293, %v305
      %v330 = vadd.f32 %v294, %v305
      %v331 = vadd.f32 %v295, %v305
      %v332 = vadd.f32 %v296, %v305
      %v333 = vadd.f32 %v297, %v305
      %v334 = vadd.f32 %v298, %v305
      %v335 = vadd.f32 %v299, %v305
      %v336 = vadd.f32 %v300, %v305
      %v337 = vadd.f32 %v301, %v305
      %v338 = vadd.f32 %v302, %v305
      %v339 = vmax.f32 %v307, 0.0
      %v340 = vmax.f32 %v308, 0.0
      %v341 = vmax.f32 %v309, 0.0
      %v342 = vmax.f32 %v310, 0.0
      %v343 = vmax.f32 %v311, 0.0
      %v344 = vmax.f32 %v312, 0.0
      %v345 = vmax.f32 %v313, 0.0
      %v346 = vmax.f32 %v314, 0.0
      %v347 = vmax.f32 %v315, 0.0
      %v348 = vmax.f32 %v316, 0.0
      %v349 = vmax.f32 %v317, 0.0
      %v350 = vmax.f32 %v318, 0.0
      %v351 = vmax.f32 %v319, 0.0
      %v352 = vmax.f32 %v320, 0.0
      %v353 = vmax.f32 %v321, 0.0
      %v354 = vmax.f32 %v322, 0.0
      %v355 = vmax.f32 %v323, 0.0
      %v356 = vmax.f32 %v324, 0.0
      %v357 = vmax.f32 %v325, 0.0
      %v358 = vmax.f32 %v326, 0.0
      %v359 = vmax.f32 %v327, 0.0
      %v360 = vmax.f32 %v328, 0.0
      %v361 = vmax.f32 %v329, 0.0
      %v362 = vmax.f32 %v330, 0.0
      %v363 = vmax.f32 %v331, 0.0
      %v364 = vmax.f32 %v332, 0.0
      %v365 = vmax.f32 %v333, 0.0
      %v366 = vmax.f32 %v334, 0.0
      %v367 = vmax.f32 %v335, 0.0
      %v368 = vmax.f32 %v336, 0.0
      %v369 = vmax.f32 %v337, 0.0
      %v370 = vmax.f32 %v338, 0.0
      %vm371 = vcmask 64512
      %372 = vst.msk [vmem:[#allocation2] sm:$0xff] %vm371, 0.0
      %373 = vst.msk [vmem:[#allocation2 + $0x8] sm:$0xff] %vm371, 0.0
      %vm374 = vcmask 58368
      %375 = vst.msk [vmem:[#allocation2 + $0x10] sm:$0x3] %vm374, 0.0
      %s376 = scalar_lea.vmem [#allocation2], 408
      %377 = vst.msk [vmem:[%s376] sm:$0xff] %vm371, 0.0
      %378 = vst.msk [vmem:[%s376 + $0x8] sm:$0xff] %vm371, 0.0
      %379 = vst.msk [vmem:[%s376 + $0x10] sm:$0x3] %vm374, 0.0
      %vm380 = vcmask 57344
      %381 = vst.msk [vmem:[#allocation2] sm:$0x1] %vm380, 0.0
      %382 = vst.msk [vmem:[#allocation2 + $0x18] sm:$0x1] %vm380, 0.0
      %383 = vst.msk [vmem:[#allocation2 + $0x30] sm:$0x1] %vm380, 0.0
      %384 = vst.msk [vmem:[#allocation2 + $0x48] sm:$0x1] %vm380, 0.0
      %385 = vst.msk [vmem:[#allocation2 + $0x60] sm:$0x1] %vm380, 0.0
      %386 = vst.msk [vmem:[#allocation2 + $0x78] sm:$0x1] %vm380, 0.0
      %387 = vst.msk [vmem:[#allocation2 + $0x90] sm:$0x1] %vm380, 0.0
      %388 = vst.msk [vmem:[#allocation2 + $0xa8] sm:$0x1] %vm380, 0.0
      %389 = vst.msk [vmem:[#allocation2 + $0xc0] sm:$0x1] %vm380, 0.0
      %390 = vst.msk [vmem:[#allocation2 + $0xd8] sm:$0x1] %vm380, 0.0
      %391 = vst.msk [vmem:[#allocation2 + $0xf0] sm:$0x1] %vm380, 0.0
      %392 = vst.msk [vmem:[#allocation2 + $0x108] sm:$0x1] %vm380, 0.0
      %393 = vst.msk [vmem:[#allocation2 + $0x120] sm:$0x1] %vm380, 0.0
      %394 = vst.msk [vmem:[#allocation2 + $0x138] sm:$0x1] %vm380, 0.0
      %395 = vst.msk [vmem:[#allocation2 + $0x150] sm:$0x1] %vm380, 0.0
      %396 = vst.msk [vmem:[#allocation2 + $0x168] sm:$0x1] %vm380, 0.0
      %397 = vst.msk [vmem:[#allocation2 + $0x180] sm:$0x1] %vm380, 0.0
      %398 = vst.msk [vmem:[#allocation2 + $0x198] sm:$0x1] %vm380, 0.0
      %399 = vst.msk [vmem:[#allocation2 + $0x11] sm:$0x1] %vm380, 0.0
      %400 = vst.msk [vmem:[#allocation2 + $0x29] sm:$0x1] %vm380, 0.0
      %401 = vst.msk [vmem:[#allocation2 + $0x41] sm:$0x1] %vm380, 0.0
      %402 = vst.msk [vmem:[#allocation2 + $0x59] sm:$0x1] %vm380, 0.0
      %403 = vst.msk [vmem:[#allocation2 + $0x71] sm:$0x1] %vm380, 0.0
      %404 = vst.msk [vmem:[#allocation2 + $0x89] sm:$0x1] %vm380, 0.0
      %405 = vst.msk [vmem:[#allocation2 + $0xa1] sm:$0x1] %vm380, 0.0
      %406 = vst.msk [vmem:[#allocation2 + $0xb9] sm:$0x1] %vm380, 0.0
      %407 = vst.msk [vmem:[#allocation2 + $0xd1] sm:$0x1] %vm380, 0.0
      %408 = vst.msk [vmem:[#allocation2 + $0xe9] sm:$0x1] %vm380, 0.0
      %409 = vst.msk [vmem:[#allocation2 + $0x101] sm:$0x1] %vm380, 0.0
      %410 = vst.msk [vmem:[#allocation2 + $0x119] sm:$0x1] %vm380, 0.0
      %411 = vst.msk [vmem:[#allocation2 + $0x131] sm:$0x1] %vm380, 0.0
      %412 = vst.msk [vmem:[#allocation2 + $0x149] sm:$0x1] %vm380, 0.0
      %413 = vst.msk [vmem:[#allocation2 + $0x161] sm:$0x1] %vm380, 0.0
      %414 = vst.msk [vmem:[#allocation2 + $0x179] sm:$0x1] %vm380, 0.0
      %415 = vst.msk [vmem:[#allocation2 + $0x191] sm:$0x1] %vm380, 0.0
      %416 = vst.msk [vmem:[#allocation2 + $0x1a9] sm:$0x1] %vm380, 0.0
      %s417 = scalar_lea.vmem [#allocation2], 24
      %418 = vst.msk [vmem:[%s417 + $0x1] sm:$0xff] %vm371, %v339
      %419 = vst.msk [vmem:[%s417 + $0x9] sm:$0xff] %vm371, %v340
      %420 = vst.msk [vmem:[%s417 + $0x19] sm:$0xff] %vm371, %v341
      %421 = vst.msk [vmem:[%s417 + $0x21] sm:$0xff] %vm371, %v342
      %422 = vst.msk [vmem:[%s417 + $0x31] sm:$0xff] %vm371, %v343
      %423 = vst.msk [vmem:[%s417 + $0x39] sm:$0xff] %vm371, %v344
      %424 = vst.msk [vmem:[%s417 + $0x49] sm:$0xff] %vm371, %v345
      %425 = vst.msk [vmem:[%s417 + $0x51] sm:$0xff] %vm371, %v346
      %426 = vst.msk [vmem:[%s417 + $0x61] sm:$0xff] %vm371, %v347
      %427 = vst.msk [vmem:[%s417 + $0x69] sm:$0xff] %vm371, %v348
      %428 = vst.msk [vmem:[%s417 + $0x79] sm:$0xff] %vm371, %v349
      %429 = vst.msk [vmem:[%s417 + $0x81] sm:$0xff] %vm371, %v350
      %430 = vst.msk [vmem:[%s417 + $0x91] sm:$0xff] %vm371, %v351
      %431 = vst.msk [vmem:[%s417 + $0x99] sm:$0xff] %vm371, %v352
      %432 = vst.msk [vmem:[%s417 + $0xa9] sm:$0xff] %vm371, %v353
      %433 = vst.msk [vmem:[%s417 + $0xb1] sm:$0xff] %vm371, %v354
      %434 = vst.msk [vmem:[%s417 + $0xc1] sm:$0xff] %vm371, %v355
      %435 = vst.msk [vmem:[%s417 + $0xc9] sm:$0xff] %vm371, %v356
      %436 = vst.msk [vmem:[%s417 + $0xd9] sm:$0xff] %vm371, %v357
      %437 = vst.msk [vmem:[%s417 + $0xe1] sm:$0xff] %vm371, %v358
      %438 = vst.msk [vmem:[%s417 + $0xf1] sm:$0xff] %vm371, %v359
      %439 = vst.msk [vmem:[%s417 + $0xf9] sm:$0xff] %vm371, %v360
      %440 = vst.msk [vmem:[%s417 + $0x109] sm:$0xff] %vm371, %v361
      %441 = vst.msk [vmem:[%s417 + $0x111] sm:$0xff] %vm371, %v362
      %442 = vst.msk [vmem:[%s417 + $0x121] sm:$0xff] %vm371, %v363
      %443 = vst.msk [vmem:[%s417 + $0x129] sm:$0xff] %vm371, %v364
      %444 = vst.msk [vmem:[%s417 + $0x139] sm:$0xff] %vm371, %v365
      %445 = vst.msk [vmem:[%s417 + $0x141] sm:$0xff] %vm371, %v366
      %446 = vst.msk [vmem:[%s417 + $0x151] sm:$0xff] %vm371, %v367
      %447 = vst.msk [vmem:[%s417 + $0x159] sm:$0xff] %vm371, %v368
      %448 = vst.msk [vmem:[%s417 + $0x169] sm:$0xff] %vm371, %v369
      %449 = vst.msk [vmem:[%s417 + $0x171] sm:$0xff] %vm371, %v370
      %v450 = vld [vmem:[#allocation2] sm:$0xff]
      %v451 = vld [vmem:[#allocation2 + $0x8] sm:$0xff]
      %v452 = vld [vmem:[#allocation2 + $0x18] sm:$0xff]
      %v453 = vld [vmem:[#allocation2 + $0x20] sm:$0xff]
      %v454 = vld [vmem:[#allocation2 + $0x30] sm:$0xff]
      %v455 = vld [vmem:[#allocation2 + $0x38] sm:$0xff]
      %v456 = vld [vmem:[#allocation2 + $0x48] sm:$0xff]
      %v457 = vld [vmem:[#allocation2 + $0x50] sm:$0xff]
      %v458 = vld [vmem:[#allocation2 + $0x60] sm:$0xff]
      %v459 = vld [vmem:[#allocation2 + $0x68] sm:$0xff]
      %v460 = vld [vmem:[#allocation2 + $0x78] sm:$0xff]
      %v461 = vld [vmem:[#allocation2 + $0x80] sm:$0xff]
      %v462 = vld [vmem:[#allocation2 + $0x90] sm:$0xff]
      %v463 = vld [vmem:[#allocation2 + $0x98] sm:$0xff]
      %v464 = vld [vmem:[#allocation2 + $0xa8] sm:$0xff]
      %v465 = vld [vmem:[#allocation2 + $0xb0] sm:$0xff]
      %v466 = vld [vmem:[#allocation2 + $0xc0] sm:$0xff]
      %v467 = vld [vmem:[#allocation2 + $0xc8] sm:$0xff]
      %v468 = vld [vmem:[#allocation2 + $0xd8] sm:$0xff]
      %v469 = vld [vmem:[#allocation2 + $0xe0] sm:$0xff]
      %v470 = vld [vmem:[#allocation2 + $0xf0] sm:$0xff]
      %v471 = vld [vmem:[#allocation2 + $0xf8] sm:$0xff]
      %v472 = vld [vmem:[#allocation2 + $0x108] sm:$0xff]
      %v473 = vld [vmem:[#allocation2 + $0x110] sm:$0xff]
      %v474 = vld [vmem:[#allocation2 + $0x120] sm:$0xff]
      %v475 = vld [vmem:[#allocation2 + $0x128] sm:$0xff]
      %v476 = vld [vmem:[#allocation2 + $0x138] sm:$0xff]
      %v477 = vld [vmem:[#allocation2 + $0x140] sm:$0xff]
      %v478 = vld [vmem:[#allocation2 + $0x150] sm:$0xff]
      %v479 = vld [vmem:[#allocation2 + $0x158] sm:$0xff]
      %v480 = vld [vmem:[#allocation2 + $0x168] sm:$0xff]
      %v481 = vld [vmem:[#allocation2 + $0x170] sm:$0xff]
      %v482 = vld [vmem:[#allocation2 + $0x180] sm:$0xff]
      %v483 = vld [vmem:[#allocation2 + $0x188] sm:$0xff]
      %v484 = vld [vmem:[#allocation2 + $0x198] sm:$0xff]
      %v485 = vld [vmem:[#allocation2 + $0x1a0] sm:$0xff]
      %v486 = vld [vmem:[#allocation2 + $0x1] sm:$0xff]
      %v487 = vld [vmem:[#allocation2 + $0x9] sm:$0xff]
      %v488 = vld [vmem:[#allocation2 + $0x19] sm:$0xff]
      %v489 = vld [vmem:[#allocation2 + $0x21] sm:$0xff]
      %v490 = vld [vmem:[#allocation2 + $0x31] sm:$0xff]
      %v491 = vld [vmem:[#allocation2 + $0x39] sm:$0xff]
      %v492 = vld [vmem:[#allocation2 + $0x49] sm:$0xff]
      %v493 = vld [vmem:[#allocation2 + $0x51] sm:$0xff]
      %v494 = vld [vmem:[#allocation2 + $0x61] sm:$0xff]
      %v495 = vld [vmem:[#allocation2 + $0x69] sm:$0xff]
      %v496 = vld [vmem:[#allocation2 + $0x79] sm:$0xff]
      %v497 = vld [vmem:[#allocation2 + $0x81] sm:$0xff]
      %v498 = vld [vmem:[#allocation2 + $0x91] sm:$0xff]
      %v499 = vld [vmem:[#allocation2 + $0x99] sm:$0xff]
      %v500 = vld [vmem:[#allocation2 + $0xa9] sm:$0xff]
      %v501 = vld [vmem:[#allocation2 + $0xb1] sm:$0xff]
      %v502 = vld [vmem:[#allocation2 + $0xc1] sm:$0xff]
      %v503 = vld [vmem:[#allocation2 + $0xc9] sm:$0xff]
      %v504 = vld [vmem:[#allocation2 + $0xd9] sm:$0xff]
      %v505 = vld [vmem:[#allocation2 + $0xe1] sm:$0xff]
      %v506 = vld [vmem:[#allocation2 + $0xf1] sm:$0xff]
      %v507 = vld [vmem:[#allocation2 + $0xf9] sm:$0xff]
      %v508 = vld [vmem:[#allocation2 + $0x109] sm:$0xff]
      %v509 = vld [vmem:[#allocation2 + $0x111] sm:$0xff]
      %v510 = vld [vmem:[#allocation2 + $0x121] sm:$0xff]
      %v511 = vld [vmem:[#allocation2 + $0x129] sm:$0xff]
      %v512 = vld [vmem:[#allocation2 + $0x139] sm:$0xff]
      %v513 = vld [vmem:[#allocation2 + $0x141] sm:$0xff]
      %v514 = vld [vmem:[#allocation2 + $0x151] sm:$0xff]
      %v515 = vld [vmem:[#allocation2 + $0x159] sm:$0xff]
      %v516 = vld [vmem:[#allocation2 + $0x169] sm:$0xff]
      %v517 = vld [vmem:[#allocation2 + $0x171] sm:$0xff]
      %v518 = vld [vmem:[#allocation2 + $0x181] sm:$0xff]
      %v519 = vld [vmem:[#allocation2 + $0x189] sm:$0xff]
      %v520 = vld [vmem:[#allocation2 + $0x199] sm:$0xff]
      %v521 = vld [vmem:[#allocation2 + $0x1a1] sm:$0xff]
      %v522 = vld [vmem:[#allocation2 + $0x2] sm:$0xff]
      %v523 = vld [vmem:[#allocation2 + $0xa] sm:$0xff]
      %v524 = vld [vmem:[#allocation2 + $0x1a] sm:$0xff]
      %v525 = vld [vmem:[#allocation2 + $0x22] sm:$0xff]
      %v526 = vld [vmem:[#allocation2 + $0x32] sm:$0xff]
      %v527 = vld [vmem:[#allocation2 + $0x3a] sm:$0xff]
      %v528 = vld [vmem:[#allocation2 + $0x4a] sm:$0xff]
      %v529 = vld [vmem:[#allocation2 + $0x52] sm:$0xff]
      %v530 = vld [vmem:[#allocation2 + $0x62] sm:$0xff]
      %v531 = vld [vmem:[#allocation2 + $0x6a] sm:$0xff]
      %v532 = vld [vmem:[#allocation2 + $0x7a] sm:$0xff]
      %v533 = vld [vmem:[#allocation2 + $0x82] sm:$0xff]
      %v534 = vld [vmem:[#allocation2 + $0x92] sm:$0xff]
      %v535 = vld [vmem:[#allocation2 + $0x9a] sm:$0xff]
      %v536 = vld [vmem:[#allocation2 + $0xaa] sm:$0xff]
      %v537 = vld [vmem:[#allocation2 + $0xb2] sm:$0xff]
      %v538 = vld [vmem:[#allocation2 + $0xc2] sm:$0xff]
      %v539 = vld [vmem:[#allocation2 + $0xca] sm:$0xff]
      %v540 = vld [vmem:[#allocation2 + $0xda] sm:$0xff]
      %v541 = vld [vmem:[#allocation2 + $0xe2] sm:$0xff]
      %v542 = vld [vmem:[#allocation2 + $0xf2] sm:$0xff]
      %v543 = vld [vmem:[#allocation2 + $0xfa] sm:$0xff]
      %v544 = vld [vmem:[#allocation2 + $0x10a] sm:$0xff]
      %v545 = vld [vmem:[#allocation2 + $0x112] sm:$0xff]
      %v546 = vld [vmem:[#allocation2 + $0x122] sm:$0xff]
      %v547 = vld [vmem:[#allocation2 + $0x12a] sm:$0xff]
      %v548 = vld [vmem:[#allocation2 + $0x13a] sm:$0xff]
      %v549 = vld [vmem:[#allocation2 + $0x142] sm:$0xff]
      %v550 = vld [vmem:[#allocation2 + $0x152] sm:$0xff]
      %v551 = vld [vmem:[#allocation2 + $0x15a] sm:$0xff]
      %v552 = vld [vmem:[#allocation2 + $0x16a] sm:$0xff]
      %v553 = vld [vmem:[#allocation2 + $0x172] sm:$0xff]
      %v554 = vld [vmem:[#allocation2 + $0x182] sm:$0xff]
      %v555 = vld [vmem:[#allocation2 + $0x18a] sm:$0xff]
      %v556 = vld [vmem:[#allocation2 + $0x19a] sm:$0xff]
      %v557 = vld [vmem:[#allocation2 + $0x1a2] sm:$0xff]
      %590 = vrot.lane.b32.xlu0 %v486, 8
      %v591 = vpop.permute.xlu0 %590
      %592 = vrot.lane.b32.xlu0 %v487, 8
      %v593 = vpop.permute.xlu0 %592
      %594 = vrot.lane.b32.xlu0 %v488, 8
      %v595 = vpop.permute.xlu0 %594
      %596 = vrot.lane.b32.xlu0 %v489, 8
      %v597 = vpop.permute.xlu0 %596
      %598 = vrot.lane.b32.xlu0 %v490, 8
      %v599 = vpop.permute.xlu0 %598
      %600 = vrot.lane.b32.xlu0 %v491, 8
      %v601 = vpop.permute.xlu0 %600
      %602 = vrot.lane.b32.xlu0 %v492, 8
      %v603 = vpop.permute.xlu0 %602
      %604 = vrot.lane.b32.xlu0 %v493, 8
      %v605 = vpop.permute.xlu0 %604
      %606 = vrot.lane.b32.xlu0 %v494, 8
      %v607 = vpop.permute.xlu0 %606
      %608 = vrot.lane.b32.xlu0 %v495, 8
      %v609 = vpop.permute.xlu0 %608
      %610 = vrot.lane.b32.xlu0 %v496, 8
      %v611 = vpop.permute.xlu0 %610
      %612 = vrot.lane.b32.xlu0 %v497, 8
      %v613 = vpop.permute.xlu0 %612
      %614 = vrot.lane.b32.xlu0 %v498, 8
      %v615 = vpop.permute.xlu0 %614
      %616 = vrot.lane.b32.xlu0 %v499, 8
      %v617 = vpop.permute.xlu0 %616
      %618 = vrot.lane.b32.xlu0 %v500, 8
      %v619 = vpop.permute.xlu0 %618
      %620 = vrot.lane.b32.xlu0 %v501, 8
      %v621 = vpop.permute.xlu0 %620
      %622 = vrot.lane.b32.xlu0 %v502, 8
      %v623 = vpop.permute.xlu0 %622
      %624 = vrot.lane.b32.xlu0 %v503, 8
      %v625 = vpop.permute.xlu0 %624
      %626 = vrot.lane.b32.xlu0 %v504, 8
      %v627 = vpop.permute.xlu0 %626
      %628 = vrot.lane.b32.xlu0 %v505, 8
      %v629 = vpop.permute.xlu0 %628
      %630 = vrot.lane.b32.xlu0 %v506, 8
      %v631 = vpop.permute.xlu0 %630
      %632 = vrot.lane.b32.xlu0 %v507, 8
      %v633 = vpop.permute.xlu0 %632
      %634 = vrot.lane.b32.xlu0 %v508, 8
      %v635 = vpop.permute.xlu0 %634
      %636 = vrot.lane.b32.xlu0 %v509, 8
      %v637 = vpop.permute.xlu0 %636
      %638 = vrot.lane.b32.xlu0 %v510, 8
      %v639 = vpop.permute.xlu0 %638
      %640 = vrot.lane.b32.xlu0 %v511, 8
      %v641 = vpop.permute.xlu0 %640
      %642 = vrot.lane.b32.xlu0 %v512, 8
      %v643 = vpop.permute.xlu0 %642
      %644 = vrot.lane.b32.xlu0 %v513, 8
      %v645 = vpop.permute.xlu0 %644
      %646 = vrot.lane.b32.xlu0 %v514, 8
      %v647 = vpop.permute.xlu0 %646
      %648 = vrot.lane.b32.xlu0 %v515, 8
      %v649 = vpop.permute.xlu0 %648
      %650 = vrot.lane.b32.xlu0 %v516, 8
      %v651 = vpop.permute.xlu0 %650
      %652 = vrot.lane.b32.xlu0 %v517, 8
      %v653 = vpop.permute.xlu0 %652
      %718 = vrot.lane.b32.xlu0 %v522, 16
      %v719 = vpop.permute.xlu0 %718
      %720 = vrot.lane.b32.xlu0 %v523, 16
      %v721 = vpop.permute.xlu0 %720
      %722 = vrot.lane.b32.xlu0 %v524, 16
      %v723 = vpop.permute.xlu0 %722
      %724 = vrot.lane.b32.xlu0 %v525, 16
      %v725 = vpop.permute.xlu0 %724
      %726 = vrot.lane.b32.xlu0 %v526, 16
      %v727 = vpop.permute.xlu0 %726
      %728 = vrot.lane.b32.xlu0 %v527, 16
      %v729 = vpop.permute.xlu0 %728
      %730 = vrot.lane.b32.xlu0 %v528, 16
      %v731 = vpop.permute.xlu0 %730
      %732 = vrot.lane.b32.xlu0 %v529, 16
      %v733 = vpop.permute.xlu0 %732
      %734 = vrot.lane.b32.xlu0 %v530, 16
      %v735 = vpop.permute.xlu0 %734
      %736 = vrot.lane.b32.xlu0 %v531, 16
      %v737 = vpop.permute.xlu0 %736
      %738 = vrot.lane.b32.xlu0 %v532, 16
      %v739 = vpop.permute.xlu0 %738
      %740 = vrot.lane.b32.xlu0 %v533, 16
      %v741 = vpop.permute.xlu0 %740
      %742 = vrot.lane.b32.xlu0 %v534, 16
      %v743 = vpop.permute.xlu0 %742
      %744 = vrot.lane.b32.xlu0 %v535, 16
      %v745 = vpop.permute.xlu0 %744
      %746 = vrot.lane.b32.xlu0 %v536, 16
      %v747 = vpop.permute.xlu0 %746
      %748 = vrot.lane.b32.xlu0 %v537, 16
      %v749 = vpop.permute.xlu0 %748
      %750 = vrot.lane.b32.xlu0 %v538, 16
      %v751 = vpop.permute.xlu0 %750
      %752 = vrot.lane.b32.xlu0 %v539, 16
      %v753 = vpop.permute.xlu0 %752
      %754 = vrot.lane.b32.xlu0 %v540, 16
      %v755 = vpop.permute.xlu0 %754
      %756 = vrot.lane.b32.xlu0 %v541, 16
      %v757 = vpop.permute.xlu0 %756
      %758 = vrot.lane.b32.xlu0 %v542, 16
      %v759 = vpop.permute.xlu0 %758
      %760 = vrot.lane.b32.xlu0 %v543, 16
      %v761 = vpop.permute.xlu0 %760
      %762 = vrot.lane.b32.xlu0 %v544, 16
      %v763 = vpop.permute.xlu0 %762
      %764 = vrot.lane.b32.xlu0 %v545, 16
      %v765 = vpop.permute.xlu0 %764
      %766 = vrot.lane.b32.xlu0 %v546, 16
      %v767 = vpop.permute.xlu0 %766
      %768 = vrot.lane.b32.xlu0 %v547, 16
      %v769 = vpop.permute.xlu0 %768
      %770 = vrot.lane.b32.xlu0 %v548, 16
      %v771 = vpop.permute.xlu0 %770
      %772 = vrot.lane.b32.xlu0 %v549, 16
      %v773 = vpop.permute.xlu0 %772
      %774 = vrot.lane.b32.xlu0 %v550, 16
      %v775 = vpop.permute.xlu0 %774
      %776 = vrot.lane.b32.xlu0 %v551, 16
      %v777 = vpop.permute.xlu0 %776
      %778 = vrot.lane.b32.xlu0 %v552, 16
      %v779 = vpop.permute.xlu0 %778
      %780 = vrot.lane.b32.xlu0 %v553, 16
      %v781 = vpop.permute.xlu0 %780
      %846 = vrot.lane.b32.xlu0 %v452, 24
      %v847 = vpop.permute.xlu0 %846
      %848 = vrot.lane.b32.xlu0 %v453, 24
      %v849 = vpop.permute.xlu0 %848
      %850 = vrot.lane.b32.xlu0 %v454, 24
      %v851 = vpop.permute.xlu0 %850
      %852 = vrot.lane.b32.xlu0 %v455, 24
      %v853 = vpop.permute.xlu0 %852
      %854 = vrot.lane.b32.xlu0 %v456, 24
      %v855 = vpop.permute.xlu0 %854
      %856 = vrot.lane.b32.xlu0 %v457, 24
      %v857 = vpop.permute.xlu0 %856
      %858 = vrot.lane.b32.xlu0 %v458, 24
      %v859 = vpop.permute.xlu0 %858
      %860 = vrot.lane.b32.xlu0 %v459, 24
      %v861 = vpop.permute.xlu0 %860
      %862 = vrot.lane.b32.xlu0 %v460, 24
      %v863 = vpop.permute.xlu0 %862
      %864 = vrot.lane.b32.xlu0 %v461, 24
      %v865 = vpop.permute.xlu0 %864
      %866 = vrot.lane.b32.xlu0 %v462, 24
      %v867 = vpop.permute.xlu0 %866
      %868 = vrot.lane.b32.xlu0 %v463, 24
      %v869 = vpop.permute.xlu0 %868
      %870 = vrot.lane.b32.xlu0 %v464, 24
      %v871 = vpop.permute.xlu0 %870
      %872 = vrot.lane.b32.xlu0 %v465, 24
      %v873 = vpop.permute.xlu0 %872
      %874 = vrot.lane.b32.xlu0 %v466, 24
      %v875 = vpop.permute.xlu0 %874
      %876 = vrot.lane.b32.xlu0 %v467, 24
      %v877 = vpop.permute.xlu0 %876
      %878 = vrot.lane.b32.xlu0 %v468, 24
      %v879 = vpop.permute.xlu0 %878
      %880 = vrot.lane.b32.xlu0 %v469, 24
      %v881 = vpop.permute.xlu0 %880
      %882 = vrot.lane.b32.xlu0 %v470, 24
      %v883 = vpop.permute.xlu0 %882
      %884 = vrot.lane.b32.xlu0 %v471, 24
      %v885 = vpop.permute.xlu0 %884
      %886 = vrot.lane.b32.xlu0 %v472, 24
      %v887 = vpop.permute.xlu0 %886
      %888 = vrot.lane.b32.xlu0 %v473, 24
      %v889 = vpop.permute.xlu0 %888
      %890 = vrot.lane.b32.xlu0 %v474, 24
      %v891 = vpop.permute.xlu0 %890
      %892 = vrot.lane.b32.xlu0 %v475, 24
      %v893 = vpop.permute.xlu0 %892
      %894 = vrot.lane.b32.xlu0 %v476, 24
      %v895 = vpop.permute.xlu0 %894
      %896 = vrot.lane.b32.xlu0 %v477, 24
      %v897 = vpop.permute.xlu0 %896
      %898 = vrot.lane.b32.xlu0 %v478, 24
      %v899 = vpop.permute.xlu0 %898
      %900 = vrot.lane.b32.xlu0 %v479, 24
      %v901 = vpop.permute.xlu0 %900
      %902 = vrot.lane.b32.xlu0 %v480, 24
      %v903 = vpop.permute.xlu0 %902
      %904 = vrot.lane.b32.xlu0 %v481, 24
      %v905 = vpop.permute.xlu0 %904
      %906 = vrot.lane.b32.xlu0 %v482, 24
      %v907 = vpop.permute.xlu0 %906
      %908 = vrot.lane.b32.xlu0 %v483, 24
      %v909 = vpop.permute.xlu0 %908
      %944 = vrot.lane.b32.xlu0 %v488, 32
      %v945 = vpop.permute.xlu0 %944
      %946 = vrot.lane.b32.xlu0 %v489, 32
      %v947 = vpop.permute.xlu0 %946
      %948 = vrot.lane.b32.xlu0 %v490, 32
      %v949 = vpop.permute.xlu0 %948
      %950 = vrot.lane.b32.xlu0 %v491, 32
      %v951 = vpop.permute.xlu0 %950
      %952 = vrot.lane.b32.xlu0 %v492, 32
      %v953 = vpop.permute.xlu0 %952
      %954 = vrot.lane.b32.xlu0 %v493, 32
      %v955 = vpop.permute.xlu0 %954
      %956 = vrot.lane.b32.xlu0 %v494, 32
      %v957 = vpop.permute.xlu0 %956
      %958 = vrot.lane.b32.xlu0 %v495, 32
      %v959 = vpop.permute.xlu0 %958
      %960 = vrot.lane.b32.xlu0 %v496, 32
      %v961 = vpop.permute.xlu0 %960
      %962 = vrot.lane.b32.xlu0 %v497, 32
      %v963 = vpop.permute.xlu0 %962
      %964 = vrot.lane.b32.xlu0 %v498, 32
      %v965 = vpop.permute.xlu0 %964
      %966 = vrot.lane.b32.xlu0 %v499, 32
      %v967 = vpop.permute.xlu0 %966
      %968 = vrot.lane.b32.xlu0 %v500, 32
      %v969 = vpop.permute.xlu0 %968
      %970 = vrot.lane.b32.xlu0 %v501, 32
      %v971 = vpop.permute.xlu0 %970
      %972 = vrot.lane.b32.xlu0 %v502, 32
      %v973 = vpop.permute.xlu0 %972
      %974 = vrot.lane.b32.xlu0 %v503, 32
      %v975 = vpop.permute.xlu0 %974
      %976 = vrot.lane.b32.xlu0 %v504, 32
      %v977 = vpop.permute.xlu0 %976
      %978 = vrot.lane.b32.xlu0 %v505, 32
      %v979 = vpop.permute.xlu0 %978
      %980 = vrot.lane.b32.xlu0 %v506, 32
      %v981 = vpop.permute.xlu0 %980
      %982 = vrot.lane.b32.xlu0 %v507, 32
      %v983 = vpop.permute.xlu0 %982
      %984 = vrot.lane.b32.xlu0 %v508, 32
      %v985 = vpop.permute.xlu0 %984
      %986 = vrot.lane.b32.xlu0 %v509, 32
      %v987 = vpop.permute.xlu0 %986
      %988 = vrot.lane.b32.xlu0 %v510, 32
      %v989 = vpop.permute.xlu0 %988
      %990 = vrot.lane.b32.xlu0 %v511, 32
      %v991 = vpop.permute.xlu0 %990
      %992 = vrot.lane.b32.xlu0 %v512, 32
      %v993 = vpop.permute.xlu0 %992
      %994 = vrot.lane.b32.xlu0 %v513, 32
      %v995 = vpop.permute.xlu0 %994
      %996 = vrot.lane.b32.xlu0 %v514, 32
      %v997 = vpop.permute.xlu0 %996
      %998 = vrot.lane.b32.xlu0 %v515, 32
      %v999 = vpop.permute.xlu0 %998
      %1000 = vrot.lane.b32.xlu0 %v516, 32
      %v1001 = vpop.permute.xlu0 %1000
      %1002 = vrot.lane.b32.xlu0 %v517, 32
      %v1003 = vpop.permute.xlu0 %1002
      %1004 = vrot.lane.b32.xlu0 %v518, 32
      %v1005 = vpop.permute.xlu0 %1004
      %1006 = vrot.lane.b32.xlu0 %v519, 32
      %v1007 = vpop.permute.xlu0 %1006
      %1042 = vrot.lane.b32.xlu0 %v524, 40
      %v1043 = vpop.permute.xlu0 %1042
      %1044 = vrot.lane.b32.xlu0 %v525, 40
      %v1045 = vpop.permute.xlu0 %1044
      %1046 = vrot.lane.b32.xlu0 %v526, 40
      %v1047 = vpop.permute.xlu0 %1046
      %1048 = vrot.lane.b32.xlu0 %v527, 40
      %v1049 = vpop.permute.xlu0 %1048
      %1050 = vrot.lane.b32.xlu0 %v528, 40
      %v1051 = vpop.permute.xlu0 %1050
      %1052 = vrot.lane.b32.xlu0 %v529, 40
      %v1053 = vpop.permute.xlu0 %1052
      %1054 = vrot.lane.b32.xlu0 %v530, 40
      %v1055 = vpop.permute.xlu0 %1054
      %1056 = vrot.lane.b32.xlu0 %v531, 40
      %v1057 = vpop.permute.xlu0 %1056
      %1058 = vrot.lane.b32.xlu0 %v532, 40
      %v1059 = vpop.permute.xlu0 %1058
      %1060 = vrot.lane.b32.xlu0 %v533, 40
      %v1061 = vpop.permute.xlu0 %1060
      %1062 = vrot.lane.b32.xlu0 %v534, 40
      %v1063 = vpop.permute.xlu0 %1062
      %1064 = vrot.lane.b32.xlu0 %v535, 40
      %v1065 = vpop.permute.xlu0 %1064
      %1066 = vrot.lane.b32.xlu0 %v536, 40
      %v1067 = vpop.permute.xlu0 %1066
      %1068 = vrot.lane.b32.xlu0 %v537, 40
      %v1069 = vpop.permute.xlu0 %1068
      %1070 = vrot.lane.b32.xlu0 %v538, 40
      %v1071 = vpop.permute.xlu0 %1070
      %1072 = vrot.lane.b32.xlu0 %v539, 40
      %v1073 = vpop.permute.xlu0 %1072
      %1074 = vrot.lane.b32.xlu0 %v540, 40
      %v1075 = vpop.permute.xlu0 %1074
      %1076 = vrot.lane.b32.xlu0 %v541, 40
      %v1077 = vpop.permute.xlu0 %1076
      %1078 = vrot.lane.b32.xlu0 %v542, 40
      %v1079 = vpop.permute.xlu0 %1078
      %1080 = vrot.lane.b32.xlu0 %v543, 40
      %v1081 = vpop.permute.xlu0 %1080
      %1082 = vrot.lane.b32.xlu0 %v544, 40
      %v1083 = vpop.permute.xlu0 %1082
      %1084 = vrot.lane.b32.xlu0 %v545, 40
      %v1085 = vpop.permute.xlu0 %1084
      %1086 = vrot.lane.b32.xlu0 %v546, 40
      %v1087 = vpop.permute.xlu0 %1086
      %1088 = vrot.lane.b32.xlu0 %v547, 40
      %v1089 = vpop.permute.xlu0 %1088
      %1090 = vrot.lane.b32.xlu0 %v548, 40
      %v1091 = vpop.permute.xlu0 %1090
      %1092 = vrot.lane.b32.xlu0 %v549, 40
      %v1093 = vpop.permute.xlu0 %1092
      %1094 = vrot.lane.b32.xlu0 %v550, 40
      %v1095 = vpop.permute.xlu0 %1094
      %1096 = vrot.lane.b32.xlu0 %v551, 40
      %v1097 = vpop.permute.xlu0 %1096
      %1098 = vrot.lane.b32.xlu0 %v552, 40
      %v1099 = vpop.permute.xlu0 %1098
      %1100 = vrot.lane.b32.xlu0 %v553, 40
      %v1101 = vpop.permute.xlu0 %1100
      %1102 = vrot.lane.b32.xlu0 %v554, 40
      %v1103 = vpop.permute.xlu0 %1102
      %1104 = vrot.lane.b32.xlu0 %v555, 40
      %v1105 = vpop.permute.xlu0 %1104
      %1140 = vrot.lane.b32.xlu0 %v454, 48
      %v1141 = vpop.permute.xlu0 %1140
      %1142 = vrot.lane.b32.xlu0 %v455, 48
      %v1143 = vpop.permute.xlu0 %1142
      %1144 = vrot.lane.b32.xlu0 %v456, 48
      %v1145 = vpop.permute.xlu0 %1144
      %1146 = vrot.lane.b32.xlu0 %v457, 48
      %v1147 = vpop.permute.xlu0 %1146
      %1148 = vrot.lane.b32.xlu0 %v458, 48
      %v1149 = vpop.permute.xlu0 %1148
      %1150 = vrot.lane.b32.xlu0 %v459, 48
      %v1151 = vpop.permute.xlu0 %1150
      %1152 = vrot.lane.b32.xlu0 %v460, 48
      %v1153 = vpop.permute.xlu0 %1152
      %1154 = vrot.lane.b32.xlu0 %v461, 48
      %v1155 = vpop.permute.xlu0 %1154
      %1156 = vrot.lane.b32.xlu0 %v462, 48
      %v1157 = vpop.permute.xlu0 %1156
      %1158 = vrot.lane.b32.xlu0 %v463, 48
      %v1159 = vpop.permute.xlu0 %1158
      %1160 = vrot.lane.b32.xlu0 %v464, 48
      %v1161 = vpop.permute.xlu0 %1160
      %1162 = vrot.lane.b32.xlu0 %v465, 48
      %v1163 = vpop.permute.xlu0 %1162
      %1164 = vrot.lane.b32.xlu0 %v466, 48
      %v1165 = vpop.permute.xlu0 %1164
      %1166 = vrot.lane.b32.xlu0 %v467, 48
      %v1167 = vpop.permute.xlu0 %1166
      %1168 = vrot.lane.b32.xlu0 %v468, 48
      %v1169 = vpop.permute.xlu0 %1168
      %1170 = vrot.lane.b32.xlu0 %v469, 48
      %v1171 = vpop.permute.xlu0 %1170
      %1172 = vrot.lane.b32.xlu0 %v470, 48
      %v1173 = vpop.permute.xlu0 %1172
      %1174 = vrot.lane.b32.xlu0 %v471, 48
      %v1175 = vpop.permute.xlu0 %1174
      %1176 = vrot.lane.b32.xlu0 %v472, 48
      %v1177 = vpop.permute.xlu0 %1176
      %1178 = vrot.lane.b32.xlu0 %v473, 48
      %v1179 = vpop.permute.xlu0 %1178
      %1180 = vrot.lane.b32.xlu0 %v474, 48
      %v1181 = vpop.permute.xlu0 %1180
      %1182 = vrot.lane.b32.xlu0 %v475, 48
      %v1183 = vpop.permute.xlu0 %1182
      %1184 = vrot.lane.b32.xlu0 %v476, 48
      %v1185 = vpop.permute.xlu0 %1184
      %1186 = vrot.lane.b32.xlu0 %v477, 48
      %v1187 = vpop.permute.xlu0 %1186
      %1188 = vrot.lane.b32.xlu0 %v478, 48
      %v1189 = vpop.permute.xlu0 %1188
      %1190 = vrot.lane.b32.xlu0 %v479, 48
      %v1191 = vpop.permute.xlu0 %1190
      %1192 = vrot.lane.b32.xlu0 %v480, 48
      %v1193 = vpop.permute.xlu0 %1192
      %1194 = vrot.lane.b32.xlu0 %v481, 48
      %v1195 = vpop.permute.xlu0 %1194
      %1196 = vrot.lane.b32.xlu0 %v482, 48
      %v1197 = vpop.permute.xlu0 %1196
      %1198 = vrot.lane.b32.xlu0 %v483, 48
      %v1199 = vpop.permute.xlu0 %1198
      %1200 = vrot.lane.b32.xlu0 %v484, 48
      %v1201 = vpop.permute.xlu0 %1200
      %1202 = vrot.lane.b32.xlu0 %v485, 48
      %v1203 = vpop.permute.xlu0 %1202
      %1238 = vrot.lane.b32.xlu0 %v490, 56
      %v1239 = vpop.permute.xlu0 %1238
      %1240 = vrot.lane.b32.xlu0 %v491, 56
      %v1241 = vpop.permute.xlu0 %1240
      %1242 = vrot.lane.b32.xlu0 %v492, 56
      %v1243 = vpop.permute.xlu0 %1242
      %1244 = vrot.lane.b32.xlu0 %v493, 56
      %v1245 = vpop.permute.xlu0 %1244
      %1246 = vrot.lane.b32.xlu0 %v494, 56
      %v1247 = vpop.permute.xlu0 %1246
      %1248 = vrot.lane.b32.xlu0 %v495, 56
      %v1249 = vpop.permute.xlu0 %1248
      %1250 = vrot.lane.b32.xlu0 %v496, 56
      %v1251 = vpop.permute.xlu0 %1250
      %1252 = vrot.lane.b32.xlu0 %v497, 56
      %v1253 = vpop.permute.xlu0 %1252
      %1254 = vrot.lane.b32.xlu0 %v498, 56
      %v1255 = vpop.permute.xlu0 %1254
      %1256 = vrot.lane.b32.xlu0 %v499, 56
      %v1257 = vpop.permute.xlu0 %1256
      %1258 = vrot.lane.b32.xlu0 %v500, 56
      %v1259 = vpop.permute.xlu0 %1258
      %1260 = vrot.lane.b32.xlu0 %v501, 56
      %v1261 = vpop.permute.xlu0 %1260
      %1262 = vrot.lane.b32.xlu0 %v502, 56
      %v1263 = vpop.permute.xlu0 %1262
      %1264 = vrot.lane.b32.xlu0 %v503, 56
      %v1265 = vpop.permute.xlu0 %1264
      %1266 = vrot.lane.b32.xlu0 %v504, 56
      %v1267 = vpop.permute.xlu0 %1266
      %1268 = vrot.lane.b32.xlu0 %v505, 56
      %v1269 = vpop.permute.xlu0 %1268
      %1270 = vrot.lane.b32.xlu0 %v506, 56
      %v1271 = vpop.permute.xlu0 %1270
      %1272 = vrot.lane.b32.xlu0 %v507, 56
      %v1273 = vpop.permute.xlu0 %1272
      %1274 = vrot.lane.b32.xlu0 %v508, 56
      %v1275 = vpop.permute.xlu0 %1274
      %1276 = vrot.lane.b32.xlu0 %v509, 56
      %v1277 = vpop.permute.xlu0 %1276
      %1278 = vrot.lane.b32.xlu0 %v510, 56
      %v1279 = vpop.permute.xlu0 %1278
      %1280 = vrot.lane.b32.xlu0 %v511, 56
      %v1281 = vpop.permute.xlu0 %1280
      %1282 = vrot.lane.b32.xlu0 %v512, 56
      %v1283 = vpop.permute.xlu0 %1282
      %1284 = vrot.lane.b32.xlu0 %v513, 56
      %v1285 = vpop.permute.xlu0 %1284
      %1286 = vrot.lane.b32.xlu0 %v514, 56
      %v1287 = vpop.permute.xlu0 %1286
      %1288 = vrot.lane.b32.xlu0 %v515, 56
      %v1289 = vpop.permute.xlu0 %1288
      %1290 = vrot.lane.b32.xlu0 %v516, 56
      %v1291 = vpop.permute.xlu0 %1290
      %1292 = vrot.lane.b32.xlu0 %v517, 56
      %v1293 = vpop.permute.xlu0 %1292
      %1294 = vrot.lane.b32.xlu0 %v518, 56
      %v1295 = vpop.permute.xlu0 %1294
      %1296 = vrot.lane.b32.xlu0 %v519, 56
      %v1297 = vpop.permute.xlu0 %1296
      %1298 = vrot.lane.b32.xlu0 %v520, 56
      %v1299 = vpop.permute.xlu0 %1298
      %1300 = vrot.lane.b32.xlu0 %v521, 56
      %v1301 = vpop.permute.xlu0 %1300
      %1336 = vrot.lane.b32.xlu0 %v526, 64
      %v1337 = vpop.permute.xlu0 %1336
      %1338 = vrot.lane.b32.xlu0 %v527, 64
      %v1339 = vpop.permute.xlu0 %1338
      %1340 = vrot.lane.b32.xlu0 %v528, 64
      %v1341 = vpop.permute.xlu0 %1340
      %1342 = vrot.lane.b32.xlu0 %v529, 64
      %v1343 = vpop.permute.xlu0 %1342
      %1344 = vrot.lane.b32.xlu0 %v530, 64
      %v1345 = vpop.permute.xlu0 %1344
      %1346 = vrot.lane.b32.xlu0 %v531, 64
      %v1347 = vpop.permute.xlu0 %1346
      %1348 = vrot.lane.b32.xlu0 %v532, 64
      %v1349 = vpop.permute.xlu0 %1348
      %1350 = vrot.lane.b32.xlu0 %v533, 64
      %v1351 = vpop.permute.xlu0 %1350
      %1352 = vrot.lane.b32.xlu0 %v534, 64
      %v1353 = vpop.permute.xlu0 %1352
      %1354 = vrot.lane.b32.xlu0 %v535, 64
      %v1355 = vpop.permute.xlu0 %1354
      %1356 = vrot.lane.b32.xlu0 %v536, 64
      %v1357 = vpop.permute.xlu0 %1356
      %1358 = vrot.lane.b32.xlu0 %v537, 64
      %v1359 = vpop.permute.xlu0 %1358
      %1360 = vrot.lane.b32.xlu0 %v538, 64
      %v1361 = vpop.permute.xlu0 %1360
      %1362 = vrot.lane.b32.xlu0 %v539, 64
      %v1363 = vpop.permute.xlu0 %1362
      %1364 = vrot.lane.b32.xlu0 %v540, 64
      %v1365 = vpop.permute.xlu0 %1364
      %1366 = vrot.lane.b32.xlu0 %v541, 64
      %v1367 = vpop.permute.xlu0 %1366
      %1368 = vrot.lane.b32.xlu0 %v542, 64
      %v1369 = vpop.permute.xlu0 %1368
      %1370 = vrot.lane.b32.xlu0 %v543, 64
      %v1371 = vpop.permute.xlu0 %1370
      %1372 = vrot.lane.b32.xlu0 %v544, 64
      %v1373 = vpop.permute.xlu0 %1372
      %1374 = vrot.lane.b32.xlu0 %v545, 64
      %v1375 = vpop.permute.xlu0 %1374
      %1376 = vrot.lane.b32.xlu0 %v546, 64
      %v1377 = vpop.permute.xlu0 %1376
      %1378 = vrot.lane.b32.xlu0 %v547, 64
      %v1379 = vpop.permute.xlu0 %1378
      %1380 = vrot.lane.b32.xlu0 %v548, 64
      %v1381 = vpop.permute.xlu0 %1380
      %1382 = vrot.lane.b32.xlu0 %v549, 64
      %v1383 = vpop.permute.xlu0 %1382
      %1384 = vrot.lane.b32.xlu0 %v550, 64
      %v1385 = vpop.permute.xlu0 %1384
      %1386 = vrot.lane.b32.xlu0 %v551, 64
      %v1387 = vpop.permute.xlu0 %1386
      %1388 = vrot.lane.b32.xlu0 %v552, 64
      %v1389 = vpop.permute.xlu0 %1388
      %1390 = vrot.lane.b32.xlu0 %v553, 64
      %v1391 = vpop.permute.xlu0 %1390
      %1392 = vrot.lane.b32.xlu0 %v554, 64
      %v1393 = vpop.permute.xlu0 %1392
      %1394 = vrot.lane.b32.xlu0 %v555, 64
      %v1395 = vpop.permute.xlu0 %1394
      %1396 = vrot.lane.b32.xlu0 %v556, 64
      %v1397 = vpop.permute.xlu0 %1396
      %1398 = vrot.lane.b32.xlu0 %v557, 64
      %v1399 = vpop.permute.xlu0 %1398
      %v1432 = vsel %vm371, %v450, %v591
      %v1433 = vsel %vm371, %v451, %v593
      %v1434 = vsel %vm371, %v452, %v595
      %v1435 = vsel %vm371, %v453, %v597
      %v1436 = vsel %vm371, %v454, %v599
      %v1437 = vsel %vm371, %v455, %v601
      %v1438 = vsel %vm371, %v456, %v603
      %v1439 = vsel %vm371, %v457, %v605
      %v1440 = vsel %vm371, %v458, %v607
      %v1441 = vsel %vm371, %v459, %v609
      %v1442 = vsel %vm371, %v460, %v611
      %v1443 = vsel %vm371, %v461, %v613
      %v1444 = vsel %vm371, %v462, %v615
      %v1445 = vsel %vm371, %v463, %v617
      %v1446 = vsel %vm371, %v464, %v619
      %v1447 = vsel %vm371, %v465, %v621
      %v1448 = vsel %vm371, %v466, %v623
      %v1449 = vsel %vm371, %v467, %v625
      %v1450 = vsel %vm371, %v468, %v627
      %v1451 = vsel %vm371, %v469, %v629
      %v1452 = vsel %vm371, %v470, %v631
      %v1453 = vsel %vm371, %v471, %v633
      %v1454 = vsel %vm371, %v472, %v635
      %v1455 = vsel %vm371, %v473, %v637
      %v1456 = vsel %vm371, %v474, %v639
      %v1457 = vsel %vm371, %v475, %v641
      %v1458 = vsel %vm371, %v476, %v643
      %v1459 = vsel %vm371, %v477, %v645
      %v1460 = vsel %vm371, %v478, %v647
      %v1461 = vsel %vm371, %v479, %v649
      %v1462 = vsel %vm371, %v480, %v651
      %v1463 = vsel %vm371, %v481, %v653
      %vm1464 = vcmask 130048
      %v1465 = vsel %vm1464, %v1432, %v719
      %v1466 = vsel %vm1464, %v1433, %v721
      %v1467 = vsel %vm1464, %v1434, %v723
      %v1468 = vsel %vm1464, %v1435, %v725
      %v1469 = vsel %vm1464, %v1436, %v727
      %v1470 = vsel %vm1464, %v1437, %v729
      %v1471 = vsel %vm1464, %v1438, %v731
      %v1472 = vsel %vm1464, %v1439, %v733
      %v1473 = vsel %vm1464, %v1440, %v735
      %v1474 = vsel %vm1464, %v1441, %v737
      %v1475 = vsel %vm1464, %v1442, %v739
      %v1476 = vsel %vm1464, %v1443, %v741
      %v1477 = vsel %vm1464, %v1444, %v743
      %v1478 = vsel %vm1464, %v1445, %v745
      %v1479 = vsel %vm1464, %v1446, %v747
      %v1480 = vsel %vm1464, %v1447, %v749
      %v1481 = vsel %vm1464, %v1448, %v751
      %v1482 = vsel %vm1464, %v1449, %v753
      %v1483 = vsel %vm1464, %v1450, %v755
      %v1484 = vsel %vm1464, %v1451, %v757
      %v1485 = vsel %vm1464, %v1452, %v759
      %v1486 = vsel %vm1464, %v1453, %v761
      %v1487 = vsel %vm1464, %v1454, %v763
      %v1488 = vsel %vm1464, %v1455, %v765
      %v1489 = vsel %vm1464, %v1456, %v767
      %v1490 = vsel %vm1464, %v1457, %v769
      %v1491 = vsel %vm1464, %v1458, %v771
      %v1492 = vsel %vm1464, %v1459, %v773
      %v1493 = vsel %vm1464, %v1460, %v775
      %v1494 = vsel %vm1464, %v1461, %v777
      %v1495 = vsel %vm1464, %v1462, %v779
      %v1496 = vsel %vm1464, %v1463, %v781
      %vm1497 = vcmask 195584
      %v1498 = vsel %vm1497, %v1465, %v847
      %v1499 = vsel %vm1497, %v1466, %v849
      %v1500 = vsel %vm1497, %v1467, %v851
      %v1501 = vsel %vm1497, %v1468, %v853
      %v1502 = vsel %vm1497, %v1469, %v855
      %v1503 = vsel %vm1497, %v1470, %v857
      %v1504 = vsel %vm1497, %v1471, %v859
      %v1505 = vsel %vm1497, %v1472, %v861
      %v1506 = vsel %vm1497, %v1473, %v863
      %v1507 = vsel %vm1497, %v1474, %v865
      %v1508 = vsel %vm1497, %v1475, %v867
      %v1509 = vsel %vm1497, %v1476, %v869
      %v1510 = vsel %vm1497, %v1477, %v871
      %v1511 = vsel %vm1497, %v1478, %v873
      %v1512 = vsel %vm1497, %v1479, %v875
      %v1513 = vsel %vm1497, %v1480, %v877
      %v1514 = vsel %vm1497, %v1481, %v879
      %v1515 = vsel %vm1497, %v1482, %v881
      %v1516 = vsel %vm1497, %v1483, %v883
      %v1517 = vsel %vm1497, %v1484, %v885
      %v1518 = vsel %vm1497, %v1485, %v887
      %v1519 = vsel %vm1497, %v1486, %v889
      %v1520 = vsel %vm1497, %v1487, %v891
      %v1521 = vsel %vm1497, %v1488, %v893
      %v1522 = vsel %vm1497, %v1489, %v895
      %v1523 = vsel %vm1497, %v1490, %v897
      %v1524 = vsel %vm1497, %v1491, %v899
      %v1525 = vsel %vm1497, %v1492, %v901
      %v1526 = vsel %vm1497, %v1493, %v903
      %v1527 = vsel %vm1497, %v1494, %v905
      %v1528 = vsel %vm1497, %v1495, %v907
      %v1529 = vsel %vm1497, %v1496, %v909
      %vm1530 = vcmask 261120
      %v1531 = vsel %vm1530, %v1498, %v945
      %v1532 = vsel %vm1530, %v1499, %v947
      %v1533 = vsel %vm1530, %v1500, %v949
      %v1534 = vsel %vm1530, %v1501, %v951
      %v1535 = vsel %vm1530, %v1502, %v953
      %v1536 = vsel %vm1530, %v1503, %v955
      %v1537 = vsel %vm1530, %v1504, %v957
      %v1538 = vsel %vm1530, %v1505, %v959
      %v1539 = vsel %vm1530, %v1506, %v961
      %v1540 = vsel %vm1530, %v1507, %v963
      %v1541 = vsel %vm1530, %v1508, %v965
      %v1542 = vsel %vm1530, %v1509, %v967
      %v1543 = vsel %vm1530, %v1510, %v969
      %v1544 = vsel %vm1530, %v1511, %v971
      %v1545 = vsel %vm1530, %v1512, %v973
      %v1546 = vsel %vm1530, %v1513, %v975
      %v1547 = vsel %vm1530, %v1514, %v977
      %v1548 = vsel %vm1530, %v1515, %v979
      %v1549 = vsel %vm1530, %v1516, %v981
      %v1550 = vsel %vm1530, %v1517, %v983
      %v1551 = vsel %vm1530, %v1518, %v985
      %v1552 = vsel %vm1530, %v1519, %v987
      %v1553 = vsel %vm1530, %v1520, %v989
      %v1554 = vsel %vm1530, %v1521, %v991
      %v1555 = vsel %vm1530, %v1522, %v993
      %v1556 = vsel %vm1530, %v1523, %v995
      %v1557 = vsel %vm1530, %v1524, %v997
      %v1558 = vsel %vm1530, %v1525, %v999
      %v1559 = vsel %vm1530, %v1526, %v1001
      %v1560 = vsel %vm1530, %v1527, %v1003
      %v1561 = vsel %vm1530, %v1528, %v1005
      %v1562 = vsel %vm1530, %v1529, %v1007
      %vm1563 = vcmask 326656
      %v1564 = vsel %vm1563, %v1531, %v1043
      %v1565 = vsel %vm1563, %v1532, %v1045
      %v1566 = vsel %vm1563, %v1533, %v1047
      %v1567 = vsel %vm1563, %v1534, %v1049
      %v1568 = vsel %vm1563, %v1535, %v1051
      %v1569 = vsel %vm1563, %v1536, %v1053
      %v1570 = vsel %vm1563, %v1537, %v1055
      %v1571 = vsel %vm1563, %v1538, %v1057
      %v1572 = vsel %vm1563, %v1539, %v1059
      %v1573 = vsel %vm1563, %v1540, %v1061
      %v1574 = vsel %vm1563, %v1541, %v1063
      %v1575 = vsel %vm1563, %v1542, %v1065
      %v1576 = vsel %vm1563, %v1543, %v1067
      %v1577 = vsel %vm1563, %v1544, %v1069
      %v1578 = vsel %vm1563, %v1545, %v1071
      %v1579 = vsel %vm1563, %v1546, %v1073
      %v1580 = vsel %vm1563, %v1547, %v1075
      %v1581 = vsel %vm1563, %v1548, %v1077
      %v1582 = vsel %vm1563, %v1549, %v1079
      %v1583 = vsel %vm1563, %v1550, %v1081
      %v1584 = vsel %vm1563, %v1551, %v1083
      %v1585 = vsel %vm1563, %v1552, %v1085
      %v1586 = vsel %vm1563, %v1553, %v1087
      %v1587 = vsel %vm1563, %v1554, %v1089
      %v1588 = vsel %vm1563, %v1555, %v1091
      %v1589 = vsel %vm1563, %v1556, %v1093
      %v1590 = vsel %vm1563, %v1557, %v1095
      %v1591 = vsel %vm1563, %v1558, %v1097
      %v1592 = vsel %vm1563, %v1559, %v1099
      %v1593 = vsel %vm1563, %v1560, %v1101
      %v1594 = vsel %vm1563, %v1561, %v1103
      %v1595 = vsel %vm1563, %v1562, %v1105
      %vm1596 = vcmask 392192
      %v1597 = vsel %vm1596, %v1564, %v1141
      %v1598 = vsel %vm1596, %v1565, %v1143
      %v1599 = vsel %vm1596, %v1566, %v1145
      %v1600 = vsel %vm1596, %v1567, %v1147
      %v1601 = vsel %vm1596, %v1568, %v1149
      %v1602 = vsel %vm1596, %v1569, %v1151
      %v1603 = vsel %vm1596, %v1570, %v1153
      %v1604 = vsel %vm1596, %v1571, %v1155
      %v1605 = vsel %vm1596, %v1572, %v1157
      %v1606 = vsel %vm1596, %v1573, %v1159
      %v1607 = vsel %vm1596, %v1574, %v1161
      %v1608 = vsel %vm1596, %v1575, %v1163
      %v1609 = vsel %vm1596, %v1576, %v1165
      %v1610 = vsel %vm1596, %v1577, %v1167
      %v1611 = vsel %vm1596, %v1578, %v1169
      %v1612 = vsel %vm1596, %v1579, %v1171
      %v1613 = vsel %vm1596, %v1580, %v1173
      %v1614 = vsel %vm1596, %v1581, %v1175
      %v1615 = vsel %vm1596, %v1582, %v1177
      %v1616 = vsel %vm1596, %v1583, %v1179
      %v1617 = vsel %vm1596, %v1584, %v1181
      %v1618 = vsel %vm1596, %v1585, %v1183
      %v1619 = vsel %vm1596, %v1586, %v1185
      %v1620 = vsel %vm1596, %v1587, %v1187
      %v1621 = vsel %vm1596, %v1588, %v1189
      %v1622 = vsel %vm1596, %v1589, %v1191
      %v1623 = vsel %vm1596, %v1590, %v1193
      %v1624 = vsel %vm1596, %v1591, %v1195
      %v1625 = vsel %vm1596, %v1592, %v1197
      %v1626 = vsel %vm1596, %v1593, %v1199
      %v1627 = vsel %vm1596, %v1594, %v1201
      %v1628 = vsel %vm1596, %v1595, %v1203
      %vm1629 = vcmask 457728
      %v1630 = vsel %vm1629, %v1597, %v1239
      %v1631 = vsel %vm1629, %v1598, %v1241
      %v1632 = vsel %vm1629, %v1599, %v1243
      %v1633 = vsel %vm1629, %v1600, %v1245
      %v1634 = vsel %vm1629, %v1601, %v1247
      %v1635 = vsel %vm1629, %v1602, %v1249
      %v1636 = vsel %vm1629, %v1603, %v1251
      %v1637 = vsel %vm1629, %v1604, %v1253
      %v1638 = vsel %vm1629, %v1605, %v1255
      %v1639 = vsel %vm1629, %v1606, %v1257
      %v1640 = vsel %vm1629, %v1607, %v1259
      %v1641 = vsel %vm1629, %v1608, %v1261
      %v1642 = vsel %vm1629, %v1609, %v1263
      %v1643 = vsel %vm1629, %v1610, %v1265
      %v1644 = vsel %vm1629, %v1611, %v1267
      %v1645 = vsel %vm1629, %v1612, %v1269
      %v1646 = vsel %vm1629, %v1613, %v1271
      %v1647 = vsel %vm1629, %v1614, %v1273
      %v1648 = vsel %vm1629, %v1615, %v1275
      %v1649 = vsel %vm1629, %v1616, %v1277
      %v1650 = vsel %vm1629, %v1617, %v1279
      %v1651 = vsel %vm1629, %v1618, %v1281
      %v1652 = vsel %vm1629, %v1619, %v1283
      %v1653 = vsel %vm1629, %v1620, %v1285
      %v1654 = vsel %vm1629, %v1621, %v1287
      %v1655 = vsel %vm1629, %v1622, %v1289
      %v1656 = vsel %vm1629, %v1623, %v1291
      %v1657 = vsel %vm1629, %v1624, %v1293
      %v1658 = vsel %vm1629, %v1625, %v1295
      %v1659 = vsel %vm1629, %v1626, %v1297
      %v1660 = vsel %vm1629, %v1627, %v1299
      %v1661 = vsel %vm1629, %v1628, %v1301
      %vm1662 = vcmask 523264
      %v1663 = vsel %vm1662, %v1630, %v1337
      %v1664 = vsel %vm1662, %v1631, %v1339
      %v1665 = vsel %vm1662, %v1632, %v1341
      %v1666 = vsel %vm1662, %v1633, %v1343
      %v1667 = vsel %vm1662, %v1634, %v1345
      %v1668 = vsel %vm1662, %v1635, %v1347
      %v1669 = vsel %vm1662, %v1636, %v1349
      %v1670 = vsel %vm1662, %v1637, %v1351
      %v1671 = vsel %vm1662, %v1638, %v1353
      %v1672 = vsel %vm1662, %v1639, %v1355
      %v1673 = vsel %vm1662, %v1640, %v1357
      %v1674 = vsel %vm1662, %v1641, %v1359
      %v1675 = vsel %vm1662, %v1642, %v1361
      %v1676 = vsel %vm1662, %v1643, %v1363
      %v1677 = vsel %vm1662, %v1644, %v1365
      %v1678 = vsel %vm1662, %v1645, %v1367
      %v1679 = vsel %vm1662, %v1646, %v1369
      %v1680 = vsel %vm1662, %v1647, %v1371
      %v1681 = vsel %vm1662, %v1648, %v1373
      %v1682 = vsel %vm1662, %v1649, %v1375
      %v1683 = vsel %vm1662, %v1650, %v1377
      %v1684 = vsel %vm1662, %v1651, %v1379
      %v1685 = vsel %vm1662, %v1652, %v1381
      %v1686 = vsel %vm1662, %v1653, %v1383
      %v1687 = vsel %vm1662, %v1654, %v1385
      %v1688 = vsel %vm1662, %v1655, %v1387
      %v1689 = vsel %vm1662, %v1656, %v1389
      %v1690 = vsel %vm1662, %v1657, %v1391
      %v1691 = vsel %vm1662, %v1658, %v1393
      %v1692 = vsel %vm1662, %v1659, %v1395
      %v1693 = vsel %vm1662, %v1660, %v1397
      %v1694 = vsel %vm1662, %v1661, %v1399
      %v1695 = vpack.c.bf16 %v1664, %v1663
      %v1696 = vpack.c.bf16 %v1666, %v1665
      %v1697 = vpack.c.bf16 %v1668, %v1667
      %v1698 = vpack.c.bf16 %v1670, %v1669
      %v1699 = vpack.c.bf16 %v1672, %v1671
      %v1700 = vpack.c.bf16 %v1674, %v1673
      %v1701 = vpack.c.bf16 %v1676, %v1675
      %v1702 = vpack.c.bf16 %v1678, %v1677
      %v1703 = vpack.c.bf16 %v1680, %v1679
      %v1704 = vpack.c.bf16 %v1682, %v1681
      %v1705 = vpack.c.bf16 %v1684, %v1683
      %v1706 = vpack.c.bf16 %v1686, %v1685
      %v1707 = vpack.c.bf16 %v1688, %v1687
      %v1708 = vpack.c.bf16 %v1690, %v1689
      %v1709 = vpack.c.bf16 %v1692, %v1691
      %v1710 = vpack.c.bf16 %v1694, %v1693
      %v1711 = vld [vmem:[%s3] sm:$0xf]
      %v1712 = vld [vmem:[%s3 + $0x4] sm:$0xf]
      %v1713 = vld [vmem:[%s3 + $0x8] sm:$0xf]
      %v1714 = vld [vmem:[%s3 + $0xc] sm:$0xf]
      %v1715 = vld [vmem:[%s3 + $0x10] sm:$0xf]
      %v1716 = vld [vmem:[%s3 + $0x14] sm:$0xf]
      %v1717 = vld [vmem:[%s3 + $0x18] sm:$0xf]
      %v1718 = vld [vmem:[%s3 + $0x1c] sm:$0xf]
      %v1719 = vld [vmem:[%s3 + $0x20] sm:$0xf]
      %v1729 = vunpack.c.l.b16 %v1711
      %v1730 = vunpack.c.l.b16 %v1712
      %v1731 = vunpack.c.l.b16 %v1713
      %v1732 = vunpack.c.l.b16 %v1714
      %v1733 = vunpack.c.l.b16 %v1715
      %v1734 = vunpack.c.l.b16 %v1716
      %v1735 = vunpack.c.l.b16 %v1717
      %v1736 = vunpack.c.l.b16 %v1718
      %v1737 = vunpack.c.l.b16 %v1719
      %v1738 = vpack.c.b16 %v1730, %v1729
      %v1739 = vpack.c.b16 %v1732, %v1731
      %v1740 = vpack.c.b16 %v1734, %v1733
      %v1741 = vpack.c.b16 %v1736, %v1735
      %v1742 = vpack.c.b16 %v1737, %v1737
      %vm1747 = vcmask 588800
      %v1749 = vsel %vm1747, %v1695, 0
      %v1752 = vsel %vm1747, %v1696, 0
      %v1755 = vsel %vm1747, %v1697, 0
      %v1758 = vsel %vm1747, %v1698, 0
      %v1761 = vsel %vm1747, %v1699, 0
      %v1764 = vsel %vm1747, %v1700, 0
      %v1767 = vsel %vm1747, %v1701, 0
      %v1770 = vsel %vm1747, %v1702, 0
      %v1773 = vsel %vm1747, %v1703, 0
      %v1776 = vsel %vm1747, %v1704, 0
      %v1779 = vsel %vm1747, %v1705, 0
      %v1782 = vsel %vm1747, %v1706, 0
      %v1785 = vsel %vm1747, %v1707, 0
      %v1788 = vsel %vm1747, %v1708, 0
      %v1791 = vsel %vm1747, %v1709, 0
      %v1794 = vsel %vm1747, %v1710, 0
      %vm1796 = vcmask 1043456
      %v1798 = vsel %vm1796, %v1742, 0
      %1800 = vmatpush.bf16.msra.mxu0 0
      %1801 = vmatpush.bf16.msra.mxu0 0
      %1802 = vmatpush.bf16.msra.mxu0 0
      %1803 = vmatpush.bf16.msra.mxu0 %v1798
      %1804 = vmatpush.bf16.msra.mxu0 %v1741
      %1805 = vmatpush.bf16.msra.mxu0 %v1740
      %1806 = vmatpush.bf16.msra.mxu0 %v1739
      %1807 = vmatpush.bf16.msra.mxu0 %v1738
      %1808 = vmatmul.bf16.gmra.mxu0 %v1749
      %v1809 = vpop.f32.mrf.mxu0
      %v1810 = vadd.f32 0.0, %v1809
      %v1811 = vpop.f32.mrf.mxu0
      %v1812 = vadd.f32 0.0, %v1811
      %1813 = vmatmul.bf16.gmra.mxu0 %v1752
      %v1814 = vpop.f32.mrf.mxu0
      %v1815 = vadd.f32 0.0, %v1814
      %v1816 = vpop.f32.mrf.mxu0
      %v1817 = vadd.f32 0.0, %v1816
      %1818 = vmatmul.bf16.gmra.mxu0 %v1755
      %v1819 = vpop.f32.mrf.mxu0
      %v1820 = vadd.f32 0.0, %v1819
      %v1821 = vpop.f32.mrf.mxu0
      %v1822 = vadd.f32 0.0, %v1821
      %1823 = vmatmul.bf16.gmra.mxu0 %v1758
      %v1824 = vpop.f32.mrf.mxu0
      %v1825 = vadd.f32 0.0, %v1824
      %v1826 = vpop.f32.mrf.mxu0
      %v1827 = vadd.f32 0.0, %v1826
      %1828 = vmatmul.bf16.gmra.mxu0 %v1761
      %v1829 = vpop.f32.mrf.mxu0
      %v1830 = vadd.f32 0.0, %v1829
      %v1831 = vpop.f32.mrf.mxu0
      %v1832 = vadd.f32 0.0, %v1831
      %1833 = vmatmul.bf16.gmra.mxu0 %v1764
      %v1834 = vpop.f32.mrf.mxu0
      %v1835 = vadd.f32 0.0, %v1834
      %v1836 = vpop.f32.mrf.mxu0
      %v1837 = vadd.f32 0.0, %v1836
      %1838 = vmatmul.bf16.gmra.mxu0 %v1767
      %v1839 = vpop.f32.mrf.mxu0
      %v1840 = vadd.f32 0.0, %v1839
      %v1841 = vpop.f32.mrf.mxu0
      %v1842 = vadd.f32 0.0, %v1841
      %1843 = vmatmul.bf16.gmra.mxu0 %v1770
      %v1844 = vpop.f32.mrf.mxu0
      %v1845 = vadd.f32 0.0, %v1844
      %v1846 = vpop.f32.mrf.mxu0
      %v1847 = vadd.f32 0.0, %v1846
      %1848 = vmatmul.bf16.gmra.mxu0 %v1773
      %v1849 = vpop.f32.mrf.mxu0
      %v1850 = vadd.f32 0.0, %v1849
      %v1851 = vpop.f32.mrf.mxu0
      %v1852 = vadd.f32 0.0, %v1851
      %1853 = vmatmul.bf16.gmra.mxu0 %v1776
      %v1854 = vpop.f32.mrf.mxu0
      %v1855 = vadd.f32 0.0, %v1854
      %v1856 = vpop.f32.mrf.mxu0
      %v1857 = vadd.f32 0.0, %v1856
      %1858 = vmatmul.bf16.gmra.mxu0 %v1779
      %v1859 = vpop.f32.mrf.mxu0
      %v1860 = vadd.f32 0.0, %v1859
      %v1861 = vpop.f32.mrf.mxu0
      %v1862 = vadd.f32 0.0, %v1861
      %1863 = vmatmul.bf16.gmra.mxu0 %v1782
      %v1864 = vpop.f32.mrf.mxu0
      %v1865 = vadd.f32 0.0, %v1864
      %v1866 = vpop.f32.mrf.mxu0
      %v1867 = vadd.f32 0.0, %v1866
      %1868 = vmatmul.bf16.gmra.mxu0 %v1785
      %v1869 = vpop.f32.mrf.mxu0
      %v1870 = vadd.f32 0.0, %v1869
      %v1871 = vpop.f32.mrf.mxu0
      %v1872 = vadd.f32 0.0, %v1871
      %1873 = vmatmul.bf16.gmra.mxu0 %v1788
      %v1874 = vpop.f32.mrf.mxu0
      %v1875 = vadd.f32 0.0, %v1874
      %v1876 = vpop.f32.mrf.mxu0
      %v1877 = vadd.f32 0.0, %v1876
      %1878 = vmatmul.bf16.gmra.mxu0 %v1791
      %v1879 = vpop.f32.mrf.mxu0
      %v1880 = vadd.f32 0.0, %v1879
      %v1881 = vpop.f32.mrf.mxu0
      %v1882 = vadd.f32 0.0, %v1881
      %1883 = vmatmul.bf16.gmra.mxu0 %v1794
      %v1884 = vpop.f32.mrf.mxu0
      %v1885 = vadd.f32 0.0, %v1884
      %v1886 = vpop.f32.mrf.mxu0
      %v1887 = vadd.f32 0.0, %v1886
      %1888 = vdwg.mxu0
      %v1889 = vsel %vm371, %v1810, 0.0
      %v1890 = vsel %vm371, %v1812, 0.0
      %v1891 = vadd.f32 %v1889, %v1890
      %v1892 = vsel %vm371, %v1815, 0.0
      %v1893 = vadd.f32 %v1891, %v1892
      %v1894 = vsel %vm371, %v1817, 0.0
      %v1895 = vadd.f32 %v1893, %v1894
      %v1896 = vsel %vm371, %v1820, 0.0
      %v1897 = vadd.f32 %v1895, %v1896
      %v1898 = vsel %vm371, %v1822, 0.0
      %v1899 = vadd.f32 %v1897, %v1898
      %v1900 = vsel %vm371, %v1825, 0.0
      %v1901 = vadd.f32 %v1899, %v1900
      %v1902 = vsel %vm371, %v1827, 0.0
      %v1903 = vadd.f32 %v1901, %v1902
      %v1904 = vsel %vm371, %v1830, 0.0
      %v1905 = vadd.f32 %v1903, %v1904
      %v1906 = vsel %vm371, %v1832, 0.0
      %v1907 = vadd.f32 %v1905, %v1906
      %v1908 = vsel %vm371, %v1835, 0.0
      %v1909 = vadd.f32 %v1907, %v1908
      %v1910 = vsel %vm371, %v1837, 0.0
      %v1911 = vadd.f32 %v1909, %v1910
      %v1912 = vsel %vm371, %v1840, 0.0
      %v1913 = vadd.f32 %v1911, %v1912
      %v1914 = vsel %vm371, %v1842, 0.0
      %v1915 = vadd.f32 %v1913, %v1914
      %v1916 = vsel %vm371, %v1845, 0.0
      %v1917 = vadd.f32 %v1915, %v1916
      %v1918 = vsel %vm371, %v1847, 0.0
      %v1919 = vadd.f32 %v1917, %v1918
      %v1920 = vsel %vm371, %v1850, 0.0
      %v1921 = vadd.f32 %v1919, %v1920
      %v1922 = vsel %vm371, %v1852, 0.0
      %v1923 = vadd.f32 %v1921, %v1922
      %v1924 = vsel %vm371, %v1855, 0.0
      %v1925 = vadd.f32 %v1923, %v1924
      %v1926 = vsel %vm371, %v1857, 0.0
      %v1927 = vadd.f32 %v1925, %v1926
      %v1928 = vsel %vm371, %v1860, 0.0
      %v1929 = vadd.f32 %v1927, %v1928
      %v1930 = vsel %vm371, %v1862, 0.0
      %v1931 = vadd.f32 %v1929, %v1930
      %v1932 = vsel %vm371, %v1865, 0.0
      %v1933 = vadd.f32 %v1931, %v1932
      %v1934 = vsel %vm371, %v1867, 0.0
      %v1935 = vadd.f32 %v1933, %v1934
      %v1936 = vsel %vm371, %v1870, 0.0
      %v1937 = vadd.f32 %v1935, %v1936
      %v1938 = vsel %vm371, %v1872, 0.0
      %v1939 = vadd.f32 %v1937, %v1938
      %v1940 = vsel %vm371, %v1875, 0.0
      %v1941 = vadd.f32 %v1939, %v1940
      %v1942 = vsel %vm371, %v1877, 0.0
      %v1943 = vadd.f32 %v1941, %v1942
      %v1944 = vsel %vm371, %v1880, 0.0
      %v1945 = vadd.f32 %v1943, %v1944
      %v1946 = vsel %vm371, %v1882, 0.0
      %v1947 = vadd.f32 %v1945, %v1946
      %v1948 = vsel %vm371, %v1885, 0.0
      %v1949 = vadd.f32 %v1947, %v1948
      %v1950 = vsel %vm371, %v1887, 0.0
      %v1951 = vadd.f32 %v1949, %v1950
      %v1952 = vrot.slane %v1951, 4
      %v1953 = vadd.f32 %v1951, %v1952
      %v1954 = vrot.slane %v1953, 2
      %v1955 = vadd.f32 %v1953, %v1954
      %v1956 = vrot.slane %v1955, 1
      %v1957 = vadd.f32 %v1955, %v1956
      %v1958 = vmul.f32 %v1810, %v1810
      %v1959 = vmul.f32 %v1812, %v1812
      %v1960 = vmul.f32 %v1815, %v1815
      %v1961 = vmul.f32 %v1817, %v1817
      %v1962 = vmul.f32 %v1820, %v1820
      %v1963 = vmul.f32 %v1822, %v1822
      %v1964 = vmul.f32 %v1825, %v1825
      %v1965 = vmul.f32 %v1827, %v1827
      %v1966 = vmul.f32 %v1830, %v1830
      %v1967 = vmul.f32 %v1832, %v1832
      %v1968 = vmul.f32 %v1835, %v1835
      %v1969 = vmul.f32 %v1837, %v1837
      %v1970 = vmul.f32 %v1840, %v1840
      %v1971 = vmul.f32 %v1842, %v1842
      %v1972 = vmul.f32 %v1845, %v1845
      %v1973 = vmul.f32 %v1847, %v1847
      %v1974 = vmul.f32 %v1850, %v1850
      %v1975 = vmul.f32 %v1852, %v1852
      %v1976 = vmul.f32 %v1855, %v1855
      %v1977 = vmul.f32 %v1857, %v1857
      %v1978 = vmul.f32 %v1860, %v1860
      %v1979 = vmul.f32 %v1862, %v1862
      %v1980 = vmul.f32 %v1865, %v1865
      %v1981 = vmul.f32 %v1867, %v1867
      %v1982 = vmul.f32 %v1870, %v1870
      %v1983 = vmul.f32 %v1872, %v1872
      %v1984 = vmul.f32 %v1875, %v1875
      %v1985 = vmul.f32 %v1877, %v1877
      %v1986 = vmul.f32 %v1880, %v1880
      %v1987 = vmul.f32 %v1882, %v1882
      %v1988 = vmul.f32 %v1885, %v1885
      %v1989 = vmul.f32 %v1887, %v1887
      %v1990 = vsel %vm371, %v1958, 0.0
      %v1991 = vsel %vm371, %v1959, 0.0
      %v1992 = vadd.f32 %v1990, %v1991
      %v1993 = vsel %vm371, %v1960, 0.0
      %v1994 = vadd.f32 %v1992, %v1993
      %v1995 = vsel %vm371, %v1961, 0.0
      %v1996 = vadd.f32 %v1994, %v1995
      %v1997 = vsel %vm371, %v1962, 0.0
      %v1998 = vadd.f32 %v1996, %v1997
      %v1999 = vsel %vm371, %v1963, 0.0
      %v2000 = vadd.f32 %v1998, %v1999
      %v2001 = vsel %vm371, %v1964, 0.0
      %v2002 = vadd.f32 %v2000, %v2001
      %v2003 = vsel %vm371, %v1965, 0.0
      %v2004 = vadd.f32 %v2002, %v2003
      %v2005 = vsel %vm371, %v1966, 0.0
      %v2006 = vadd.f32 %v2004, %v2005
      %v2007 = vsel %vm371, %v1967, 0.0
      %v2008 = vadd.f32 %v2006, %v2007
      %v2009 = vsel %vm371, %v1968, 0.0
      %v2010 = vadd.f32 %v2008, %v2009
      %v2011 = vsel %vm371, %v1969, 0.0
      %v2012 = vadd.f32 %v2010, %v2011
      %v2013 = vsel %vm371, %v1970, 0.0
      %v2014 = vadd.f32 %v2012, %v2013
      %v2015 = vsel %vm371, %v1971, 0.0
      %v2016 = vadd.f32 %v2014, %v2015
      %v2017 = vsel %vm371, %v1972, 0.0
      %v2018 = vadd.f32 %v2016, %v2017
      %v2019 = vsel %vm371, %v1973, 0.0
      %v2020 = vadd.f32 %v2018, %v2019
      %v2021 = vsel %vm371, %v1974, 0.0
      %v2022 = vadd.f32 %v2020, %v2021
      %v2023 = vsel %vm371, %v1975, 0.0
      %v2024 = vadd.f32 %v2022, %v2023
      %v2025 = vsel %vm371, %v1976, 0.0
      %v2026 = vadd.f32 %v2024, %v2025
      %v2027 = vsel %vm371, %v1977, 0.0
      %v2028 = vadd.f32 %v2026, %v2027
      %v2029 = vsel %vm371, %v1978, 0.0
      %v2030 = vadd.f32 %v2028, %v2029
      %v2031 = vsel %vm371, %v1979, 0.0
      %v2032 = vadd.f32 %v2030, %v2031
      %v2033 = vsel %vm371, %v1980, 0.0
      %v2034 = vadd.f32 %v2032, %v2033
      %v2035 = vsel %vm371, %v1981, 0.0
      %v2036 = vadd.f32 %v2034, %v2035
      %v2037 = vsel %vm371, %v1982, 0.0
      %v2038 = vadd.f32 %v2036, %v2037
      %v2039 = vsel %vm371, %v1983, 0.0
      %v2040 = vadd.f32 %v2038, %v2039
      %v2041 = vsel %vm371, %v1984, 0.0
      %v2042 = vadd.f32 %v2040, %v2041
      %v2043 = vsel %vm371, %v1985, 0.0
      %v2044 = vadd.f32 %v2042, %v2043
      %v2045 = vsel %vm371, %v1986, 0.0
      %v2046 = vadd.f32 %v2044, %v2045
      %v2047 = vsel %vm371, %v1987, 0.0
      %v2048 = vadd.f32 %v2046, %v2047
      %v2049 = vsel %vm371, %v1988, 0.0
      %v2050 = vadd.f32 %v2048, %v2049
      %v2051 = vsel %vm371, %v1989, 0.0
      %v2052 = vadd.f32 %v2050, %v2051
      %v2053 = vrot.slane %v2052, 4
      %v2054 = vadd.f32 %v2052, %v2053
      %v2055 = vrot.slane %v2054, 2
      %v2056 = vadd.f32 %v2054, %v2055
      %v2057 = vrot.slane %v2056, 1
      %v2058 = vadd.f32 %v2056, %v2057
      %2060 = vrot.lane.b32.xlu0 %v2058, 8
      %v2061 = vpop.permute.xlu0 %2060
      %v2063 = vsel %vm371, %v1957, %v2061
      %vm2064 = vcmask 122880
      %2065 = vst.msk [vmem:[%s233] sm:$0x1] %vm2064, %v2063
      %v2066 = vpack.c.bf16 %v1810, %v1810
      %v2067 = vpack.c.bf16 %v1812, %v1812
      %v2068 = vpack.c.bf16 %v1815, %v1815
      %v2069 = vpack.c.bf16 %v1817, %v1817
      %v2070 = vpack.c.bf16 %v1820, %v1820
      %v2071 = vpack.c.bf16 %v1822, %v1822
      %v2072 = vpack.c.bf16 %v1825, %v1825
      %v2073 = vpack.c.bf16 %v1827, %v1827
      %v2074 = vpack.c.bf16 %v1830, %v1830
      %v2075 = vpack.c.bf16 %v1832, %v1832
      %v2076 = vpack.c.bf16 %v1835, %v1835
      %v2077 = vpack.c.bf16 %v1837, %v1837
      %v2078 = vpack.c.bf16 %v1840, %v1840
      %v2079 = vpack.c.bf16 %v1842, %v1842
      %v2080 = vpack.c.bf16 %v1845, %v1845
      %v2081 = vpack.c.bf16 %v1847, %v1847
      %v2082 = vpack.c.bf16 %v1850, %v1850
      %v2083 = vpack.c.bf16 %v1852, %v1852
      %v2084 = vpack.c.bf16 %v1855, %v1855
      %v2085 = vpack.c.bf16 %v1857, %v1857
      %v2086 = vpack.c.bf16 %v1860, %v1860
      %v2087 = vpack.c.bf16 %v1862, %v1862
      %v2088 = vpack.c.bf16 %v1865, %v1865
      %v2089 = vpack.c.bf16 %v1867, %v1867
      %v2090 = vpack.c.bf16 %v1870, %v1870
      %v2091 = vpack.c.bf16 %v1872, %v1872
      %v2092 = vpack.c.bf16 %v1875, %v1875
      %v2093 = vpack.c.bf16 %v1877, %v1877
      %v2094 = vpack.c.bf16 %v1880, %v1880
      %v2095 = vpack.c.bf16 %v1882, %v1882
      %v2096 = vpack.c.bf16 %v1885, %v1885
      %v2097 = vpack.c.bf16 %v1887, %v1887
      %vm2098 = vcmask 60416
      %2099 = vst.msk [vmem:[%s230] sm:$0xf] %vm2098, %v2066
      %2100 = vst.msk [vmem:[%s230 + $0x4] sm:$0xf] %vm2098, %v2067
      %2101 = vst.msk [vmem:[%s230 + $0x8] sm:$0xf] %vm2098, %v2068
      %2102 = vst.msk [vmem:[%s230 + $0xc] sm:$0xf] %vm2098, %v2069
      %2103 = vst.msk [vmem:[%s230 + $0x10] sm:$0xf] %vm2098, %v2070
      %2104 = vst.msk [vmem:[%s230 + $0x14] sm:$0xf] %vm2098, %v2071
      %2105 = vst.msk [vmem:[%s230 + $0x18] sm:$0xf] %vm2098, %v2072
      %2106 = vst.msk [vmem:[%s230 + $0x1c] sm:$0xf] %vm2098, %v2073
      %2107 = vst.msk [vmem:[%s230 + $0x20] sm:$0xf] %vm2098, %v2074
      %2108 = vst.msk [vmem:[%s230 + $0x24] sm:$0xf] %vm2098, %v2075
      %2109 = vst.msk [vmem:[%s230 + $0x28] sm:$0xf] %vm2098, %v2076
      %2110 = vst.msk [vmem:[%s230 + $0x2c] sm:$0xf] %vm2098, %v2077
      %2111 = vst.msk [vmem:[%s230 + $0x30] sm:$0xf] %vm2098, %v2078
      %2112 = vst.msk [vmem:[%s230 + $0x34] sm:$0xf] %vm2098, %v2079
      %2113 = vst.msk [vmem:[%s230 + $0x38] sm:$0xf] %vm2098, %v2080
      %2114 = vst.msk [vmem:[%s230 + $0x3c] sm:$0xf] %vm2098, %v2081
      %2115 = vst.msk [vmem:[%s230 + $0x40] sm:$0xf] %vm2098, %v2082
      %2116 = vst.msk [vmem:[%s230 + $0x44] sm:$0xf] %vm2098, %v2083
      %2117 = vst.msk [vmem:[%s230 + $0x48] sm:$0xf] %vm2098, %v2084
      %2118 = vst.msk [vmem:[%s230 + $0x4c] sm:$0xf] %vm2098, %v2085
      %2119 = vst.msk [vmem:[%s230 + $0x50] sm:$0xf] %vm2098, %v2086
      %2120 = vst.msk [vmem:[%s230 + $0x54] sm:$0xf] %vm2098, %v2087
      %2121 = vst.msk [vmem:[%s230 + $0x58] sm:$0xf] %vm2098, %v2088
      %2122 = vst.msk [vmem:[%s230 + $0x5c] sm:$0xf] %vm2098, %v2089
      %2123 = vst.msk [vmem:[%s230 + $0x60] sm:$0xf] %vm2098, %v2090
      %2124 = vst.msk [vmem:[%s230 + $0x64] sm:$0xf] %vm2098, %v2091
      %2125 = vst.msk [vmem:[%s230 + $0x68] sm:$0xf] %vm2098, %v2092
      %2126 = vst.msk [vmem:[%s230 + $0x6c] sm:$0xf] %vm2098, %v2093
      %2127 = vst.msk [vmem:[%s230 + $0x70] sm:$0xf] %vm2098, %v2094
      %2128 = vst.msk [vmem:[%s230 + $0x74] sm:$0xf] %vm2098, %v2095
      %2129 = vst.msk [vmem:[%s230 + $0x78] sm:$0xf] %vm2098, %v2096
      %2130 = vst.msk [vmem:[%s230 + $0x7c] sm:$0xf] %vm2098, %v2097
      %p2131 = scmp.lt.s32.totalorder %s17, 1
      %s2132 = scalar_select %p2131, %s17, 1
      %s2133 = smul.addr %s2132, 32
      %s2134 = smul.addr %s2133, 4
      %s2135 = scalar_lea.vmem %s4, %s2134
      %p2136 = scmp.lt.s32.totalorder %s17, 1
      %s2137 = scalar_select %p2136, %s17, 1
      %s2138 = scalar_lea.vmem %s5, %s2137
      // Predicated region
      $region37: #{nhlbi_resunet_basic_block_forward.4} parent=35 // pred_check
        %p2139 = pneg %p124
      $region38: #{nhlbi_resunet_basic_block_forward.4} parent=35 // pred_check_branch
        %2141 = sbr.rel (%p2139) target = $region40
      $region39: #{nhlbi_resunet_basic_block_forward.4} parent=35 // pred_region
        _
      $region40: #{nhlbi_resunet_basic_block_forward.4} parent=35 // pred_fallthru
        _
      // Predicated region
      $region41: #{nhlbi_resunet_basic_block_forward.4} parent=35 // pred_check
        %p2142 = pneg %p150
      $region42: #{nhlbi_resunet_basic_block_forward.4} parent=35 // pred_check_branch
        %2144 = sbr.rel (%p2142) target = $region44
      $region43: #{nhlbi_resunet_basic_block_forward.4} parent=35 // pred_region
        _
      $region44: #{nhlbi_resunet_basic_block_forward.4} parent=35 // pred_fallthru
        _
    $region36: #{nhlbi_resunet_basic_block_forward.4} parent=5 // pred_fallthru
      _
    %p2145 = scmp.le.s32.totalorder 2, %s12
    // Predicated region
    $region45: #{nhlbi_resunet_basic_block_forward.4} parent=5 // pred_check
      %p2146 = pneg %p2145
    $region46: #{nhlbi_resunet_basic_block_forward.4} parent=5 // pred_check_branch
      %2148 = sbr.rel (%p2146) target = $region48
    $region47: #{nhlbi_resunet_basic_block_forward.4} parent=5 // pred_region
      %s2149 = ssub.s32 %s12, 2
      // Predicated region
      $region49: #{nhlbi_resunet_basic_block_forward.4} parent=47 // pred_check
        %p2150 = pneg %p130
      $region50: #{nhlbi_resunet_basic_block_forward.4} parent=47 // pred_check_branch
        %2152 = sbr.rel (%p2150) target = $region52
      $region51: #{nhlbi_resunet_basic_block_forward.4} parent=47 // pred_region
        %p2153 = scmp.lt.s32.totalorder %s18, 1
        %s2154 = scalar_select %p2153, %s18, 1
        %s2155 = smul.addr %s2154, 32
        %s2156 = smul.addr %s2155, 4
        %s2157 = scalar_lea.vmem %s4, %s2156
      $region52: #{nhlbi_resunet_basic_block_forward.4} parent=47 // pred_fallthru
        _
      // Predicated region
      $region53: #{nhlbi_resunet_basic_block_forward.4} parent=47 // pred_check
        %p2158 = pneg %p156
      $region54: #{nhlbi_resunet_basic_block_forward.4} parent=47 // pred_check_branch
        %2160 = sbr.rel (%p2158) target = $region56
      $region55: #{nhlbi_resunet_basic_block_forward.4} parent=47 // pred_region
        %p2161 = scmp.lt.s32.totalorder %s18, 1
        %s2162 = scalar_select %p2161, %s18, 1
        %s2163 = scalar_lea.vmem %s5, %s2162
      $region56: #{nhlbi_resunet_basic_block_forward.4} parent=47 // pred_fallthru
        _
    $region48: #{nhlbi_resunet_basic_block_forward.4} parent=5 // pred_fallthru
      _
  $region6: #{nhlbi_resunet_basic_block_forward.4} parent=0 // loop_footer
    %s16 = sadd.s32 1, %s12
  $region7: #{nhlbi_resunet_basic_block_forward.4} parent=0 // loop_footer_branch
    %11 = sbr.rel target = $region3
  $region8: #{nhlbi_resunet_basic_block_forward.4} parent=0 // loop_exit
    _

// kernel: nhlbi_resunet_basic_block_forward.5
$region0: #{nhlbi_resunet_basic_block_forward.5}
  #allocation0 [shape = 'u32[]', space=smem, size = 0x4, offset = 0x4, fixed_abs, tag = 'smem constant byte address 0x4 - core index']
  #allocation1 [shape = 'u32[72,128]{1,0:T(1,128)}', space=vmem, size = 0x9000, scoped, tag = 'internal scratch']
  #allocation2 [shape = 'f32[18,18,8]{2,1,0:T(8,128)}', space=vmem, size = 0x36000, scoped, tag = 'scratch operand']
  %s0 = inlined_call_operand.vmem [shape: bf16[2,16,16,8], index: 0, kind: input, shape index: {}]
  %s1 = inlined_call_operand.vmem [shape: f32[1,8], index: 1, kind: input, shape index: {}]
  %s2 = inlined_call_operand.vmem [shape: f32[1,8], index: 2, kind: input, shape index: {}]
  %s3 = inlined_call_operand.vmem [shape: bf16[72,8], index: 3, kind: input, shape index: {}]
  %s4 = inlined_call_operand.vmem [shape: f32[2,16,16,8], index: 4, kind: input, shape index: {}]
  %s5 = inlined_call_operand.vmem [shape: f32[2,16,16,8], index: 5, kind: output, shape index: {}]
  %s6 = sld [smem:[#allocation0]]
  $region53: #{nhlbi_resunet_basic_block_forward.5} parent=0
    _
  %s8 = ssub.s32 1, %s6
  %s9 = scalar_select 0, %s8, %s6
  loop: start=0, step=1, limit=4
  $region2: #{nhlbi_resunet_basic_block_forward.5} parent=0 // loop_pre_header
    _
  $region3: #{nhlbi_resunet_basic_block_forward.5} parent=0 // loop_header
    %s11 = sphi 0, %s15
    %p12 = scmp.ge.s32.totalorder %s11, 4
    %s21 = sphi 0, %s23
    %s24 = sphi 0, %s21
    %s25 = sphi 0, %s24
    %s41 = sphi 0, %s25
    %s45 = sphi 0, %s45
    %s47 = sphi 0, %s45
    %s48 = sphi 0, %s47
    %s62 = sphi 0, %s48
    %s66 = sphi 0, %s66
    %s68 = sphi 0, %s66
    %s69 = sphi 0, %s68
    %s83 = sphi 0, %s69
    %s87 = sphi 0, %s87
    %s89 = sphi 0, %s87
    %s90 = sphi 0, %s89
    %s104 = sphi 0, %s90
    %s110 = sphi 0, %s112
    %s113 = sphi 0, %s110
    %s114 = sphi 0, %s113
    %s130 = sphi 0, %s114
    %s136 = sphi 0, %s138
    %s139 = sphi 0, %s136
    %s140 = sphi 0, %s139
    %s156 = sphi 0, %s140
  $region4: #{nhlbi_resunet_basic_block_forward.5} parent=0 // loop_header_branch
    %14 = sbr.rel (%p12) target = $region8
  $region5: #{nhlbi_resunet_basic_block_forward.5} parent=0 // loop_body
    %s16 = ssub.s32 %s11, 1
    %s17 = ssub.s32 %s11, 2
    %s18 = sadd.s32 %s11, 1
    %s19 = ssub.s32 %s11, %s18
    %p20 = scmp.eq.s32.totalorder %s19, 0
    %s22 = sadd.s32 %s21, 1
    %s23 = scalar_select %p20, %s21, %s22
    %p26 = pneg %p20
    %p27 = scmp.eq.s32.totalorder %s11, 1
    %p28 = por %p26, %p27
    %p29 = scmp.ne.s32.totalorder %s21, %s24
    %p30 = scmp.eq.s32.totalorder %s11, 0
    %p31 = por %p29, %p30
    %p32 = scmp.ne.s32.totalorder %s21, %s24
    %p33 = scmp.eq.s32.totalorder %s16, 1
    %p34 = por %p32, %p33
    %p35 = scmp.ne.s32.totalorder %s24, %s25
    %p36 = scmp.eq.s32.totalorder %s16, 0
    %p37 = por %p35, %p36
    %p38 = scmp.ne.s32.totalorder %s24, %s25
    %p39 = scmp.eq.s32.totalorder %s17, 1
    %p40 = por %p38, %p39
    %p42 = scmp.ne.s32.totalorder %s25, %s41
    %p43 = scmp.eq.s32.totalorder %s17, 0
    %p44 = por %p42, %p43
    %s46 = sadd.s32 %s45, 1
    %p49 = scmp.eq.s32.totalorder %s11, 1
    %p50 = scmp.ne.s32.totalorder %s45, %s47
    %p51 = scmp.eq.s32.totalorder %s11, 0
    %p52 = por %p50, %p51
    %p53 = scmp.ne.s32.totalorder %s45, %s47
    %p54 = scmp.eq.s32.totalorder %s16, 1
    %p55 = por %p53, %p54
    %p56 = scmp.ne.s32.totalorder %s47, %s48
    %p57 = scmp.eq.s32.totalorder %s16, 0
    %p58 = por %p56, %p57
    %p59 = scmp.ne.s32.totalorder %s47, %s48
    %p60 = scmp.eq.s32.totalorder %s17, 1
    %p61 = por %p59, %p60
    %p63 = scmp.ne.s32.totalorder %s48, %s62
    %p64 = scmp.eq.s32.totalorder %s17, 0
    %p65 = por %p63, %p64
    %s67 = sadd.s32 %s66, 1
    %p70 = scmp.eq.s32.totalorder %s11, 1
    %p71 = scmp.ne.s32.totalorder %s66, %s68
    %p72 = scmp.eq.s32.totalorder %s11, 0
    %p73 = por %p71, %p72
    %p74 = scmp.ne.s32.totalorder %s66, %s68
    %p75 = scmp.eq.s32.totalorder %s16, 1
    %p76 = por %p74, %p75
    %p77 = scmp.ne.s32.totalorder %s68, %s69
    %p78 = scmp.eq.s32.totalorder %s16, 0
    %p79 = por %p77, %p78
    %p80 = scmp.ne.s32.totalorder %s68, %s69
    %p81 = scmp.eq.s32.totalorder %s17, 1
    %p82 = por %p80, %p81
    %p84 = scmp.ne.s32.totalorder %s69, %s83
    %p85 = scmp.eq.s32.totalorder %s17, 0
    %p86 = por %p84, %p85
    %s88 = sadd.s32 %s87, 1
    %p91 = scmp.eq.s32.totalorder %s11, 1
    %p92 = scmp.ne.s32.totalorder %s87, %s89
    %p93 = scmp.eq.s32.totalorder %s11, 0
    %p94 = por %p92, %p93
    %p95 = scmp.ne.s32.totalorder %s87, %s89
    %p96 = scmp.eq.s32.totalorder %s16, 1
    %p97 = por %p95, %p96
    %p98 = scmp.ne.s32.totalorder %s89, %s90
    %p99 = scmp.eq.s32.totalorder %s16, 0
    %p100 = por %p98, %p99
    %p101 = scmp.ne.s32.totalorder %s89, %s90
    %p102 = scmp.eq.s32.totalorder %s17, 1
    %p103 = por %p101, %p102
    %p105 = scmp.ne.s32.totalorder %s90, %s104
    %p106 = scmp.eq.s32.totalorder %s17, 0
    %p107 = por %p105, %p106
    %s108 = ssub.s32 %s11, %s18
    %p109 = scmp.eq.s32.totalorder %s108, 0
    %s111 = sadd.s32 %s110, 1
    %s112 = scalar_select %p109, %s110, %s111
    %p115 = pneg %p109
    %p116 = scmp.eq.s32.totalorder %s11, 1
    %p117 = por %p115, %p116
    %p118 = scmp.ne.s32.totalorder %s110, %s113
    %p119 = scmp.eq.s32.totalorder %s11, 0
    %p120 = por %p118, %p119
    %p121 = scmp.ne.s32.totalorder %s110, %s113
    %p122 = scmp.eq.s32.totalorder %s16, 1
    %p123 = por %p121, %p122
    %p124 = scmp.ne.s32.totalorder %s113, %s114
    %p125 = scmp.eq.s32.totalorder %s16, 0
    %p126 = por %p124, %p125
    %p127 = scmp.ne.s32.totalorder %s113, %s114
    %p128 = scmp.eq.s32.totalorder %s17, 1
    %p129 = por %p127, %p128
    %p131 = scmp.ne.s32.totalorder %s114, %s130
    %p132 = scmp.eq.s32.totalorder %s17, 0
    %p133 = por %p131, %p132
    %s134 = ssub.s32 %s11, %s18
    %p135 = scmp.eq.s32.totalorder %s134, 0
    %s137 = sadd.s32 %s136, 1
    %s138 = scalar_select %p135, %s136, %s137
    %p141 = pneg %p135
    %p142 = scmp.eq.s32.totalorder %s11, 1
    %p143 = por %p141, %p142
    %p144 = scmp.ne.s32.totalorder %s136, %s139
    %p145 = scmp.eq.s32.totalorder %s11, 0
    %p146 = por %p144, %p145
    %p147 = scmp.ne.s32.totalorder %s136, %s139
    %p148 = scmp.eq.s32.totalorder %s16, 1
    %p149 = por %p147, %p148
    %p150 = scmp.ne.s32.totalorder %s139, %s140
    %p151 = scmp.eq.s32.totalorder %s16, 0
    %p152 = por %p150, %p151
    %p153 = scmp.ne.s32.totalorder %s139, %s140
    %p154 = scmp.eq.s32.totalorder %s17, 1
    %p155 = por %p153, %p154
    %p157 = scmp.ne.s32.totalorder %s140, %s156
    %p158 = scmp.eq.s32.totalorder %s17, 0
    %p159 = por %p157, %p158
    %p160 = scmp.le.s32.totalorder 1, %s11
    %p161 = scmp.lt.s32.totalorder %s11, 3
    %p162 = pnand %p160, %p161
    %p163 = pneg %p162
    // Predicated region
    $region9: #{nhlbi_resunet_basic_block_forward.5} parent=5 // pred_check
      _
    $region10: #{nhlbi_resunet_basic_block_forward.5} parent=5 // pred_check_branch
      %165 = sbr.rel (%p162) target = $region12
    $region11: #{nhlbi_resunet_basic_block_forward.5} parent=5 // pred_region
      %s166 = ssub.s32 %s11, 1
      // Predicated region
      $region13: #{nhlbi_resunet_basic_block_forward.5} parent=11 // pred_check
        %p167 = pneg %p58
      $region14: #{nhlbi_resunet_basic_block_forward.5} parent=11 // pred_check_branch
        %169 = sbr.rel (%p167) target = $region16
      $region15: #{nhlbi_resunet_basic_block_forward.5} parent=11 // pred_region
        _
      $region16: #{nhlbi_resunet_basic_block_forward.5} parent=11 // pred_fallthru
        _
      // Predicated region
      $region17: #{nhlbi_resunet_basic_block_forward.5} parent=11 // pred_check
        %p170 = pneg %p79
      $region18: #{nhlbi_resunet_basic_block_forward.5} parent=11 // pred_check_branch
        %172 = sbr.rel (%p170) target = $region20
      $region19: #{nhlbi_resunet_basic_block_forward.5} parent=11 // pred_region
        _
      $region20: #{nhlbi_resunet_basic_block_forward.5} parent=11 // pred_fallthru
        _
      // Predicated region
      $region21: #{nhlbi_resunet_basic_block_forward.5} parent=11 // pred_check
        %p173 = pneg %p100
      $region22: #{nhlbi_resunet_basic_block_forward.5} parent=11 // pred_check_branch
        %175 = sbr.rel (%p173) target = $region24
      $region23: #{nhlbi_resunet_basic_block_forward.5} parent=11 // pred_region
        _
      $region24: #{nhlbi_resunet_basic_block_forward.5} parent=11 // pred_fallthru
        _
    $region12: #{nhlbi_resunet_basic_block_forward.5} parent=5 // pred_fallthru
      _
    %p176 = scmp.lt.s32.totalorder %s11, 2
    // Predicated region
    $region25: #{nhlbi_resunet_basic_block_forward.5} parent=5 // pred_check
      %p177 = pneg %p176
    $region26: #{nhlbi_resunet_basic_block_forward.5} parent=5 // pred_check_branch
      %179 = sbr.rel (%p177) target = $region28
    $region27: #{nhlbi_resunet_basic_block_forward.5} parent=5 // pred_region
      // Predicated region
      $region29: #{nhlbi_resunet_basic_block_forward.5} parent=27 // pred_check
        %p180 = pneg %p31
      $region30: #{nhlbi_resunet_basic_block_forward.5} parent=27 // pred_check_branch
        %182 = sbr.rel (%p180) target = $region32
      $region31: #{nhlbi_resunet_basic_block_forward.5} parent=27 // pred_region
        %p183 = scmp.lt.s32.totalorder %s11, 1
        %s184 = scalar_select %p183, %s11, 1
        %s185 = smul.addr %s184, 32
        %s186 = smul.addr %s185, 4
        %s187 = scalar_lea.vmem %s0, %s186
      $region32: #{nhlbi_resunet_basic_block_forward.5} parent=27 // pred_fallthru
        _
      // Predicated region
      $region33: #{nhlbi_resunet_basic_block_forward.5} parent=27 // pred_check
        %p188 = pneg %p120
      $region34: #{nhlbi_resunet_basic_block_forward.5} parent=27 // pred_check_branch
        %190 = sbr.rel (%p188) target = $region36
      $region35: #{nhlbi_resunet_basic_block_forward.5} parent=27 // pred_region
        %p191 = scmp.lt.s32.totalorder %s11, 1
        %s192 = scalar_select %p191, %s11, 1
        %s193 = smul.addr %s192, 32
        %s194 = smul.addr %s193, 8
        %s195 = scalar_lea.vmem %s4, %s194
      $region36: #{nhlbi_resunet_basic_block_forward.5} parent=27 // pred_fallthru
        _
    $region28: #{nhlbi_resunet_basic_block_forward.5} parent=5 // pred_fallthru
      _
    %p196 = scmp.le.s32.totalorder 1, %s11
    %p197 = scmp.lt.s32.totalorder %s11, 3
    %p198 = pnand %p196, %p197
    %p199 = pneg %p198
    // Predicated region
    $region37: #{nhlbi_resunet_basic_block_forward.5} parent=5 // pred_check
      _
    $region38: #{nhlbi_resunet_basic_block_forward.5} parent=5 // pred_check_branch
      %201 = sbr.rel (%p198) target = $region40
    $region39: #{nhlbi_resunet_basic_block_forward.5} parent=5 // pred_region
      %s202 = ssub.s32 %s11, 1
      %p203 = scmp.lt.s32.totalorder %s16, 1
      %s204 = scalar_select %p203, %s16, 1
      %s205 = smul.addr %s204, 32
      %s206 = smul.addr %s205, 4
      %s207 = scalar_lea.vmem %s0, %s206
      %p208 = pneg %p37
      %p209 = pneg %p34
      %p210 = pneg %p58
      %p211 = pneg %p55
      %p212 = pneg %p79
      %p213 = pneg %p76
      %p214 = pneg %p100
      %p215 = pneg %p97
      %p216 = scmp.lt.s32.totalorder %s16, 1
      %s217 = scalar_select %p216, %s16, 1
      %s218 = smul.addr %s217, 32
      %s219 = smul.addr %s218, 8
      %s220 = scalar_lea.vmem %s4, %s219
      %p221 = pneg %p126
      %p222 = pneg %p123
      %p223 = pneg %p152
      %p224 = pneg %p149
      %p225 = scmp.lt.s32.totalorder %s16, 1
      %s226 = scalar_select %p225, %s16, 1
      %s227 = smul.addr %s226, 32
      %s228 = smul.addr %s227, 8
      %s229 = scalar_lea.vmem %s5, %s228
      %p230 = scmp.lt.s32.totalorder %s16, 1
      %s231 = scalar_select %p230, %s16, 1
      %s232 = smul.addr %s231, 32
      %s233 = smul.addr %s232, 4
      %s234 = scalar_lea.vmem %s0, %s233
      %p235 = scmp.lt.s32.totalorder %s16, 1
      %s236 = scalar_select %p235, %s16, 1
      %s237 = smul.addr %s236, 32
      %s238 = smul.addr %s237, 8
      %s239 = scalar_lea.vmem %s4, %s238
      %p240 = scmp.lt.s32.totalorder %s16, 1
      %s241 = scalar_select %p240, %s16, 1
      %s242 = smul.addr %s241, 32
      %s243 = smul.addr %s242, 8
      %s244 = scalar_lea.vmem %s5, %s243
      %v246 = vld [vmem:[%s234] sm:$0xf]
      %v247 = vld [vmem:[%s234 + $0x4] sm:$0xf]
      %v248 = vld [vmem:[%s234 + $0x8] sm:$0xf]
      %v249 = vld [vmem:[%s234 + $0xc] sm:$0xf]
      %v250 = vld [vmem:[%s234 + $0x10] sm:$0xf]
      %v251 = vld [vmem:[%s234 + $0x14] sm:$0xf]
      %v252 = vld [vmem:[%s234 + $0x18] sm:$0xf]
      %v253 = vld [vmem:[%s234 + $0x1c] sm:$0xf]
      %v254 = vld [vmem:[%s234 + $0x20] sm:$0xf]
      %v255 = vld [vmem:[%s234 + $0x24] sm:$0xf]
      %v256 = vld [vmem:[%s234 + $0x28] sm:$0xf]
      %v257 = vld [vmem:[%s234 + $0x2c] sm:$0xf]
      %v258 = vld [vmem:[%s234 + $0x30] sm:$0xf]
      %v259 = vld [vmem:[%s234 + $0x34] sm:$0xf]
      %v260 = vld [vmem:[%s234 + $0x38] sm:$0xf]
      %v261 = vld [vmem:[%s234 + $0x3c] sm:$0xf]
      %v262 = vld [vmem:[%s234 + $0x40] sm:$0xf]
      %v263 = vld [vmem:[%s234 + $0x44] sm:$0xf]
      %v264 = vld [vmem:[%s234 + $0x48] sm:$0xf]
      %v265 = vld [vmem:[%s234 + $0x4c] sm:$0xf]
      %v266 = vld [vmem:[%s234 + $0x50] sm:$0xf]
      %v267 = vld [vmem:[%s234 + $0x54] sm:$0xf]
      %v268 = vld [vmem:[%s234 + $0x58] sm:$0xf]
      %v269 = vld [vmem:[%s234 + $0x5c] sm:$0xf]
      %v270 = vld [vmem:[%s234 + $0x60] sm:$0xf]
      %v271 = vld [vmem:[%s234 + $0x64] sm:$0xf]
      %v272 = vld [vmem:[%s234 + $0x68] sm:$0xf]
      %v273 = vld [vmem:[%s234 + $0x6c] sm:$0xf]
      %v274 = vld [vmem:[%s234 + $0x70] sm:$0xf]
      %v275 = vld [vmem:[%s234 + $0x74] sm:$0xf]
      %v276 = vld [vmem:[%s234 + $0x78] sm:$0xf]
      %v277 = vld [vmem:[%s234 + $0x7c] sm:$0xf]
      %v278 = vunpack.c.l.bf16 %v246
      %v279 = vunpack.c.l.bf16 %v247
      %v280 = vunpack.c.l.bf16 %v248
      %v281 = vunpack.c.l.bf16 %v249
      %v282 = vunpack.c.l.bf16 %v250
      %v283 = vunpack.c.l.bf16 %v251
      %v284 = vunpack.c.l.bf16 %v252
      %v285 = vunpack.c.l.bf16 %v253
      %v286 = vunpack.c.l.bf16 %v254
      %v287 = vunpack.c.l.bf16 %v255
      %v288 = vunpack.c.l.bf16 %v256
      %v289 = vunpack.c.l.bf16 %v257
      %v290 = vunpack.c.l.bf16 %v258
      %v291 = vunpack.c.l.bf16 %v259
      %v292 = vunpack.c.l.bf16 %v260
      %v293 = vunpack.c.l.bf16 %v261
      %v294 = vunpack.c.l.bf16 %v262
      %v295 = vunpack.c.l.bf16 %v263
      %v296 = vunpack.c.l.bf16 %v264
      %v297 = vunpack.c.l.bf16 %v265
      %v298 = vunpack.c.l.bf16 %v266
      %v299 = vunpack.c.l.bf16 %v267
      %v300 = vunpack.c.l.bf16 %v268
      %v301 = vunpack.c.l.bf16 %v269
      %v302 = vunpack.c.l.bf16 %v270
      %v303 = vunpack.c.l.bf16 %v271
      %v304 = vunpack.c.l.bf16 %v272
      %v305 = vunpack.c.l.bf16 %v273
      %v306 = vunpack.c.l.bf16 %v274
      %v307 = vunpack.c.l.bf16 %v275
      %v308 = vunpack.c.l.bf16 %v276
      %v309 = vunpack.c.l.bf16 %v277
      %v310 = vld [vmem:[%s1] sm:$0x1]
      %v312 = vperm.slane %v310, 0
      %v314 = vmul.f32 %v278, %v312
      %v315 = vmul.f32 %v279, %v312
      %v316 = vmul.f32 %v280, %v312
      %v317 = vmul.f32 %v281, %v312
      %v318 = vmul.f32 %v282, %v312
      %v319 = vmul.f32 %v283, %v312
      %v320 = vmul.f32 %v284, %v312
      %v321 = vmul.f32 %v285, %v312
      %v322 = vmul.f32 %v286, %v312
      %v323 = vmul.f32 %v287, %v312
      %v324 = vmul.f32 %v288, %v312
      %v325 = vmul.f32 %v289, %v312
      %v326 = vmul.f32 %v290, %v312
      %v327 = vmul.f32 %v291, %v312
      %v328 = vmul.f32 %v292, %v312
      %v329 = vmul.f32 %v293, %v312
      %v330 = vmul.f32 %v294, %v312
      %v331 = vmul.f32 %v295, %v312
      %v332 = vmul.f32 %v296, %v312
      %v333 = vmul.f32 %v297, %v312
      %v334 = vmul.f32 %v298, %v312
      %v335 = vmul.f32 %v299, %v312
      %v336 = vmul.f32 %v300, %v312
      %v337 = vmul.f32 %v301, %v312
      %v338 = vmul.f32 %v302, %v312
      %v339 = vmul.f32 %v303, %v312
      %v340 = vmul.f32 %v304, %v312
      %v341 = vmul.f32 %v305, %v312
      %v342 = vmul.f32 %v306, %v312
      %v343 = vmul.f32 %v307, %v312
      %v344 = vmul.f32 %v308, %v312
      %v345 = vmul.f32 %v309, %v312
      %v346 = vld [vmem:[%s2] sm:$0x1]
      %v348 = vperm.slane %v346, 0
      %v350 = vadd.f32 %v314, %v348
      %v351 = vadd.f32 %v315, %v348
      %v352 = vadd.f32 %v316, %v348
      %v353 = vadd.f32 %v317, %v348
      %v354 = vadd.f32 %v318, %v348
      %v355 = vadd.f32 %v319, %v348
      %v356 = vadd.f32 %v320, %v348
      %v357 = vadd.f32 %v321, %v348
      %v358 = vadd.f32 %v322, %v348
      %v359 = vadd.f32 %v323, %v348
      %v360 = vadd.f32 %v324, %v348
      %v361 = vadd.f32 %v325, %v348
      %v362 = vadd.f32 %v326, %v348
      %v363 = vadd.f32 %v327, %v348
      %v364 = vadd.f32 %v328, %v348
      %v365 = vadd.f32 %v329, %v348
      %v366 = vadd.f32 %v330, %v348
      %v367 = vadd.f32 %v331, %v348
      %v368 = vadd.f32 %v332, %v348
      %v369 = vadd.f32 %v333, %v348
      %v370 = vadd.f32 %v334, %v348
      %v371 = vadd.f32 %v335, %v348
      %v372 = vadd.f32 %v336, %v348
      %v373 = vadd.f32 %v337, %v348
      %v374 = vadd.f32 %v338, %v348
      %v375 = vadd.f32 %v339, %v348
      %v376 = vadd.f32 %v340, %v348
      %v377 = vadd.f32 %v341, %v348
      %v378 = vadd.f32 %v342, %v348
      %v379 = vadd.f32 %v343, %v348
      %v380 = vadd.f32 %v344, %v348
      %v381 = vadd.f32 %v345, %v348
      %v382 = vmax.f32 %v350, 0.0
      %v383 = vmax.f32 %v351, 0.0
      %v384 = vmax.f32 %v352, 0.0
      %v385 = vmax.f32 %v353, 0.0
      %v386 = vmax.f32 %v354, 0.0
      %v387 = vmax.f32 %v355, 0.0
      %v388 = vmax.f32 %v356, 0.0
      %v389 = vmax.f32 %v357, 0.0
      %v390 = vmax.f32 %v358, 0.0
      %v391 = vmax.f32 %v359, 0.0
      %v392 = vmax.f32 %v360, 0.0
      %v393 = vmax.f32 %v361, 0.0
      %v394 = vmax.f32 %v362, 0.0
      %v395 = vmax.f32 %v363, 0.0
      %v396 = vmax.f32 %v364, 0.0
      %v397 = vmax.f32 %v365, 0.0
      %v398 = vmax.f32 %v366, 0.0
      %v399 = vmax.f32 %v367, 0.0
      %v400 = vmax.f32 %v368, 0.0
      %v401 = vmax.f32 %v369, 0.0
      %v402 = vmax.f32 %v370, 0.0
      %v403 = vmax.f32 %v371, 0.0
      %v404 = vmax.f32 %v372, 0.0
      %v405 = vmax.f32 %v373, 0.0
      %v406 = vmax.f32 %v374, 0.0
      %v407 = vmax.f32 %v375, 0.0
      %v408 = vmax.f32 %v376, 0.0
      %v409 = vmax.f32 %v377, 0.0
      %v410 = vmax.f32 %v378, 0.0
      %v411 = vmax.f32 %v379, 0.0
      %v412 = vmax.f32 %v380, 0.0
      %v413 = vmax.f32 %v381, 0.0
      %vm414 = vcmask 64512
      %415 = vst.msk [vmem:[#allocation2] sm:$0xff] %vm414, 0.0
      %416 = vst.msk [vmem:[#allocation2 + $0x8] sm:$0xff] %vm414, 0.0
      %vm417 = vcmask 58368
      %418 = vst.msk [vmem:[#allocation2 + $0x10] sm:$0x3] %vm417, 0.0
      %s419 = scalar_lea.vmem [#allocation2], 408
      %420 = vst.msk [vmem:[%s419] sm:$0xff] %vm414, 0.0
      %421 = vst.msk [vmem:[%s419 + $0x8] sm:$0xff] %vm414, 0.0
      %422 = vst.msk [vmem:[%s419 + $0x10] sm:$0x3] %vm417, 0.0
      %vm423 = vcmask 57344
      %424 = vst.msk [vmem:[#allocation2] sm:$0x1] %vm423, 0.0
      %425 = vst.msk [vmem:[#allocation2 + $0x18] sm:$0x1] %vm423, 0.0
      %426 = vst.msk [vmem:[#allocation2 + $0x30] sm:$0x1] %vm423, 0.0
      %427 = vst.msk [vmem:[#allocation2 + $0x48] sm:$0x1] %vm423, 0.0
      %428 = vst.msk [vmem:[#allocation2 + $0x60] sm:$0x1] %vm423, 0.0
      %429 = vst.msk [vmem:[#allocation2 + $0x78] sm:$0x1] %vm423, 0.0
      %430 = vst.msk [vmem:[#allocation2 + $0x90] sm:$0x1] %vm423, 0.0
      %431 = vst.msk [vmem:[#allocation2 + $0xa8] sm:$0x1] %vm423, 0.0
      %432 = vst.msk [vmem:[#allocation2 + $0xc0] sm:$0x1] %vm423, 0.0
      %433 = vst.msk [vmem:[#allocation2 + $0xd8] sm:$0x1] %vm423, 0.0
      %434 = vst.msk [vmem:[#allocation2 + $0xf0] sm:$0x1] %vm423, 0.0
      %435 = vst.msk [vmem:[#allocation2 + $0x108] sm:$0x1] %vm423, 0.0
      %436 = vst.msk [vmem:[#allocation2 + $0x120] sm:$0x1] %vm423, 0.0
      %437 = vst.msk [vmem:[#allocation2 + $0x138] sm:$0x1] %vm423, 0.0
      %438 = vst.msk [vmem:[#allocation2 + $0x150] sm:$0x1] %vm423, 0.0
      %439 = vst.msk [vmem:[#allocation2 + $0x168] sm:$0x1] %vm423, 0.0
      %440 = vst.msk [vmem:[#allocation2 + $0x180] sm:$0x1] %vm423, 0.0
      %441 = vst.msk [vmem:[#allocation2 + $0x198] sm:$0x1] %vm423, 0.0
      %442 = vst.msk [vmem:[#allocation2 + $0x11] sm:$0x1] %vm423, 0.0
      %443 = vst.msk [vmem:[#allocation2 + $0x29] sm:$0x1] %vm423, 0.0
      %444 = vst.msk [vmem:[#allocation2 + $0x41] sm:$0x1] %vm423, 0.0
      %445 = vst.msk [vmem:[#allocation2 + $0x59] sm:$0x1] %vm423, 0.0
      %446 = vst.msk [vmem:[#allocation2 + $0x71] sm:$0x1] %vm423, 0.0
      %447 = vst.msk [vmem:[#allocation2 + $0x89] sm:$0x1] %vm423, 0.0
      %448 = vst.msk [vmem:[#allocation2 + $0xa1] sm:$0x1] %vm423, 0.0
      %449 = vst.msk [vmem:[#allocation2 + $0xb9] sm:$0x1] %vm423, 0.0
      %450 = vst.msk [vmem:[#allocation2 + $0xd1] sm:$0x1] %vm423, 0.0
      %451 = vst.msk [vmem:[#allocation2 + $0xe9] sm:$0x1] %vm423, 0.0
      %452 = vst.msk [vmem:[#allocation2 + $0x101] sm:$0x1] %vm423, 0.0
      %453 = vst.msk [vmem:[#allocation2 + $0x119] sm:$0x1] %vm423, 0.0
      %454 = vst.msk [vmem:[#allocation2 + $0x131] sm:$0x1] %vm423, 0.0
      %455 = vst.msk [vmem:[#allocation2 + $0x149] sm:$0x1] %vm423, 0.0
      %456 = vst.msk [vmem:[#allocation2 + $0x161] sm:$0x1] %vm423, 0.0
      %457 = vst.msk [vmem:[#allocation2 + $0x179] sm:$0x1] %vm423, 0.0
      %458 = vst.msk [vmem:[#allocation2 + $0x191] sm:$0x1] %vm423, 0.0
      %459 = vst.msk [vmem:[#allocation2 + $0x1a9] sm:$0x1] %vm423, 0.0
      %s460 = scalar_lea.vmem [#allocation2], 24
      %461 = vst.msk [vmem:[%s460 + $0x1] sm:$0xff] %vm414, %v382
      %462 = vst.msk [vmem:[%s460 + $0x9] sm:$0xff] %vm414, %v383
      %463 = vst.msk [vmem:[%s460 + $0x19] sm:$0xff] %vm414, %v384
      %464 = vst.msk [vmem:[%s460 + $0x21] sm:$0xff] %vm414, %v385
      %465 = vst.msk [vmem:[%s460 + $0x31] sm:$0xff] %vm414, %v386
      %466 = vst.msk [vmem:[%s460 + $0x39] sm:$0xff] %vm414, %v387
      %467 = vst.msk [vmem:[%s460 + $0x49] sm:$0xff] %vm414, %v388
      %468 = vst.msk [vmem:[%s460 + $0x51] sm:$0xff] %vm414, %v389
      %469 = vst.msk [vmem:[%s460 + $0x61] sm:$0xff] %vm414, %v390
      %470 = vst.msk [vmem:[%s460 + $0x69] sm:$0xff] %vm414, %v391
      %471 = vst.msk [vmem:[%s460 + $0x79] sm:$0xff] %vm414, %v392
      %472 = vst.msk [vmem:[%s460 + $0x81] sm:$0xff] %vm414, %v393
      %473 = vst.msk [vmem:[%s460 + $0x91] sm:$0xff] %vm414, %v394
      %474 = vst.msk [vmem:[%s460 + $0x99] sm:$0xff] %vm414, %v395
      %475 = vst.msk [vmem:[%s460 + $0xa9] sm:$0xff] %vm414, %v396
      %476 = vst.msk [vmem:[%s460 + $0xb1] sm:$0xff] %vm414, %v397
      %477 = vst.msk [vmem:[%s460 + $0xc1] sm:$0xff] %vm414, %v398
      %478 = vst.msk [vmem:[%s460 + $0xc9] sm:$0xff] %vm414, %v399
      %479 = vst.msk [vmem:[%s460 + $0xd9] sm:$0xff] %vm414, %v400
      %480 = vst.msk [vmem:[%s460 + $0xe1] sm:$0xff] %vm414, %v401
      %481 = vst.msk [vmem:[%s460 + $0xf1] sm:$0xff] %vm414, %v402
      %482 = vst.msk [vmem:[%s460 + $0xf9] sm:$0xff] %vm414, %v403
      %483 = vst.msk [vmem:[%s460 + $0x109] sm:$0xff] %vm414, %v404
      %484 = vst.msk [vmem:[%s460 + $0x111] sm:$0xff] %vm414, %v405
      %485 = vst.msk [vmem:[%s460 + $0x121] sm:$0xff] %vm414, %v406
      %486 = vst.msk [vmem:[%s460 + $0x129] sm:$0xff] %vm414, %v407
      %487 = vst.msk [vmem:[%s460 + $0x139] sm:$0xff] %vm414, %v408
      %488 = vst.msk [vmem:[%s460 + $0x141] sm:$0xff] %vm414, %v409
      %489 = vst.msk [vmem:[%s460 + $0x151] sm:$0xff] %vm414, %v410
      %490 = vst.msk [vmem:[%s460 + $0x159] sm:$0xff] %vm414, %v411
      %491 = vst.msk [vmem:[%s460 + $0x169] sm:$0xff] %vm414, %v412
      %492 = vst.msk [vmem:[%s460 + $0x171] sm:$0xff] %vm414, %v413
      %v493 = vld [vmem:[#allocation2] sm:$0xff]
      %v494 = vld [vmem:[#allocation2 + $0x8] sm:$0xff]
      %v495 = vld [vmem:[#allocation2 + $0x18] sm:$0xff]
      %v496 = vld [vmem:[#allocation2 + $0x20] sm:$0xff]
      %v497 = vld [vmem:[#allocation2 + $0x30] sm:$0xff]
      %v498 = vld [vmem:[#allocation2 + $0x38] sm:$0xff]
      %v499 = vld [vmem:[#allocation2 + $0x48] sm:$0xff]
      %v500 = vld [vmem:[#allocation2 + $0x50] sm:$0xff]
      %v501 = vld [vmem:[#allocation2 + $0x60] sm:$0xff]
      %v502 = vld [vmem:[#allocation2 + $0x68] sm:$0xff]
      %v503 = vld [vmem:[#allocation2 + $0x78] sm:$0xff]
      %v504 = vld [vmem:[#allocation2 + $0x80] sm:$0xff]
      %v505 = vld [vmem:[#allocation2 + $0x90] sm:$0xff]
      %v506 = vld [vmem:[#allocation2 + $0x98] sm:$0xff]
      %v507 = vld [vmem:[#allocation2 + $0xa8] sm:$0xff]
      %v508 = vld [vmem:[#allocation2 + $0xb0] sm:$0xff]
      %v509 = vld [vmem:[#allocation2 + $0xc0] sm:$0xff]
      %v510 = vld [vmem:[#allocation2 + $0xc8] sm:$0xff]
      %v511 = vld [vmem:[#allocation2 + $0xd8] sm:$0xff]
      %v512 = vld [vmem:[#allocation2 + $0xe0] sm:$0xff]
      %v513 = vld [vmem:[#allocation2 + $0xf0] sm:$0xff]
      %v514 = vld [vmem:[#allocation2 + $0xf8] sm:$0xff]
      %v515 = vld [vmem:[#allocation2 + $0x108] sm:$0xff]
      %v516 = vld [vmem:[#allocation2 + $0x110] sm:$0xff]
      %v517 = vld [vmem:[#allocation2 + $0x120] sm:$0xff]
      %v518 = vld [vmem:[#allocation2 + $0x128] sm:$0xff]
      %v519 = vld [vmem:[#allocation2 + $0x138] sm:$0xff]
      %v520 = vld [vmem:[#allocation2 + $0x140] sm:$0xff]
      %v521 = vld [vmem:[#allocation2 + $0x150] sm:$0xff]
      %v522 = vld [vmem:[#allocation2 + $0x158] sm:$0xff]
      %v523 = vld [vmem:[#allocation2 + $0x168] sm:$0xff]
      %v524 = vld [vmem:[#allocation2 + $0x170] sm:$0xff]
      %v525 = vld [vmem:[#allocation2 + $0x180] sm:$0xff]
      %v526 = vld [vmem:[#allocation2 + $0x188] sm:$0xff]
      %v527 = vld [vmem:[#allocation2 + $0x198] sm:$0xff]
      %v528 = vld [vmem:[#allocation2 + $0x1a0] sm:$0xff]
      %v529 = vld [vmem:[#allocation2 + $0x1] sm:$0xff]
      %v530 = vld [vmem:[#allocation2 + $0x9] sm:$0xff]
      %v531 = vld [vmem:[#allocation2 + $0x19] sm:$0xff]
      %v532 = vld [vmem:[#allocation2 + $0x21] sm:$0xff]
      %v533 = vld [vmem:[#allocation2 + $0x31] sm:$0xff]
      %v534 = vld [vmem:[#allocation2 + $0x39] sm:$0xff]
      %v535 = vld [vmem:[#allocation2 + $0x49] sm:$0xff]
      %v536 = vld [vmem:[#allocation2 + $0x51] sm:$0xff]
      %v537 = vld [vmem:[#allocation2 + $0x61] sm:$0xff]
      %v538 = vld [vmem:[#allocation2 + $0x69] sm:$0xff]
      %v539 = vld [vmem:[#allocation2 + $0x79] sm:$0xff]
      %v540 = vld [vmem:[#allocation2 + $0x81] sm:$0xff]
      %v541 = vld [vmem:[#allocation2 + $0x91] sm:$0xff]
      %v542 = vld [vmem:[#allocation2 + $0x99] sm:$0xff]
      %v543 = vld [vmem:[#allocation2 + $0xa9] sm:$0xff]
      %v544 = vld [vmem:[#allocation2 + $0xb1] sm:$0xff]
      %v545 = vld [vmem:[#allocation2 + $0xc1] sm:$0xff]
      %v546 = vld [vmem:[#allocation2 + $0xc9] sm:$0xff]
      %v547 = vld [vmem:[#allocation2 + $0xd9] sm:$0xff]
      %v548 = vld [vmem:[#allocation2 + $0xe1] sm:$0xff]
      %v549 = vld [vmem:[#allocation2 + $0xf1] sm:$0xff]
      %v550 = vld [vmem:[#allocation2 + $0xf9] sm:$0xff]
      %v551 = vld [vmem:[#allocation2 + $0x109] sm:$0xff]
      %v552 = vld [vmem:[#allocation2 + $0x111] sm:$0xff]
      %v553 = vld [vmem:[#allocation2 + $0x121] sm:$0xff]
      %v554 = vld [vmem:[#allocation2 + $0x129] sm:$0xff]
      %v555 = vld [vmem:[#allocation2 + $0x139] sm:$0xff]
      %v556 = vld [vmem:[#allocation2 + $0x141] sm:$0xff]
      %v557 = vld [vmem:[#allocation2 + $0x151] sm:$0xff]
      %v558 = vld [vmem:[#allocation2 + $0x159] sm:$0xff]
      %v559 = vld [vmem:[#allocation2 + $0x169] sm:$0xff]
      %v560 = vld [vmem:[#allocation2 + $0x171] sm:$0xff]
      %v561 = vld [vmem:[#allocation2 + $0x181] sm:$0xff]
      %v562 = vld [vmem:[#allocation2 + $0x189] sm:$0xff]
      %v563 = vld [vmem:[#allocation2 + $0x199] sm:$0xff]
      %v564 = vld [vmem:[#allocation2 + $0x1a1] sm:$0xff]
      %v565 = vld [vmem:[#allocation2 + $0x2] sm:$0xff]
      %v566 = vld [vmem:[#allocation2 + $0xa] sm:$0xff]
      %v567 = vld [vmem:[#allocation2 + $0x1a] sm:$0xff]
      %v568 = vld [vmem:[#allocation2 + $0x22] sm:$0xff]
      %v569 = vld [vmem:[#allocation2 + $0x32] sm:$0xff]
      %v570 = vld [vmem:[#allocation2 + $0x3a] sm:$0xff]
      %v571 = vld [vmem:[#allocation2 + $0x4a] sm:$0xff]
      %v572 = vld [vmem:[#allocation2 + $0x52] sm:$0xff]
      %v573 = vld [vmem:[#allocation2 + $0x62] sm:$0xff]
      %v574 = vld [vmem:[#allocation2 + $0x6a] sm:$0xff]
      %v575 = vld [vmem:[#allocation2 + $0x7a] sm:$0xff]
      %v576 = vld [vmem:[#allocation2 + $0x82] sm:$0xff]
      %v577 = vld [vmem:[#allocation2 + $0x92] sm:$0xff]
      %v578 = vld [vmem:[#allocation2 + $0x9a] sm:$0xff]
      %v579 = vld [vmem:[#allocation2 + $0xaa] sm:$0xff]
      %v580 = vld [vmem:[#allocation2 + $0xb2] sm:$0xff]
      %v581 = vld [vmem:[#allocation2 + $0xc2] sm:$0xff]
      %v582 = vld [vmem:[#allocation2 + $0xca] sm:$0xff]
      %v583 = vld [vmem:[#allocation2 + $0xda] sm:$0xff]
      %v584 = vld [vmem:[#allocation2 + $0xe2] sm:$0xff]
      %v585 = vld [vmem:[#allocation2 + $0xf2] sm:$0xff]
      %v586 = vld [vmem:[#allocation2 + $0xfa] sm:$0xff]
      %v587 = vld [vmem:[#allocation2 + $0x10a] sm:$0xff]
      %v588 = vld [vmem:[#allocation2 + $0x112] sm:$0xff]
      %v589 = vld [vmem:[#allocation2 + $0x122] sm:$0xff]
      %v590 = vld [vmem:[#allocation2 + $0x12a] sm:$0xff]
      %v591 = vld [vmem:[#allocation2 + $0x13a] sm:$0xff]
      %v592 = vld [vmem:[#allocation2 + $0x142] sm:$0xff]
      %v593 = vld [vmem:[#allocation2 + $0x152] sm:$0xff]
      %v594 = vld [vmem:[#allocation2 + $0x15a] sm:$0xff]
      %v595 = vld [vmem:[#allocation2 + $0x16a] sm:$0xff]
      %v596 = vld [vmem:[#allocation2 + $0x172] sm:$0xff]
      %v597 = vld [vmem:[#allocation2 + $0x182] sm:$0xff]
      %v598 = vld [vmem:[#allocation2 + $0x18a] sm:$0xff]
      %v599 = vld [vmem:[#allocation2 + $0x19a] sm:$0xff]
      %v600 = vld [vmem:[#allocation2 + $0x1a2] sm:$0xff]
      %633 = vrot.lane.b32.xlu0 %v529, 8
      %v634 = vpop.permute.xlu0 %633
      %635 = vrot.lane.b32.xlu0 %v530, 8
      %v636 = vpop.permute.xlu0 %635
      %637 = vrot.lane.b32.xlu0 %v531, 8
      %v638 = vpop.permute.xlu0 %637
      %639 = vrot.lane.b32.xlu0 %v532, 8
      %v640 = vpop.permute.xlu0 %639
      %641 = vrot.lane.b32.xlu0 %v533, 8
      %v642 = vpop.permute.xlu0 %641
      %643 = vrot.lane.b32.xlu0 %v534, 8
      %v644 = vpop.permute.xlu0 %643
      %645 = vrot.lane.b32.xlu0 %v535, 8
      %v646 = vpop.permute.xlu0 %645
      %647 = vrot.lane.b32.xlu0 %v536, 8
      %v648 = vpop.permute.xlu0 %647
      %649 = vrot.lane.b32.xlu0 %v537, 8
      %v650 = vpop.permute.xlu0 %649
      %651 = vrot.lane.b32.xlu0 %v538, 8
      %v652 = vpop.permute.xlu0 %651
      %653 = vrot.lane.b32.xlu0 %v539, 8
      %v654 = vpop.permute.xlu0 %653
      %655 = vrot.lane.b32.xlu0 %v540, 8
      %v656 = vpop.permute.xlu0 %655
      %657 = vrot.lane.b32.xlu0 %v541, 8
      %v658 = vpop.permute.xlu0 %657
      %659 = vrot.lane.b32.xlu0 %v542, 8
      %v660 = vpop.permute.xlu0 %659
      %661 = vrot.lane.b32.xlu0 %v543, 8
      %v662 = vpop.permute.xlu0 %661
      %663 = vrot.lane.b32.xlu0 %v544, 8
      %v664 = vpop.permute.xlu0 %663
      %665 = vrot.lane.b32.xlu0 %v545, 8
      %v666 = vpop.permute.xlu0 %665
      %667 = vrot.lane.b32.xlu0 %v546, 8
      %v668 = vpop.permute.xlu0 %667
      %669 = vrot.lane.b32.xlu0 %v547, 8
      %v670 = vpop.permute.xlu0 %669
      %671 = vrot.lane.b32.xlu0 %v548, 8
      %v672 = vpop.permute.xlu0 %671
      %673 = vrot.lane.b32.xlu0 %v549, 8
      %v674 = vpop.permute.xlu0 %673
      %675 = vrot.lane.b32.xlu0 %v550, 8
      %v676 = vpop.permute.xlu0 %675
      %677 = vrot.lane.b32.xlu0 %v551, 8
      %v678 = vpop.permute.xlu0 %677
      %679 = vrot.lane.b32.xlu0 %v552, 8
      %v680 = vpop.permute.xlu0 %679
      %681 = vrot.lane.b32.xlu0 %v553, 8
      %v682 = vpop.permute.xlu0 %681
      %683 = vrot.lane.b32.xlu0 %v554, 8
      %v684 = vpop.permute.xlu0 %683
      %685 = vrot.lane.b32.xlu0 %v555, 8
      %v686 = vpop.permute.xlu0 %685
      %687 = vrot.lane.b32.xlu0 %v556, 8
      %v688 = vpop.permute.xlu0 %687
      %689 = vrot.lane.b32.xlu0 %v557, 8
      %v690 = vpop.permute.xlu0 %689
      %691 = vrot.lane.b32.xlu0 %v558, 8
      %v692 = vpop.permute.xlu0 %691
      %693 = vrot.lane.b32.xlu0 %v559, 8
      %v694 = vpop.permute.xlu0 %693
      %695 = vrot.lane.b32.xlu0 %v560, 8
      %v696 = vpop.permute.xlu0 %695
      %761 = vrot.lane.b32.xlu0 %v565, 16
      %v762 = vpop.permute.xlu0 %761
      %763 = vrot.lane.b32.xlu0 %v566, 16
      %v764 = vpop.permute.xlu0 %763
      %765 = vrot.lane.b32.xlu0 %v567, 16
      %v766 = vpop.permute.xlu0 %765
      %767 = vrot.lane.b32.xlu0 %v568, 16
      %v768 = vpop.permute.xlu0 %767
      %769 = vrot.lane.b32.xlu0 %v569, 16
      %v770 = vpop.permute.xlu0 %769
      %771 = vrot.lane.b32.xlu0 %v570, 16
      %v772 = vpop.permute.xlu0 %771
      %773 = vrot.lane.b32.xlu0 %v571, 16
      %v774 = vpop.permute.xlu0 %773
      %775 = vrot.lane.b32.xlu0 %v572, 16
      %v776 = vpop.permute.xlu0 %775
      %777 = vrot.lane.b32.xlu0 %v573, 16
      %v778 = vpop.permute.xlu0 %777
      %779 = vrot.lane.b32.xlu0 %v574, 16
      %v780 = vpop.permute.xlu0 %779
      %781 = vrot.lane.b32.xlu0 %v575, 16
      %v782 = vpop.permute.xlu0 %781
      %783 = vrot.lane.b32.xlu0 %v576, 16
      %v784 = vpop.permute.xlu0 %783
      %785 = vrot.lane.b32.xlu0 %v577, 16
      %v786 = vpop.permute.xlu0 %785
      %787 = vrot.lane.b32.xlu0 %v578, 16
      %v788 = vpop.permute.xlu0 %787
      %789 = vrot.lane.b32.xlu0 %v579, 16
      %v790 = vpop.permute.xlu0 %789
      %791 = vrot.lane.b32.xlu0 %v580, 16
      %v792 = vpop.permute.xlu0 %791
      %793 = vrot.lane.b32.xlu0 %v581, 16
      %v794 = vpop.permute.xlu0 %793
      %795 = vrot.lane.b32.xlu0 %v582, 16
      %v796 = vpop.permute.xlu0 %795
      %797 = vrot.lane.b32.xlu0 %v583, 16
      %v798 = vpop.permute.xlu0 %797
      %799 = vrot.lane.b32.xlu0 %v584, 16
      %v800 = vpop.permute.xlu0 %799
      %801 = vrot.lane.b32.xlu0 %v585, 16
      %v802 = vpop.permute.xlu0 %801
      %803 = vrot.lane.b32.xlu0 %v586, 16
      %v804 = vpop.permute.xlu0 %803
      %805 = vrot.lane.b32.xlu0 %v587, 16
      %v806 = vpop.permute.xlu0 %805
      %807 = vrot.lane.b32.xlu0 %v588, 16
      %v808 = vpop.permute.xlu0 %807
      %809 = vrot.lane.b32.xlu0 %v589, 16
      %v810 = vpop.permute.xlu0 %809
      %811 = vrot.lane.b32.xlu0 %v590, 16
      %v812 = vpop.permute.xlu0 %811
      %813 = vrot.lane.b32.xlu0 %v591, 16
      %v814 = vpop.permute.xlu0 %813
      %815 = vrot.lane.b32.xlu0 %v592, 16
      %v816 = vpop.permute.xlu0 %815
      %817 = vrot.lane.b32.xlu0 %v593, 16
      %v818 = vpop.permute.xlu0 %817
      %819 = vrot.lane.b32.xlu0 %v594, 16
      %v820 = vpop.permute.xlu0 %819
      %821 = vrot.lane.b32.xlu0 %v595, 16
      %v822 = vpop.permute.xlu0 %821
      %823 = vrot.lane.b32.xlu0 %v596, 16
      %v824 = vpop.permute.xlu0 %823
      %889 = vrot.lane.b32.xlu0 %v495, 24
      %v890 = vpop.permute.xlu0 %889
      %891 = vrot.lane.b32.xlu0 %v496, 24
      %v892 = vpop.permute.xlu0 %891
      %893 = vrot.lane.b32.xlu0 %v497, 24
      %v894 = vpop.permute.xlu0 %893
      %895 = vrot.lane.b32.xlu0 %v498, 24
      %v896 = vpop.permute.xlu0 %895
      %897 = vrot.lane.b32.xlu0 %v499, 24
      %v898 = vpop.permute.xlu0 %897
      %899 = vrot.lane.b32.xlu0 %v500, 24
      %v900 = vpop.permute.xlu0 %899
      %901 = vrot.lane.b32.xlu0 %v501, 24
      %v902 = vpop.permute.xlu0 %901
      %903 = vrot.lane.b32.xlu0 %v502, 24
      %v904 = vpop.permute.xlu0 %903
      %905 = vrot.lane.b32.xlu0 %v503, 24
      %v906 = vpop.permute.xlu0 %905
      %907 = vrot.lane.b32.xlu0 %v504, 24
      %v908 = vpop.permute.xlu0 %907
      %909 = vrot.lane.b32.xlu0 %v505, 24
      %v910 = vpop.permute.xlu0 %909
      %911 = vrot.lane.b32.xlu0 %v506, 24
      %v912 = vpop.permute.xlu0 %911
      %913 = vrot.lane.b32.xlu0 %v507, 24
      %v914 = vpop.permute.xlu0 %913
      %915 = vrot.lane.b32.xlu0 %v508, 24
      %v916 = vpop.permute.xlu0 %915
      %917 = vrot.lane.b32.xlu0 %v509, 24
      %v918 = vpop.permute.xlu0 %917
      %919 = vrot.lane.b32.xlu0 %v510, 24
      %v920 = vpop.permute.xlu0 %919
      %921 = vrot.lane.b32.xlu0 %v511, 24
      %v922 = vpop.permute.xlu0 %921
      %923 = vrot.lane.b32.xlu0 %v512, 24
      %v924 = vpop.permute.xlu0 %923
      %925 = vrot.lane.b32.xlu0 %v513, 24
      %v926 = vpop.permute.xlu0 %925
      %927 = vrot.lane.b32.xlu0 %v514, 24
      %v928 = vpop.permute.xlu0 %927
      %929 = vrot.lane.b32.xlu0 %v515, 24
      %v930 = vpop.permute.xlu0 %929
      %931 = vrot.lane.b32.xlu0 %v516, 24
      %v932 = vpop.permute.xlu0 %931
      %933 = vrot.lane.b32.xlu0 %v517, 24
      %v934 = vpop.permute.xlu0 %933
      %935 = vrot.lane.b32.xlu0 %v518, 24
      %v936 = vpop.permute.xlu0 %935
      %937 = vrot.lane.b32.xlu0 %v519, 24
      %v938 = vpop.permute.xlu0 %937
      %939 = vrot.lane.b32.xlu0 %v520, 24
      %v940 = vpop.permute.xlu0 %939
      %941 = vrot.lane.b32.xlu0 %v521, 24
      %v942 = vpop.permute.xlu0 %941
      %943 = vrot.lane.b32.xlu0 %v522, 24
      %v944 = vpop.permute.xlu0 %943
      %945 = vrot.lane.b32.xlu0 %v523, 24
      %v946 = vpop.permute.xlu0 %945
      %947 = vrot.lane.b32.xlu0 %v524, 24
      %v948 = vpop.permute.xlu0 %947
      %949 = vrot.lane.b32.xlu0 %v525, 24
      %v950 = vpop.permute.xlu0 %949
      %951 = vrot.lane.b32.xlu0 %v526, 24
      %v952 = vpop.permute.xlu0 %951
      %987 = vrot.lane.b32.xlu0 %v531, 32
      %v988 = vpop.permute.xlu0 %987
      %989 = vrot.lane.b32.xlu0 %v532, 32
      %v990 = vpop.permute.xlu0 %989
      %991 = vrot.lane.b32.xlu0 %v533, 32
      %v992 = vpop.permute.xlu0 %991
      %993 = vrot.lane.b32.xlu0 %v534, 32
      %v994 = vpop.permute.xlu0 %993
      %995 = vrot.lane.b32.xlu0 %v535, 32
      %v996 = vpop.permute.xlu0 %995
      %997 = vrot.lane.b32.xlu0 %v536, 32
      %v998 = vpop.permute.xlu0 %997
      %999 = vrot.lane.b32.xlu0 %v537, 32
      %v1000 = vpop.permute.xlu0 %999
      %1001 = vrot.lane.b32.xlu0 %v538, 32
      %v1002 = vpop.permute.xlu0 %1001
      %1003 = vrot.lane.b32.xlu0 %v539, 32
      %v1004 = vpop.permute.xlu0 %1003
      %1005 = vrot.lane.b32.xlu0 %v540, 32
      %v1006 = vpop.permute.xlu0 %1005
      %1007 = vrot.lane.b32.xlu0 %v541, 32
      %v1008 = vpop.permute.xlu0 %1007
      %1009 = vrot.lane.b32.xlu0 %v542, 32
      %v1010 = vpop.permute.xlu0 %1009
      %1011 = vrot.lane.b32.xlu0 %v543, 32
      %v1012 = vpop.permute.xlu0 %1011
      %1013 = vrot.lane.b32.xlu0 %v544, 32
      %v1014 = vpop.permute.xlu0 %1013
      %1015 = vrot.lane.b32.xlu0 %v545, 32
      %v1016 = vpop.permute.xlu0 %1015
      %1017 = vrot.lane.b32.xlu0 %v546, 32
      %v1018 = vpop.permute.xlu0 %1017
      %1019 = vrot.lane.b32.xlu0 %v547, 32
      %v1020 = vpop.permute.xlu0 %1019
      %1021 = vrot.lane.b32.xlu0 %v548, 32
      %v1022 = vpop.permute.xlu0 %1021
      %1023 = vrot.lane.b32.xlu0 %v549, 32
      %v1024 = vpop.permute.xlu0 %1023
      %1025 = vrot.lane.b32.xlu0 %v550, 32
      %v1026 = vpop.permute.xlu0 %1025
      %1027 = vrot.lane.b32.xlu0 %v551, 32
      %v1028 = vpop.permute.xlu0 %1027
      %1029 = vrot.lane.b32.xlu0 %v552, 32
      %v1030 = vpop.permute.xlu0 %1029
      %1031 = vrot.lane.b32.xlu0 %v553, 32
      %v1032 = vpop.permute.xlu0 %1031
      %1033 = vrot.lane.b32.xlu0 %v554, 32
      %v1034 = vpop.permute.xlu0 %1033
      %1035 = vrot.lane.b32.xlu0 %v555, 32
      %v1036 = vpop.permute.xlu0 %1035
      %1037 = vrot.lane.b32.xlu0 %v556, 32
      %v1038 = vpop.permute.xlu0 %1037
      %1039 = vrot.lane.b32.xlu0 %v557, 32
      %v1040 = vpop.permute.xlu0 %1039
      %1041 = vrot.lane.b32.xlu0 %v558, 32
      %v1042 = vpop.permute.xlu0 %1041
      %1043 = vrot.lane.b32.xlu0 %v559, 32
      %v1044 = vpop.permute.xlu0 %1043
      %1045 = vrot.lane.b32.xlu0 %v560, 32
      %v1046 = vpop.permute.xlu0 %1045
      %1047 = vrot.lane.b32.xlu0 %v561, 32
      %v1048 = vpop.permute.xlu0 %1047
      %1049 = vrot.lane.b32.xlu0 %v562, 32
      %v1050 = vpop.permute.xlu0 %1049
      %1085 = vrot.lane.b32.xlu0 %v567, 40
      %v1086 = vpop.permute.xlu0 %1085
      %1087 = vrot.lane.b32.xlu0 %v568, 40
      %v1088 = vpop.permute.xlu0 %1087
      %1089 = vrot.lane.b32.xlu0 %v569, 40
      %v1090 = vpop.permute.xlu0 %1089
      %1091 = vrot.lane.b32.xlu0 %v570, 40
      %v1092 = vpop.permute.xlu0 %1091
      %1093 = vrot.lane.b32.xlu0 %v571, 40
      %v1094 = vpop.permute.xlu0 %1093
      %1095 = vrot.lane.b32.xlu0 %v572, 40
      %v1096 = vpop.permute.xlu0 %1095
      %1097 = vrot.lane.b32.xlu0 %v573, 40
      %v1098 = vpop.permute.xlu0 %1097
      %1099 = vrot.lane.b32.xlu0 %v574, 40
      %v1100 = vpop.permute.xlu0 %1099
      %1101 = vrot.lane.b32.xlu0 %v575, 40
      %v1102 = vpop.permute.xlu0 %1101
      %1103 = vrot.lane.b32.xlu0 %v576, 40
      %v1104 = vpop.permute.xlu0 %1103
      %1105 = vrot.lane.b32.xlu0 %v577, 40
      %v1106 = vpop.permute.xlu0 %1105
      %1107 = vrot.lane.b32.xlu0 %v578, 40
      %v1108 = vpop.permute.xlu0 %1107
      %1109 = vrot.lane.b32.xlu0 %v579, 40
      %v1110 = vpop.permute.xlu0 %1109
      %1111 = vrot.lane.b32.xlu0 %v580, 40
      %v1112 = vpop.permute.xlu0 %1111
      %1113 = vrot.lane.b32.xlu0 %v581, 40
      %v1114 = vpop.permute.xlu0 %1113
      %1115 = vrot.lane.b32.xlu0 %v582, 40
      %v1116 = vpop.permute.xlu0 %1115
      %1117 = vrot.lane.b32.xlu0 %v583, 40
      %v1118 = vpop.permute.xlu0 %1117
      %1119 = vrot.lane.b32.xlu0 %v584, 40
      %v1120 = vpop.permute.xlu0 %1119
      %1121 = vrot.lane.b32.xlu0 %v585, 40
      %v1122 = vpop.permute.xlu0 %1121
      %1123 = vrot.lane.b32.xlu0 %v586, 40
      %v1124 = vpop.permute.xlu0 %1123
      %1125 = vrot.lane.b32.xlu0 %v587, 40
      %v1126 = vpop.permute.xlu0 %1125
      %1127 = vrot.lane.b32.xlu0 %v588, 40
      %v1128 = vpop.permute.xlu0 %1127
      %1129 = vrot.lane.b32.xlu0 %v589, 40
      %v1130 = vpop.permute.xlu0 %1129
      %1131 = vrot.lane.b32.xlu0 %v590, 40
      %v1132 = vpop.permute.xlu0 %1131
      %1133 = vrot.lane.b32.xlu0 %v591, 40
      %v1134 = vpop.permute.xlu0 %1133
      %1135 = vrot.lane.b32.xlu0 %v592, 40
      %v1136 = vpop.permute.xlu0 %1135
      %1137 = vrot.lane.b32.xlu0 %v593, 40
      %v1138 = vpop.permute.xlu0 %1137
      %1139 = vrot.lane.b32.xlu0 %v594, 40
      %v1140 = vpop.permute.xlu0 %1139
      %1141 = vrot.lane.b32.xlu0 %v595, 40
      %v1142 = vpop.permute.xlu0 %1141
      %1143 = vrot.lane.b32.xlu0 %v596, 40
      %v1144 = vpop.permute.xlu0 %1143
      %1145 = vrot.lane.b32.xlu0 %v597, 40
      %v1146 = vpop.permute.xlu0 %1145
      %1147 = vrot.lane.b32.xlu0 %v598, 40
      %v1148 = vpop.permute.xlu0 %1147
      %1183 = vrot.lane.b32.xlu0 %v497, 48
      %v1184 = vpop.permute.xlu0 %1183
      %1185 = vrot.lane.b32.xlu0 %v498, 48
      %v1186 = vpop.permute.xlu0 %1185
      %1187 = vrot.lane.b32.xlu0 %v499, 48
      %v1188 = vpop.permute.xlu0 %1187
      %1189 = vrot.lane.b32.xlu0 %v500, 48
      %v1190 = vpop.permute.xlu0 %1189
      %1191 = vrot.lane.b32.xlu0 %v501, 48
      %v1192 = vpop.permute.xlu0 %1191
      %1193 = vrot.lane.b32.xlu0 %v502, 48
      %v1194 = vpop.permute.xlu0 %1193
      %1195 = vrot.lane.b32.xlu0 %v503, 48
      %v1196 = vpop.permute.xlu0 %1195
      %1197 = vrot.lane.b32.xlu0 %v504, 48
      %v1198 = vpop.permute.xlu0 %1197
      %1199 = vrot.lane.b32.xlu0 %v505, 48
      %v1200 = vpop.permute.xlu0 %1199
      %1201 = vrot.lane.b32.xlu0 %v506, 48
      %v1202 = vpop.permute.xlu0 %1201
      %1203 = vrot.lane.b32.xlu0 %v507, 48
      %v1204 = vpop.permute.xlu0 %1203
      %1205 = vrot.lane.b32.xlu0 %v508, 48
      %v1206 = vpop.permute.xlu0 %1205
      %1207 = vrot.lane.b32.xlu0 %v509, 48
      %v1208 = vpop.permute.xlu0 %1207
      %1209 = vrot.lane.b32.xlu0 %v510, 48
      %v1210 = vpop.permute.xlu0 %1209
      %1211 = vrot.lane.b32.xlu0 %v511, 48
      %v1212 = vpop.permute.xlu0 %1211
      %1213 = vrot.lane.b32.xlu0 %v512, 48
      %v1214 = vpop.permute.xlu0 %1213
      %1215 = vrot.lane.b32.xlu0 %v513, 48
      %v1216 = vpop.permute.xlu0 %1215
      %1217 = vrot.lane.b32.xlu0 %v514, 48
      %v1218 = vpop.permute.xlu0 %1217
      %1219 = vrot.lane.b32.xlu0 %v515, 48
      %v1220 = vpop.permute.xlu0 %1219
      %1221 = vrot.lane.b32.xlu0 %v516, 48
      %v1222 = vpop.permute.xlu0 %1221
      %1223 = vrot.lane.b32.xlu0 %v517, 48
      %v1224 = vpop.permute.xlu0 %1223
      %1225 = vrot.lane.b32.xlu0 %v518, 48
      %v1226 = vpop.permute.xlu0 %1225
      %1227 = vrot.lane.b32.xlu0 %v519, 48
      %v1228 = vpop.permute.xlu0 %1227
      %1229 = vrot.lane.b32.xlu0 %v520, 48
      %v1230 = vpop.permute.xlu0 %1229
      %1231 = vrot.lane.b32.xlu0 %v521, 48
      %v1232 = vpop.permute.xlu0 %1231
      %1233 = vrot.lane.b32.xlu0 %v522, 48
      %v1234 = vpop.permute.xlu0 %1233
      %1235 = vrot.lane.b32.xlu0 %v523, 48
      %v1236 = vpop.permute.xlu0 %1235
      %1237 = vrot.lane.b32.xlu0 %v524, 48
      %v1238 = vpop.permute.xlu0 %1237
      %1239 = vrot.lane.b32.xlu0 %v525, 48
      %v1240 = vpop.permute.xlu0 %1239
      %1241 = vrot.lane.b32.xlu0 %v526, 48
      %v1242 = vpop.permute.xlu0 %1241
      %1243 = vrot.lane.b32.xlu0 %v527, 48
      %v1244 = vpop.permute.xlu0 %1243
      %1245 = vrot.lane.b32.xlu0 %v528, 48
      %v1246 = vpop.permute.xlu0 %1245
      %1281 = vrot.lane.b32.xlu0 %v533, 56
      %v1282 = vpop.permute.xlu0 %1281
      %1283 = vrot.lane.b32.xlu0 %v534, 56
      %v1284 = vpop.permute.xlu0 %1283
      %1285 = vrot.lane.b32.xlu0 %v535, 56
      %v1286 = vpop.permute.xlu0 %1285
      %1287 = vrot.lane.b32.xlu0 %v536, 56
      %v1288 = vpop.permute.xlu0 %1287
      %1289 = vrot.lane.b32.xlu0 %v537, 56
      %v1290 = vpop.permute.xlu0 %1289
      %1291 = vrot.lane.b32.xlu0 %v538, 56
      %v1292 = vpop.permute.xlu0 %1291
      %1293 = vrot.lane.b32.xlu0 %v539, 56
      %v1294 = vpop.permute.xlu0 %1293
      %1295 = vrot.lane.b32.xlu0 %v540, 56
      %v1296 = vpop.permute.xlu0 %1295
      %1297 = vrot.lane.b32.xlu0 %v541, 56
      %v1298 = vpop.permute.xlu0 %1297
      %1299 = vrot.lane.b32.xlu0 %v542, 56
      %v1300 = vpop.permute.xlu0 %1299
      %1301 = vrot.lane.b32.xlu0 %v543, 56
      %v1302 = vpop.permute.xlu0 %1301
      %1303 = vrot.lane.b32.xlu0 %v544, 56
      %v1304 = vpop.permute.xlu0 %1303
      %1305 = vrot.lane.b32.xlu0 %v545, 56
      %v1306 = vpop.permute.xlu0 %1305
      %1307 = vrot.lane.b32.xlu0 %v546, 56
      %v1308 = vpop.permute.xlu0 %1307
      %1309 = vrot.lane.b32.xlu0 %v547, 56
      %v1310 = vpop.permute.xlu0 %1309
      %1311 = vrot.lane.b32.xlu0 %v548, 56
      %v1312 = vpop.permute.xlu0 %1311
      %1313 = vrot.lane.b32.xlu0 %v549, 56
      %v1314 = vpop.permute.xlu0 %1313
      %1315 = vrot.lane.b32.xlu0 %v550, 56
      %v1316 = vpop.permute.xlu0 %1315
      %1317 = vrot.lane.b32.xlu0 %v551, 56
      %v1318 = vpop.permute.xlu0 %1317
      %1319 = vrot.lane.b32.xlu0 %v552, 56
      %v1320 = vpop.permute.xlu0 %1319
      %1321 = vrot.lane.b32.xlu0 %v553, 56
      %v1322 = vpop.permute.xlu0 %1321
      %1323 = vrot.lane.b32.xlu0 %v554, 56
      %v1324 = vpop.permute.xlu0 %1323
      %1325 = vrot.lane.b32.xlu0 %v555, 56
      %v1326 = vpop.permute.xlu0 %1325
      %1327 = vrot.lane.b32.xlu0 %v556, 56
      %v1328 = vpop.permute.xlu0 %1327
      %1329 = vrot.lane.b32.xlu0 %v557, 56
      %v1330 = vpop.permute.xlu0 %1329
      %1331 = vrot.lane.b32.xlu0 %v558, 56
      %v1332 = vpop.permute.xlu0 %1331
      %1333 = vrot.lane.b32.xlu0 %v559, 56
      %v1334 = vpop.permute.xlu0 %1333
      %1335 = vrot.lane.b32.xlu0 %v560, 56
      %v1336 = vpop.permute.xlu0 %1335
      %1337 = vrot.lane.b32.xlu0 %v561, 56
      %v1338 = vpop.permute.xlu0 %1337
      %1339 = vrot.lane.b32.xlu0 %v562, 56
      %v1340 = vpop.permute.xlu0 %1339
      %1341 = vrot.lane.b32.xlu0 %v563, 56
      %v1342 = vpop.permute.xlu0 %1341
      %1343 = vrot.lane.b32.xlu0 %v564, 56
      %v1344 = vpop.permute.xlu0 %1343
      %1379 = vrot.lane.b32.xlu0 %v569, 64
      %v1380 = vpop.permute.xlu0 %1379
      %1381 = vrot.lane.b32.xlu0 %v570, 64
      %v1382 = vpop.permute.xlu0 %1381
      %1383 = vrot.lane.b32.xlu0 %v571, 64
      %v1384 = vpop.permute.xlu0 %1383
      %1385 = vrot.lane.b32.xlu0 %v572, 64
      %v1386 = vpop.permute.xlu0 %1385
      %1387 = vrot.lane.b32.xlu0 %v573, 64
      %v1388 = vpop.permute.xlu0 %1387
      %1389 = vrot.lane.b32.xlu0 %v574, 64
      %v1390 = vpop.permute.xlu0 %1389
      %1391 = vrot.lane.b32.xlu0 %v575, 64
      %v1392 = vpop.permute.xlu0 %1391
      %1393 = vrot.lane.b32.xlu0 %v576, 64
      %v1394 = vpop.permute.xlu0 %1393
      %1395 = vrot.lane.b32.xlu0 %v577, 64
      %v1396 = vpop.permute.xlu0 %1395
      %1397 = vrot.lane.b32.xlu0 %v578, 64
      %v1398 = vpop.permute.xlu0 %1397
      %1399 = vrot.lane.b32.xlu0 %v579, 64
      %v1400 = vpop.permute.xlu0 %1399
      %1401 = vrot.lane.b32.xlu0 %v580, 64
      %v1402 = vpop.permute.xlu0 %1401
      %1403 = vrot.lane.b32.xlu0 %v581, 64
      %v1404 = vpop.permute.xlu0 %1403
      %1405 = vrot.lane.b32.xlu0 %v582, 64
      %v1406 = vpop.permute.xlu0 %1405
      %1407 = vrot.lane.b32.xlu0 %v583, 64
      %v1408 = vpop.permute.xlu0 %1407
      %1409 = vrot.lane.b32.xlu0 %v584, 64
      %v1410 = vpop.permute.xlu0 %1409
      %1411 = vrot.lane.b32.xlu0 %v585, 64
      %v1412 = vpop.permute.xlu0 %1411
      %1413 = vrot.lane.b32.xlu0 %v586, 64
      %v1414 = vpop.permute.xlu0 %1413
      %1415 = vrot.lane.b32.xlu0 %v587, 64
      %v1416 = vpop.permute.xlu0 %1415
      %1417 = vrot.lane.b32.xlu0 %v588, 64
      %v1418 = vpop.permute.xlu0 %1417
      %1419 = vrot.lane.b32.xlu0 %v589, 64
      %v1420 = vpop.permute.xlu0 %1419
      %1421 = vrot.lane.b32.xlu0 %v590, 64
      %v1422 = vpop.permute.xlu0 %1421
      %1423 = vrot.lane.b32.xlu0 %v591, 64
      %v1424 = vpop.permute.xlu0 %1423
      %1425 = vrot.lane.b32.xlu0 %v592, 64
      %v1426 = vpop.permute.xlu0 %1425
      %1427 = vrot.lane.b32.xlu0 %v593, 64
      %v1428 = vpop.permute.xlu0 %1427
      %1429 = vrot.lane.b32.xlu0 %v594, 64
      %v1430 = vpop.permute.xlu0 %1429
      %1431 = vrot.lane.b32.xlu0 %v595, 64
      %v1432 = vpop.permute.xlu0 %1431
      %1433 = vrot.lane.b32.xlu0 %v596, 64
      %v1434 = vpop.permute.xlu0 %1433
      %1435 = vrot.lane.b32.xlu0 %v597, 64
      %v1436 = vpop.permute.xlu0 %1435
      %1437 = vrot.lane.b32.xlu0 %v598, 64
      %v1438 = vpop.permute.xlu0 %1437
      %1439 = vrot.lane.b32.xlu0 %v599, 64
      %v1440 = vpop.permute.xlu0 %1439
      %1441 = vrot.lane.b32.xlu0 %v600, 64
      %v1442 = vpop.permute.xlu0 %1441
      %v1475 = vsel %vm414, %v493, %v634
      %v1476 = vsel %vm414, %v494, %v636
      %v1477 = vsel %vm414, %v495, %v638
      %v1478 = vsel %vm414, %v496, %v640
      %v1479 = vsel %vm414, %v497, %v642
      %v1480 = vsel %vm414, %v498, %v644
      %v1481 = vsel %vm414, %v499, %v646
      %v1482 = vsel %vm414, %v500, %v648
      %v1483 = vsel %vm414, %v501, %v650
      %v1484 = vsel %vm414, %v502, %v652
      %v1485 = vsel %vm414, %v503, %v654
      %v1486 = vsel %vm414, %v504, %v656
      %v1487 = vsel %vm414, %v505, %v658
      %v1488 = vsel %vm414, %v506, %v660
      %v1489 = vsel %vm414, %v507, %v662
      %v1490 = vsel %vm414, %v508, %v664
      %v1491 = vsel %vm414, %v509, %v666
      %v1492 = vsel %vm414, %v510, %v668
      %v1493 = vsel %vm414, %v511, %v670
      %v1494 = vsel %vm414, %v512, %v672
      %v1495 = vsel %vm414, %v513, %v674
      %v1496 = vsel %vm414, %v514, %v676
      %v1497 = vsel %vm414, %v515, %v678
      %v1498 = vsel %vm414, %v516, %v680
      %v1499 = vsel %vm414, %v517, %v682
      %v1500 = vsel %vm414, %v518, %v684
      %v1501 = vsel %vm414, %v519, %v686
      %v1502 = vsel %vm414, %v520, %v688
      %v1503 = vsel %vm414, %v521, %v690
      %v1504 = vsel %vm414, %v522, %v692
      %v1505 = vsel %vm414, %v523, %v694
      %v1506 = vsel %vm414, %v524, %v696
      %vm1507 = vcmask 130048
      %v1508 = vsel %vm1507, %v1475, %v762
      %v1509 = vsel %vm1507, %v1476, %v764
      %v1510 = vsel %vm1507, %v1477, %v766
      %v1511 = vsel %vm1507, %v1478, %v768
      %v1512 = vsel %vm1507, %v1479, %v770
      %v1513 = vsel %vm1507, %v1480, %v772
      %v1514 = vsel %vm1507, %v1481, %v774
      %v1515 = vsel %vm1507, %v1482, %v776
      %v1516 = vsel %vm1507, %v1483, %v778
      %v1517 = vsel %vm1507, %v1484, %v780
      %v1518 = vsel %vm1507, %v1485, %v782
      %v1519 = vsel %vm1507, %v1486, %v784
      %v1520 = vsel %vm1507, %v1487, %v786
      %v1521 = vsel %vm1507, %v1488, %v788
      %v1522 = vsel %vm1507, %v1489, %v790
      %v1523 = vsel %vm1507, %v1490, %v792
      %v1524 = vsel %vm1507, %v1491, %v794
      %v1525 = vsel %vm1507, %v1492, %v796
      %v1526 = vsel %vm1507, %v1493, %v798
      %v1527 = vsel %vm1507, %v1494, %v800
      %v1528 = vsel %vm1507, %v1495, %v802
      %v1529 = vsel %vm1507, %v1496, %v804
      %v1530 = vsel %vm1507, %v1497, %v806
      %v1531 = vsel %vm1507, %v1498, %v808
      %v1532 = vsel %vm1507, %v1499, %v810
      %v1533 = vsel %vm1507, %v1500, %v812
      %v1534 = vsel %vm1507, %v1501, %v814
      %v1535 = vsel %vm1507, %v1502, %v816
      %v1536 = vsel %vm1507, %v1503, %v818
      %v1537 = vsel %vm1507, %v1504, %v820
      %v1538 = vsel %vm1507, %v1505, %v822
      %v1539 = vsel %vm1507, %v1506, %v824
      %vm1540 = vcmask 195584
      %v1541 = vsel %vm1540, %v1508, %v890
      %v1542 = vsel %vm1540, %v1509, %v892
      %v1543 = vsel %vm1540, %v1510, %v894
      %v1544 = vsel %vm1540, %v1511, %v896
      %v1545 = vsel %vm1540, %v1512, %v898
      %v1546 = vsel %vm1540, %v1513, %v900
      %v1547 = vsel %vm1540, %v1514, %v902
      %v1548 = vsel %vm1540, %v1515, %v904
      %v1549 = vsel %vm1540, %v1516, %v906
      %v1550 = vsel %vm1540, %v1517, %v908
      %v1551 = vsel %vm1540, %v1518, %v910
      %v1552 = vsel %vm1540, %v1519, %v912
      %v1553 = vsel %vm1540, %v1520, %v914
      %v1554 = vsel %vm1540, %v1521, %v916
      %v1555 = vsel %vm1540, %v1522, %v918
      %v1556 = vsel %vm1540, %v1523, %v920
      %v1557 = vsel %vm1540, %v1524, %v922
      %v1558 = vsel %vm1540, %v1525, %v924
      %v1559 = vsel %vm1540, %v1526, %v926
      %v1560 = vsel %vm1540, %v1527, %v928
      %v1561 = vsel %vm1540, %v1528, %v930
      %v1562 = vsel %vm1540, %v1529, %v932
      %v1563 = vsel %vm1540, %v1530, %v934
      %v1564 = vsel %vm1540, %v1531, %v936
      %v1565 = vsel %vm1540, %v1532, %v938
      %v1566 = vsel %vm1540, %v1533, %v940
      %v1567 = vsel %vm1540, %v1534, %v942
      %v1568 = vsel %vm1540, %v1535, %v944
      %v1569 = vsel %vm1540, %v1536, %v946
      %v1570 = vsel %vm1540, %v1537, %v948
      %v1571 = vsel %vm1540, %v1538, %v950
      %v1572 = vsel %vm1540, %v1539, %v952
      %vm1573 = vcmask 261120
      %v1574 = vsel %vm1573, %v1541, %v988
      %v1575 = vsel %vm1573, %v1542, %v990
      %v1576 = vsel %vm1573, %v1543, %v992
      %v1577 = vsel %vm1573, %v1544, %v994
      %v1578 = vsel %vm1573, %v1545, %v996
      %v1579 = vsel %vm1573, %v1546, %v998
      %v1580 = vsel %vm1573, %v1547, %v1000
      %v1581 = vsel %vm1573, %v1548, %v1002
      %v1582 = vsel %vm1573, %v1549, %v1004
      %v1583 = vsel %vm1573, %v1550, %v1006
      %v1584 = vsel %vm1573, %v1551, %v1008
      %v1585 = vsel %vm1573, %v1552, %v1010
      %v1586 = vsel %vm1573, %v1553, %v1012
      %v1587 = vsel %vm1573, %v1554, %v1014
      %v1588 = vsel %vm1573, %v1555, %v1016
      %v1589 = vsel %vm1573, %v1556, %v1018
      %v1590 = vsel %vm1573, %v1557, %v1020
      %v1591 = vsel %vm1573, %v1558, %v1022
      %v1592 = vsel %vm1573, %v1559, %v1024
      %v1593 = vsel %vm1573, %v1560, %v1026
      %v1594 = vsel %vm1573, %v1561, %v1028
      %v1595 = vsel %vm1573, %v1562, %v1030
      %v1596 = vsel %vm1573, %v1563, %v1032
      %v1597 = vsel %vm1573, %v1564, %v1034
      %v1598 = vsel %vm1573, %v1565, %v1036
      %v1599 = vsel %vm1573, %v1566, %v1038
      %v1600 = vsel %vm1573, %v1567, %v1040
      %v1601 = vsel %vm1573, %v1568, %v1042
      %v1602 = vsel %vm1573, %v1569, %v1044
      %v1603 = vsel %vm1573, %v1570, %v1046
      %v1604 = vsel %vm1573, %v1571, %v1048
      %v1605 = vsel %vm1573, %v1572, %v1050
      %vm1606 = vcmask 326656
      %v1607 = vsel %vm1606, %v1574, %v1086
      %v1608 = vsel %vm1606, %v1575, %v1088
      %v1609 = vsel %vm1606, %v1576, %v1090
      %v1610 = vsel %vm1606, %v1577, %v1092
      %v1611 = vsel %vm1606, %v1578, %v1094
      %v1612 = vsel %vm1606, %v1579, %v1096
      %v1613 = vsel %vm1606, %v1580, %v1098
      %v1614 = vsel %vm1606, %v1581, %v1100
      %v1615 = vsel %vm1606, %v1582, %v1102
      %v1616 = vsel %vm1606, %v1583, %v1104
      %v1617 = vsel %vm1606, %v1584, %v1106
      %v1618 = vsel %vm1606, %v1585, %v1108
      %v1619 = vsel %vm1606, %v1586, %v1110
      %v1620 = vsel %vm1606, %v1587, %v1112
      %v1621 = vsel %vm1606, %v1588, %v1114
      %v1622 = vsel %vm1606, %v1589, %v1116
      %v1623 = vsel %vm1606, %v1590, %v1118
      %v1624 = vsel %vm1606, %v1591, %v1120
      %v1625 = vsel %vm1606, %v1592, %v1122
      %v1626 = vsel %vm1606, %v1593, %v1124
      %v1627 = vsel %vm1606, %v1594, %v1126
      %v1628 = vsel %vm1606, %v1595, %v1128
      %v1629 = vsel %vm1606, %v1596, %v1130
      %v1630 = vsel %vm1606, %v1597, %v1132
      %v1631 = vsel %vm1606, %v1598, %v1134
      %v1632 = vsel %vm1606, %v1599, %v1136
      %v1633 = vsel %vm1606, %v1600, %v1138
      %v1634 = vsel %vm1606, %v1601, %v1140
      %v1635 = vsel %vm1606, %v1602, %v1142
      %v1636 = vsel %vm1606, %v1603, %v1144
      %v1637 = vsel %vm1606, %v1604, %v1146
      %v1638 = vsel %vm1606, %v1605, %v1148
      %vm1639 = vcmask 392192
      %v1640 = vsel %vm1639, %v1607, %v1184
      %v1641 = vsel %vm1639, %v1608, %v1186
      %v1642 = vsel %vm1639, %v1609, %v1188
      %v1643 = vsel %vm1639, %v1610, %v1190
      %v1644 = vsel %vm1639, %v1611, %v1192
      %v1645 = vsel %vm1639, %v1612, %v1194
      %v1646 = vsel %vm1639, %v1613, %v1196
      %v1647 = vsel %vm1639, %v1614, %v1198
      %v1648 = vsel %vm1639, %v1615, %v1200
      %v1649 = vsel %vm1639, %v1616, %v1202
      %v1650 = vsel %vm1639, %v1617, %v1204
      %v1651 = vsel %vm1639, %v1618, %v1206
      %v1652 = vsel %vm1639, %v1619, %v1208
      %v1653 = vsel %vm1639, %v1620, %v1210
      %v1654 = vsel %vm1639, %v1621, %v1212
      %v1655 = vsel %vm1639, %v1622, %v1214
      %v1656 = vsel %vm1639, %v1623, %v1216
      %v1657 = vsel %vm1639, %v1624, %v1218
      %v1658 = vsel %vm1639, %v1625, %v1220
      %v1659 = vsel %vm1639, %v1626, %v1222
      %v1660 = vsel %vm1639, %v1627, %v1224
      %v1661 = vsel %vm1639, %v1628, %v1226
      %v1662 = vsel %vm1639, %v1629, %v1228
      %v1663 = vsel %vm1639, %v1630, %v1230
      %v1664 = vsel %vm1639, %v1631, %v1232
      %v1665 = vsel %vm1639, %v1632, %v1234
      %v1666 = vsel %vm1639, %v1633, %v1236
      %v1667 = vsel %vm1639, %v1634, %v1238
      %v1668 = vsel %vm1639, %v1635, %v1240
      %v1669 = vsel %vm1639, %v1636, %v1242
      %v1670 = vsel %vm1639, %v1637, %v1244
      %v1671 = vsel %vm1639, %v1638, %v1246
      %vm1672 = vcmask 457728
      %v1673 = vsel %vm1672, %v1640, %v1282
      %v1674 = vsel %vm1672, %v1641, %v1284
      %v1675 = vsel %vm1672, %v1642, %v1286
      %v1676 = vsel %vm1672, %v1643, %v1288
      %v1677 = vsel %vm1672, %v1644, %v1290
      %v1678 = vsel %vm1672, %v1645, %v1292
      %v1679 = vsel %vm1672, %v1646, %v1294
      %v1680 = vsel %vm1672, %v1647, %v1296
      %v1681 = vsel %vm1672, %v1648, %v1298
      %v1682 = vsel %vm1672, %v1649, %v1300
      %v1683 = vsel %vm1672, %v1650, %v1302
      %v1684 = vsel %vm1672, %v1651, %v1304
      %v1685 = vsel %vm1672, %v1652, %v1306
      %v1686 = vsel %vm1672, %v1653, %v1308
      %v1687 = vsel %vm1672, %v1654, %v1310
      %v1688 = vsel %vm1672, %v1655, %v1312
      %v1689 = vsel %vm1672, %v1656, %v1314
      %v1690 = vsel %vm1672, %v1657, %v1316
      %v1691 = vsel %vm1672, %v1658, %v1318
      %v1692 = vsel %vm1672, %v1659, %v1320
      %v1693 = vsel %vm1672, %v1660, %v1322
      %v1694 = vsel %vm1672, %v1661, %v1324
      %v1695 = vsel %vm1672, %v1662, %v1326
      %v1696 = vsel %vm1672, %v1663, %v1328
      %v1697 = vsel %vm1672, %v1664, %v1330
      %v1698 = vsel %vm1672, %v1665, %v1332
      %v1699 = vsel %vm1672, %v1666, %v1334
      %v1700 = vsel %vm1672, %v1667, %v1336
      %v1701 = vsel %vm1672, %v1668, %v1338
      %v1702 = vsel %vm1672, %v1669, %v1340
      %v1703 = vsel %vm1672, %v1670, %v1342
      %v1704 = vsel %vm1672, %v1671, %v1344
      %vm1705 = vcmask 523264
      %v1706 = vsel %vm1705, %v1673, %v1380
      %v1707 = vsel %vm1705, %v1674, %v1382
      %v1708 = vsel %vm1705, %v1675, %v1384
      %v1709 = vsel %vm1705, %v1676, %v1386
      %v1710 = vsel %vm1705, %v1677, %v1388
      %v1711 = vsel %vm1705, %v1678, %v1390
      %v1712 = vsel %vm1705, %v1679, %v1392
      %v1713 = vsel %vm1705, %v1680, %v1394
      %v1714 = vsel %vm1705, %v1681, %v1396
      %v1715 = vsel %vm1705, %v1682, %v1398
      %v1716 = vsel %vm1705, %v1683, %v1400
      %v1717 = vsel %vm1705, %v1684, %v1402
      %v1718 = vsel %vm1705, %v1685, %v1404
      %v1719 = vsel %vm1705, %v1686, %v1406
      %v1720 = vsel %vm1705, %v1687, %v1408
      %v1721 = vsel %vm1705, %v1688, %v1410
      %v1722 = vsel %vm1705, %v1689, %v1412
      %v1723 = vsel %vm1705, %v1690, %v1414
      %v1724 = vsel %vm1705, %v1691, %v1416
      %v1725 = vsel %vm1705, %v1692, %v1418
      %v1726 = vsel %vm1705, %v1693, %v1420
      %v1727 = vsel %vm1705, %v1694, %v1422
      %v1728 = vsel %vm1705, %v1695, %v1424
      %v1729 = vsel %vm1705, %v1696, %v1426
      %v1730 = vsel %vm1705, %v1697, %v1428
      %v1731 = vsel %vm1705, %v1698, %v1430
      %v1732 = vsel %vm1705, %v1699, %v1432
      %v1733 = vsel %vm1705, %v1700, %v1434
      %v1734 = vsel %vm1705, %v1701, %v1436
      %v1735 = vsel %vm1705, %v1702, %v1438
      %v1736 = vsel %vm1705, %v1703, %v1440
      %v1737 = vsel %vm1705, %v1704, %v1442
      %v1738 = vpack.c.bf16 %v1707, %v1706
      %v1739 = vpack.c.bf16 %v1709, %v1708
      %v1740 = vpack.c.bf16 %v1711, %v1710
      %v1741 = vpack.c.bf16 %v1713, %v1712
      %v1742 = vpack.c.bf16 %v1715, %v1714
      %v1743 = vpack.c.bf16 %v1717, %v1716
      %v1744 = vpack.c.bf16 %v1719, %v1718
      %v1745 = vpack.c.bf16 %v1721, %v1720
      %v1746 = vpack.c.bf16 %v1723, %v1722
      %v1747 = vpack.c.bf16 %v1725, %v1724
      %v1748 = vpack.c.bf16 %v1727, %v1726
      %v1749 = vpack.c.bf16 %v1729, %v1728
      %v1750 = vpack.c.bf16 %v1731, %v1730
      %v1751 = vpack.c.bf16 %v1733, %v1732
      %v1752 = vpack.c.bf16 %v1735, %v1734
      %v1753 = vpack.c.bf16 %v1737, %v1736
      %v1754 = vld [vmem:[%s3] sm:$0xf]
      %v1755 = vld [vmem:[%s3 + $0x4] sm:$0xf]
      %v1756 = vld [vmem:[%s3 + $0x8] sm:$0xf]
      %v1757 = vld [vmem:[%s3 + $0xc] sm:$0xf]
      %v1758 = vld [vmem:[%s3 + $0x10] sm:$0xf]
      %v1759 = vld [vmem:[%s3 + $0x14] sm:$0xf]
      %v1760 = vld [vmem:[%s3 + $0x18] sm:$0xf]
      %v1761 = vld [vmem:[%s3 + $0x1c] sm:$0xf]
      %v1762 = vld [vmem:[%s3 + $0x20] sm:$0xf]
      %v1772 = vunpack.c.l.b16 %v1754
      %v1773 = vunpack.c.l.b16 %v1755
      %v1774 = vunpack.c.l.b16 %v1756
      %v1775 = vunpack.c.l.b16 %v1757
      %v1776 = vunpack.c.l.b16 %v1758
      %v1777 = vunpack.c.l.b16 %v1759
      %v1778 = vunpack.c.l.b16 %v1760
      %v1779 = vunpack.c.l.b16 %v1761
      %v1780 = vunpack.c.l.b16 %v1762
      %v1781 = vpack.c.b16 %v1773, %v1772
      %v1782 = vpack.c.b16 %v1775, %v1774
      %v1783 = vpack.c.b16 %v1777, %v1776
      %v1784 = vpack.c.b16 %v1779, %v1778
      %v1785 = vpack.c.b16 %v1780, %v1780
      %vm1790 = vcmask 588800
      %v1792 = vsel %vm1790, %v1738, 0
      %v1795 = vsel %vm1790, %v1739, 0
      %v1798 = vsel %vm1790, %v1740, 0
      %v1801 = vsel %vm1790, %v1741, 0
      %v1804 = vsel %vm1790, %v1742, 0
      %v1807 = vsel %vm1790, %v1743, 0
      %v1810 = vsel %vm1790, %v1744, 0
      %v1813 = vsel %vm1790, %v1745, 0
      %v1816 = vsel %vm1790, %v1746, 0
      %v1819 = vsel %vm1790, %v1747, 0
      %v1822 = vsel %vm1790, %v1748, 0
      %v1825 = vsel %vm1790, %v1749, 0
      %v1828 = vsel %vm1790, %v1750, 0
      %v1831 = vsel %vm1790, %v1751, 0
      %v1834 = vsel %vm1790, %v1752, 0
      %v1837 = vsel %vm1790, %v1753, 0
      %vm1839 = vcmask 1043456
      %v1841 = vsel %vm1839, %v1785, 0
      %1843 = vmatpush.bf16.msra.mxu0 0
      %1844 = vmatpush.bf16.msra.mxu0 0
      %1845 = vmatpush.bf16.msra.mxu0 0
      %1846 = vmatpush.bf16.msra.mxu0 %v1841
      %1847 = vmatpush.bf16.msra.mxu0 %v1784
      %1848 = vmatpush.bf16.msra.mxu0 %v1783
      %1849 = vmatpush.bf16.msra.mxu0 %v1782
      %1850 = vmatpush.bf16.msra.mxu0 %v1781
      %1851 = vmatmul.bf16.gmra.mxu0 %v1792
      %v1852 = vpop.f32.mrf.mxu0
      %v1853 = vadd.f32 0.0, %v1852
      %v1854 = vpop.f32.mrf.mxu0
      %v1855 = vadd.f32 0.0, %v1854
      %1856 = vmatmul.bf16.gmra.mxu0 %v1795
      %v1857 = vpop.f32.mrf.mxu0
      %v1858 = vadd.f32 0.0, %v1857
      %v1859 = vpop.f32.mrf.mxu0
      %v1860 = vadd.f32 0.0, %v1859
      %1861 = vmatmul.bf16.gmra.mxu0 %v1798
      %v1862 = vpop.f32.mrf.mxu0
      %v1863 = vadd.f32 0.0, %v1862
      %v1864 = vpop.f32.mrf.mxu0
      %v1865 = vadd.f32 0.0, %v1864
      %1866 = vmatmul.bf16.gmra.mxu0 %v1801
      %v1867 = vpop.f32.mrf.mxu0
      %v1868 = vadd.f32 0.0, %v1867
      %v1869 = vpop.f32.mrf.mxu0
      %v1870 = vadd.f32 0.0, %v1869
      %1871 = vmatmul.bf16.gmra.mxu0 %v1804
      %v1872 = vpop.f32.mrf.mxu0
      %v1873 = vadd.f32 0.0, %v1872
      %v1874 = vpop.f32.mrf.mxu0
      %v1875 = vadd.f32 0.0, %v1874
      %1876 = vmatmul.bf16.gmra.mxu0 %v1807
      %v1877 = vpop.f32.mrf.mxu0
      %v1878 = vadd.f32 0.0, %v1877
      %v1879 = vpop.f32.mrf.mxu0
      %v1880 = vadd.f32 0.0, %v1879
      %1881 = vmatmul.bf16.gmra.mxu0 %v1810
      %v1882 = vpop.f32.mrf.mxu0
      %v1883 = vadd.f32 0.0, %v1882
      %v1884 = vpop.f32.mrf.mxu0
      %v1885 = vadd.f32 0.0, %v1884
      %1886 = vmatmul.bf16.gmra.mxu0 %v1813
      %v1887 = vpop.f32.mrf.mxu0
      %v1888 = vadd.f32 0.0, %v1887
      %v1889 = vpop.f32.mrf.mxu0
      %v1890 = vadd.f32 0.0, %v1889
      %1891 = vmatmul.bf16.gmra.mxu0 %v1816
      %v1892 = vpop.f32.mrf.mxu0
      %v1893 = vadd.f32 0.0, %v1892
      %v1894 = vpop.f32.mrf.mxu0
      %v1895 = vadd.f32 0.0, %v1894
      %1896 = vmatmul.bf16.gmra.mxu0 %v1819
      %v1897 = vpop.f32.mrf.mxu0
      %v1898 = vadd.f32 0.0, %v1897
      %v1899 = vpop.f32.mrf.mxu0
      %v1900 = vadd.f32 0.0, %v1899
      %1901 = vmatmul.bf16.gmra.mxu0 %v1822
      %v1902 = vpop.f32.mrf.mxu0
      %v1903 = vadd.f32 0.0, %v1902
      %v1904 = vpop.f32.mrf.mxu0
      %v1905 = vadd.f32 0.0, %v1904
      %1906 = vmatmul.bf16.gmra.mxu0 %v1825
      %v1907 = vpop.f32.mrf.mxu0
      %v1908 = vadd.f32 0.0, %v1907
      %v1909 = vpop.f32.mrf.mxu0
      %v1910 = vadd.f32 0.0, %v1909
      %1911 = vmatmul.bf16.gmra.mxu0 %v1828
      %v1912 = vpop.f32.mrf.mxu0
      %v1913 = vadd.f32 0.0, %v1912
      %v1914 = vpop.f32.mrf.mxu0
      %v1915 = vadd.f32 0.0, %v1914
      %1916 = vmatmul.bf16.gmra.mxu0 %v1831
      %v1917 = vpop.f32.mrf.mxu0
      %v1918 = vadd.f32 0.0, %v1917
      %v1919 = vpop.f32.mrf.mxu0
      %v1920 = vadd.f32 0.0, %v1919
      %1921 = vmatmul.bf16.gmra.mxu0 %v1834
      %v1922 = vpop.f32.mrf.mxu0
      %v1923 = vadd.f32 0.0, %v1922
      %v1924 = vpop.f32.mrf.mxu0
      %v1925 = vadd.f32 0.0, %v1924
      %1926 = vmatmul.bf16.gmra.mxu0 %v1837
      %v1927 = vpop.f32.mrf.mxu0
      %v1928 = vadd.f32 0.0, %v1927
      %v1929 = vpop.f32.mrf.mxu0
      %v1930 = vadd.f32 0.0, %v1929
      %1931 = vdwg.mxu0
      %v1932 = vld [vmem:[%s239] sm:$0xff]
      %v1933 = vld [vmem:[%s239 + $0x8] sm:$0xff]
      %v1934 = vld [vmem:[%s239 + $0x10] sm:$0xff]
      %v1935 = vld [vmem:[%s239 + $0x18] sm:$0xff]
      %v1936 = vld [vmem:[%s239 + $0x20] sm:$0xff]
      %v1937 = vld [vmem:[%s239 + $0x28] sm:$0xff]
      %v1938 = vld [vmem:[%s239 + $0x30] sm:$0xff]
      %v1939 = vld [vmem:[%s239 + $0x38] sm:$0xff]
      %v1940 = vld [vmem:[%s239 + $0x40] sm:$0xff]
      %v1941 = vld [vmem:[%s239 + $0x48] sm:$0xff]
      %v1942 = vld [vmem:[%s239 + $0x50] sm:$0xff]
      %v1943 = vld [vmem:[%s239 + $0x58] sm:$0xff]
      %v1944 = vld [vmem:[%s239 + $0x60] sm:$0xff]
      %v1945 = vld [vmem:[%s239 + $0x68] sm:$0xff]
      %v1946 = vld [vmem:[%s239 + $0x70] sm:$0xff]
      %v1947 = vld [vmem:[%s239 + $0x78] sm:$0xff]
      %v1948 = vld [vmem:[%s239 + $0x80] sm:$0xff]
      %v1949 = vld [vmem:[%s239 + $0x88] sm:$0xff]
      %v1950 = vld [vmem:[%s239 + $0x90] sm:$0xff]
      %v1951 = vld [vmem:[%s239 + $0x98] sm:$0xff]
      %v1952 = vld [vmem:[%s239 + $0xa0] sm:$0xff]
      %v1953 = vld [vmem:[%s239 + $0xa8] sm:$0xff]
      %v1954 = vld [vmem:[%s239 + $0xb0] sm:$0xff]
      %v1955 = vld [vmem:[%s239 + $0xb8] sm:$0xff]
      %v1956 = vld [vmem:[%s239 + $0xc0] sm:$0xff]
      %v1957 = vld [vmem:[%s239 + $0xc8] sm:$0xff]
      %v1958 = vld [vmem:[%s239 + $0xd0] sm:$0xff]
      %v1959 = vld [vmem:[%s239 + $0xd8] sm:$0xff]
      %v1960 = vld [vmem:[%s239 + $0xe0] sm:$0xff]
      %v1961 = vld [vmem:[%s239 + $0xe8] sm:$0xff]
      %v1962 = vld [vmem:[%s239 + $0xf0] sm:$0xff]
      %v1963 = vld [vmem:[%s239 + $0xf8] sm:$0xff]
      %v1964 = vadd.f32 %v1853, %v1932
      %v1965 = vadd.f32 %v1855, %v1933
      %v1966 = vadd.f32 %v1858, %v1934
      %v1967 = vadd.f32 %v1860, %v1935
      %v1968 = vadd.f32 %v1863, %v1936
      %v1969 = vadd.f32 %v1865, %v1937
      %v1970 = vadd.f32 %v1868, %v1938
      %v1971 = vadd.f32 %v1870, %v1939
      %v1972 = vadd.f32 %v1873, %v1940
      %v1973 = vadd.f32 %v1875, %v1941
      %v1974 = vadd.f32 %v1878, %v1942
      %v1975 = vadd.f32 %v1880, %v1943
      %v1976 = vadd.f32 %v1883, %v1944
      %v1977 = vadd.f32 %v1885, %v1945
      %v1978 = vadd.f32 %v1888, %v1946
      %v1979 = vadd.f32 %v1890, %v1947
      %v1980 = vadd.f32 %v1893, %v1948
      %v1981 = vadd.f32 %v1895, %v1949
      %v1982 = vadd.f32 %v1898, %v1950
      %v1983 = vadd.f32 %v1900, %v1951
      %v1984 = vadd.f32 %v1903, %v1952
      %v1985 = vadd.f32 %v1905, %v1953
      %v1986 = vadd.f32 %v1908, %v1954
      %v1987 = vadd.f32 %v1910, %v1955
      %v1988 = vadd.f32 %v1913, %v1956
      %v1989 = vadd.f32 %v1915, %v1957
      %v1990 = vadd.f32 %v1918, %v1958
      %v1991 = vadd.f32 %v1920, %v1959
      %v1992 = vadd.f32 %v1923, %v1960
      %v1993 = vadd.f32 %v1925, %v1961
      %v1994 = vadd.f32 %v1928, %v1962
      %v1995 = vadd.f32 %v1930, %v1963
      %1996 = vst.msk [vmem:[%s244] sm:$0xff] %vm414, %v1964
      %1997 = vst.msk [vmem:[%s244 + $0x8] sm:$0xff] %vm414, %v1965
      %1998 = vst.msk [vmem:[%s244 + $0x10] sm:$0xff] %vm414, %v1966
      %1999 = vst.msk [vmem:[%s244 + $0x18] sm:$0xff] %vm414, %v1967
      %2000 = vst.msk [vmem:[%s244 + $0x20] sm:$0xff] %vm414, %v1968
      %2001 = vst.msk [vmem:[%s244 + $0x28] sm:$0xff] %vm414, %v1969
      %2002 = vst.msk [vmem:[%s244 + $0x30] sm:$0xff] %vm414, %v1970
      %2003 = vst.msk [vmem:[%s244 + $0x38] sm:$0xff] %vm414, %v1971
      %2004 = vst.msk [vmem:[%s244 + $0x40] sm:$0xff] %vm414, %v1972
      %2005 = vst.msk [vmem:[%s244 + $0x48] sm:$0xff] %vm414, %v1973
      %2006 = vst.msk [vmem:[%s244 + $0x50] sm:$0xff] %vm414, %v1974
      %2007 = vst.msk [vmem:[%s244 + $0x58] sm:$0xff] %vm414, %v1975
      %2008 = vst.msk [vmem:[%s244 + $0x60] sm:$0xff] %vm414, %v1976
      %2009 = vst.msk [vmem:[%s244 + $0x68] sm:$0xff] %vm414, %v1977
      %2010 = vst.msk [vmem:[%s244 + $0x70] sm:$0xff] %vm414, %v1978
      %2011 = vst.msk [vmem:[%s244 + $0x78] sm:$0xff] %vm414, %v1979
      %2012 = vst.msk [vmem:[%s244 + $0x80] sm:$0xff] %vm414, %v1980
      %2013 = vst.msk [vmem:[%s244 + $0x88] sm:$0xff] %vm414, %v1981
      %2014 = vst.msk [vmem:[%s244 + $0x90] sm:$0xff] %vm414, %v1982
      %2015 = vst.msk [vmem:[%s244 + $0x98] sm:$0xff] %vm414, %v1983
      %2016 = vst.msk [vmem:[%s244 + $0xa0] sm:$0xff] %vm414, %v1984
      %2017 = vst.msk [vmem:[%s244 + $0xa8] sm:$0xff] %vm414, %v1985
      %2018 = vst.msk [vmem:[%s244 + $0xb0] sm:$0xff] %vm414, %v1986
      %2019 = vst.msk [vmem:[%s244 + $0xb8] sm:$0xff] %vm414, %v1987
      %2020 = vst.msk [vmem:[%s244 + $0xc0] sm:$0xff] %vm414, %v1988
      %2021 = vst.msk [vmem:[%s244 + $0xc8] sm:$0xff] %vm414, %v1989
      %2022 = vst.msk [vmem:[%s244 + $0xd0] sm:$0xff] %vm414, %v1990
      %2023 = vst.msk [vmem:[%s244 + $0xd8] sm:$0xff] %vm414, %v1991
      %2024 = vst.msk [vmem:[%s244 + $0xe0] sm:$0xff] %vm414, %v1992
      %2025 = vst.msk [vmem:[%s244 + $0xe8] sm:$0xff] %vm414, %v1993
      %2026 = vst.msk [vmem:[%s244 + $0xf0] sm:$0xff] %vm414, %v1994
      %2027 = vst.msk [vmem:[%s244 + $0xf8] sm:$0xff] %vm414, %v1995
      %p2028 = scmp.lt.s32.totalorder %s16, 1
      %s2029 = scalar_select %p2028, %s16, 1
      %s2030 = smul.addr %s2029, 32
      %s2031 = smul.addr %s2030, 8
      %s2032 = scalar_lea.vmem %s5, %s2031
      // Predicated region
      $region41: #{nhlbi_resunet_basic_block_forward.5} parent=39 // pred_check
        %p2033 = pneg %p149
      $region42: #{nhlbi_resunet_basic_block_forward.5} parent=39 // pred_check_branch
        %2035 = sbr.rel (%p2033) target = $region44
      $region43: #{nhlbi_resunet_basic_block_forward.5} parent=39 // pred_region
        _
      $region44: #{nhlbi_resunet_basic_block_forward.5} parent=39 // pred_fallthru
        _
    $region40: #{nhlbi_resunet_basic_block_forward.5} parent=5 // pred_fallthru
      _
    %p2036 = scmp.le.s32.totalorder 2, %s11
    // Predicated region
    $region45: #{nhlbi_resunet_basic_block_forward.5} parent=5 // pred_check
      %p2037 = pneg %p2036
    $region46: #{nhlbi_resunet_basic_block_forward.5} parent=5 // pred_check_branch
      %2039 = sbr.rel (%p2037) target = $region48
    $region47: #{nhlbi_resunet_basic_block_forward.5} parent=5 // pred_region
      %s2040 = ssub.s32 %s11, 2
      // Predicated region
      $region49: #{nhlbi_resunet_basic_block_forward.5} parent=47 // pred_check
        %p2041 = pneg %p155
      $region50: #{nhlbi_resunet_basic_block_forward.5} parent=47 // pred_check_branch
        %2043 = sbr.rel (%p2041) target = $region52
      $region51: #{nhlbi_resunet_basic_block_forward.5} parent=47 // pred_region
        %p2044 = scmp.lt.s32.totalorder %s17, 1
        %s2045 = scalar_select %p2044, %s17, 1
        %s2046 = smul.addr %s2045, 32
        %s2047 = smul.addr %s2046, 8
        %s2048 = scalar_lea.vmem %s5, %s2047
      $region52: #{nhlbi_resunet_basic_block_forward.5} parent=47 // pred_fallthru
        _
    $region48: #{nhlbi_resunet_basic_block_forward.5} parent=5 // pred_fallthru
      _
  $region6: #{nhlbi_resunet_basic_block_forward.5} parent=0 // loop_footer
    %s15 = sadd.s32 1, %s11
  $region7: #{nhlbi_resunet_basic_block_forward.5} parent=0 // loop_footer_branch
    %10 = sbr.rel target = $region3
  $region8: #{nhlbi_resunet_basic_block_forward.5} parent=0 // loop_exit
    _

</llo_original>
